<compile_context>
chip_gen: v7x
topology: tpu7x:2x2x1
jax: 0.10.0
libtpu: 0.0.40
codegen_flags: <defaults>
</compile_context>

<pallas_src>
import functools

import jax
import jax.numpy as jnp
from jax.experimental import pallas as pl
from jax.experimental.pallas import tpu as pltpu

# ----------------------------- toy model dims -------------------------------
CONV_LAYERS = [(32, 10, 5), (32, 3, 2), (32, 2, 2)]   # (out_dim, kernel, stride)
D = 128          # encoder embedding dim  (lane-dense: multiple of 128)
H = 4            # attention heads
DH = D // H      # head dim
FFN = 256        # feed-forward dim
N_LAYERS = 2
POS_CONV_K = 3   # positional conv taps (odd -> exact 'same' padding)
LN_EPS = 1e-5

T_SAMPLES = 330
STRIDE0 = CONV_LAYERS[0][2]                      # 5
assert CONV_LAYERS[0][1] == 2 * STRIDE0          # layer-1 patch trick needs k = 2*s
T0 = T_SAMPLES // STRIDE0                        # 66 sample groups of 5
T1 = T0 - 1                                      # 65 frames after conv1
T2 = (T1 - CONV_LAYERS[1][1]) // CONV_LAYERS[1][2] + 1   # 32 frames after conv2
T3 = (T2 - CONV_LAYERS[2][1]) // CONV_LAYERS[2][2] + 1   # 16 frames after conv3
C_FE = CONV_LAYERS[-1][0]                        # 32 conv-extractor channels


def _gelu(x):
    # TODO(synk): torch nn.GELU uses exact erf; tanh approximation (EUP path) used here.
    return jax.nn.gelu(x, approximate=True)


def _ln(x, g, b):
    """LayerNorm over the last axis, f32 math; g/b broadcast from (1, C)."""
    mu = jnp.mean(x, axis=-1, keepdims=True)
    var = jnp.mean(jnp.square(x - mu), axis=-1, keepdims=True)
    return (x - mu) * jax.lax.rsqrt(var + LN_EPS) * g + b


# ------------------------------ Pallas kernels ------------------------------

def _frontend_kernel(xr_ref,
                     cw1_ref, cg1_ref, cb1_ref,
                     cw2_ref, cg2_ref, cb2_ref,
                     cw3_ref, cg3_ref, cb3_ref,
                     flg_ref, flb_ref, pw_ref, pb_ref, pcw_ref, pcb_ref,
                     o_ref, h1_scr, h2_scr):
    """Fused conv feature extractor + feature-LN + proj + 3-tap pos-conv residual."""
    xr = xr_ref[0]                                              # (T0, 5) f32

    # conv layer 1 (k=10, s=5): patches = adjacent 5-sample groups on the lane axis.
    p1 = jnp.concatenate([xr[0:T1], xr[1:T1 + 1]], axis=-1)     # (T1, 10)
    h1 = _gelu(_ln(jnp.dot(p1, cw1_ref[...], preferred_element_type=jnp.float32),
                   cg1_ref[...], cb1_ref[...]))                 # (T1, 32) f32
    h1_scr[...] = h1

    # conv layer 2 (k=3, s=2): im2col in VMEM via strided sublane reads.
    p2 = jnp.concatenate([h1_scr[pl.ds(0, T2, stride=2), :],
                          h1_scr[pl.ds(1, T2, stride=2), :],
                          h1_scr[pl.ds(2, T2, stride=2), :]], axis=-1)   # (T2, 96)
    h2 = _gelu(_ln(jnp.dot(p2, cw2_ref[...], preferred_element_type=jnp.float32),
                   cg2_ref[...], cb2_ref[...]))                 # (T2, 32)
    h2_scr[...] = h2

    # conv layer 3 (k=2, s=2)
    p3 = jnp.concatenate([h2_scr[pl.ds(0, T3, stride=2), :],
                          h2_scr[pl.ds(1, T3, stride=2), :]], axis=-1)   # (T3, 64)
    h3 = _gelu(_ln(jnp.dot(p3, cw3_ref[...], preferred_element_type=jnp.float32),
                   cg3_ref[...], cb3_ref[...]))                 # (T3, 32)

    # feature LayerNorm + post_extract_proj
    y = _ln(h3, flg_ref[...], flb_ref[...]).astype(jnp.bfloat16)
    h = jnp.dot(y, pw_ref[...], preferred_element_type=jnp.float32) + pb_ref[...]  # (T3, D)

    # 3-tap 'same' pos-conv as 3 accumulated matmuls on shifted copies (no (T,3D) buffer).
    zrow = jnp.zeros((1, h.shape[-1]), jnp.float32)
    h_prev = jnp.concatenate([zrow, h[:-1]], axis=0).astype(jnp.bfloat16)
    h_next = jnp.concatenate([h[1:], zrow], axis=0).astype(jnp.bfloat16)
    pos = (jnp.dot(h_prev, pcw_ref[0], preferred_element_type=jnp.float32)
           + jnp.dot(h.astype(jnp.bfloat16), pcw_ref[1], preferred_element_type=jnp.float32)
           + jnp.dot(h_next, pcw_ref[2], preferred_element_type=jnp.float32)
           + pcb_ref[...])
    o_ref[0] = (h + _gelu(pos)).astype(o_ref.dtype)


def _encoder_stack_kernel(x_ref,
                          ln1g_ref, ln1b_ref, wqkv_ref, bqkv_ref, wo_ref, bo_ref,
                          ln2g_ref, ln2b_ref, w1_ref, b1_ref, w2_ref, b2_ref,
                          flng_ref, flnb_ref,
                          o_ref, h_scr, attn_scr, *, n_heads, scale):
    """Whole transformer stack: grid=(B, L); residual stream held in VMEM across L."""
    l = pl.program_id(1)

    @pl.when(l == 0)
    def _():
        h_scr[...] = x_ref[0]                                   # (T, D) f32

    x = h_scr[...]
    T, Dm = x.shape
    dh = Dm // n_heads

    # ---------------- self-attention block (pre-LN) ----------------
    y = _ln(x, ln1g_ref[0], ln1b_ref[0]).astype(jnp.bfloat16)
    qkv = jnp.dot(y, wqkv_ref[0], preferred_element_type=jnp.float32) + bqkv_ref[0]  # (T, 3D)
    for hh in range(n_heads):                                   # static unroll; no concat
        q = (qkv[:, hh * dh:(hh + 1) * dh] * scale).astype(jnp.bfloat16)   # scale folded into q
        k = qkv[:, Dm + hh * dh:Dm + (hh + 1) * dh].astype(jnp.bfloat16)
        v = qkv[:, 2 * Dm + hh * dh:2 * Dm + (hh + 1) * dh].astype(jnp.bfloat16)
        s = jax.lax.dot_general(q, k, (((1,), (1,)), ((), ())),
                                preferred_element_type=jnp.float32)        # (T, T)
        m = jnp.max(s, axis=-1, keepdims=True)
        p = jnp.exp(s - m)
        p = p * pl.reciprocal(jnp.sum(p, axis=-1, keepdims=True), approx=True)
        attn_scr[:, hh * dh:(hh + 1) * dh] = jnp.dot(
            p.astype(jnp.bfloat16), v, preferred_element_type=jnp.float32)
    attn = attn_scr[...].astype(jnp.bfloat16)                   # (T, D)
    x = x + jnp.dot(attn, wo_ref[0], preferred_element_type=jnp.float32) + bo_ref[0]

    # ---------------------- FFN block (pre-LN) ----------------------
    y2 = _ln(x, ln2g_ref[0], ln2b_ref[0]).astype(jnp.bfloat16)
    hid = _gelu(jnp.dot(y2, w1_ref[0], preferred_element_type=jnp.float32) + b1_ref[0])
    x = x + jnp.dot(hid.astype(jnp.bfloat16), w2_ref[0],
                    preferred_element_type=jnp.float32) + b2_ref[0]
    h_scr[...] = x

    @pl.when(l == pl.num_programs(1) - 1)
    def _():
        # final LayerNorm (layer_norm_first=True) fused with the single HBM writeback.
        o_ref[0] = _ln(x, flng_ref[...], flnb_ref[...]).astype(o_ref.dtype)


# ------------------------------ spec helpers --------------------------------

def _const_spec(shape):
    rank = len(shape)

    def idx(*_):
        return (0,) * rank
    return pl.BlockSpec(tuple(shape), idx)


def _layer_spec(shape):
    rank = len(shape)

    def idx(b, l):
        return (l,) + (0,) * (rank - 1)
    return pl.BlockSpec((1,) + tuple(shape[1:]), idx)


def _nbytes(arrays):
    return sum(int(a.size) * a.dtype.itemsize for a in arrays)


# ------------------------------- forward pass -------------------------------

def _frontend(params, xr):
    B = xr.shape[0]
    fe = params["fe"]
    operands = [fe[0]["w"], fe[0]["ln_g"], fe[0]["ln_b"],
                fe[1]["w"], fe[1]["ln_g"], fe[1]["ln_b"],
                fe[2]["w"], fe[2]["ln_g"], fe[2]["ln_b"],
                params["feat_ln_g"], params["feat_ln_b"],
                params["proj_w"], params["proj_b"],
                params["pos_w"], params["pos_b"]]
    flops_per_b = (2 * T1 * 10 * 32 + 2 * T2 * 96 * 32 + 2 * T3 * 64 * 32
                   + 2 * T3 * C_FE * D + POS_CONV_K * 2 * T3 * D * D)
    cost = pl.CostEstimate(
        flops=B * flops_per_b,
        transcendentals=B * (T1 * 32 + T2 * 32 + T3 * 32 + T3 * D),
        bytes_accessed=B * (T0 * STRIDE0 * 4 + T3 * D * 4) + _nbytes(operands))
    return pl.pallas_call(
        _frontend_kernel,
        out_shape=jax.ShapeDtypeStruct((B, T3, D), jnp.float32),
        grid=(B,),
        in_specs=[pl.BlockSpec((1, T0, STRIDE0), lambda b: (b, 0, 0))]
                 + [_const_spec(op.shape) for op in operands],
        out_specs=pl.BlockSpec((1, T3, D), lambda b: (b, 0, 0)),
        scratch_shapes=[pltpu.VMEM((T1, CONV_LAYERS[0][0]), jnp.float32),
                        pltpu.VMEM((T2, CONV_LAYERS[1][0]), jnp.float32)],
        compiler_params=pltpu.CompilerParams(dimension_semantics=("parallel",)),
        cost_estimate=cost,
    )(xr, *operands)


def _encoder(params, h0):
    B, T, Dm = h0.shape
    L = params["wqkv"].shape[0]
    layer_ops = [params["ln1_g"], params["ln1_b"], params["wqkv"], params["bqkv"],
                 params["wo"], params["bo"], params["ln2_g"], params["ln2_b"],
                 params["w1"], params["b1"], params["w2"], params["b2"]]
    const_ops = [params["final_ln_g"], params["final_ln_b"]]
    kernel = functools.partial(_encoder_stack_kernel, n_heads=H, scale=1.0 / (DH ** 0.5))
    flops_per_bl = (2 * T * Dm * 3 * Dm + H * 4 * T * T * DH
                    + 2 * T * Dm * Dm + 2 * 2 * T * Dm * FFN)
    cost = pl.CostEstimate(
        flops=B * L * flops_per_bl,
        transcendentals=B * L * (H * T * T + T * FFN),
        bytes_accessed=B * (2 * T * Dm * 4) + B * _nbytes(layer_ops) + _nbytes(const_ops))
    return pl.pallas_call(
        kernel,
        out_shape=jax.ShapeDtypeStruct((B, T, Dm), jnp.float32),
        grid=(B, L),
        in_specs=[pl.BlockSpec((1, T, Dm), lambda b, l: (b, 0, 0))]
                 + [_layer_spec(op.shape) for op in layer_ops]
                 + [_const_spec(op.shape) for op in const_ops],
        out_specs=pl.BlockSpec((1, T, Dm), lambda b, l: (b, 0, 0)),
        scratch_shapes=[pltpu.VMEM((T, Dm), jnp.float32),     # residual stream across L
                        pltpu.VMEM((T, Dm), jnp.float32)],    # per-head attention output
        compiler_params=pltpu.CompilerParams(
            dimension_semantics=("parallel", "arbitrary")),
        cost_estimate=cost,
    )(h0, *layer_ops, *const_ops)


def asr_forward(params, x):
    """x: (B, T_samples) raw waveform -> embeddings (B, T', D)."""
    B, Ts = x.shape
    assert Ts == T_SAMPLES, Ts
    # pure metadata reshape: groups of `stride0` samples on the sublane axis,
    # so the conv-1 im2col becomes two sublane slices inside the kernel (no HBM inflation).
    xr = x.reshape(B, T0, STRIDE0).astype(jnp.float32)
    h0 = _frontend(params, xr)       # (B, T3, D)  -- conv stack + proj + pos-conv
    return _encoder(params, h0)      # (B, T3, D)  -- all transformer layers + final LN


# --------------------------- deterministic params ---------------------------

def init_params(key):
    keys = iter(jax.random.split(key, 64))

    def wf32(shape, scale=0.02):
        return (scale * jax.random.normal(next(keys), shape)).astype(jnp.float32)

    def wbf16(shape, scale=0.02):
        return (scale * jax.random.normal(next(keys), shape)).astype(jnp.bfloat16)

    def zeros(shape):
        return jnp.zeros(shape, jnp.float32)

    def ones(shape):
        return jnp.ones(shape, jnp.float32)

    p = {}
    # conv extractor (f32 weights; conv_bias=False -- bias is absorbed by the channel LN)
    fe = []
    cin = 1
    for (dim, k, s) in CONV_LAYERS:
        fe.append(dict(w=wf32((k * cin, dim)), ln_g=ones((1, dim)), ln_b=zeros((1, dim))))
        cin = dim
    p["fe"] = fe
    p["feat_ln_g"] = ones((1, cin))
    p["feat_ln_b"] = zeros((1, cin))
    p["proj_w"] = wbf16((cin, D))
    p["proj_b"] = zeros((1, D))
    p["pos_w"] = wbf16((POS_CONV_K, D, D))       # 3-tap dense stand-in for the real pos_conv
    p["pos_b"] = zeros((1, D))

    # transformer layers: weights stacked along a leading L axis for the (B, L) grid
    p["ln1_g"] = ones((N_LAYERS, 1, D));   p["ln1_b"] = zeros((N_LAYERS, 1, D))
    p["wqkv"] = wbf16((N_LAYERS, D, 3 * D)); p["bqkv"] = zeros((N_LAYERS, 1, 3 * D))
    p["wo"] = wbf16((N_LAYERS, D, D));     p["bo"] = zeros((N_LAYERS, 1, D))
    p["ln2_g"] = ones((N_LAYERS, 1, D));   p["ln2_b"] = zeros((N_LAYERS, 1, D))
    p["w1"] = wbf16((N_LAYERS, D, FFN));   p["b1"] = zeros((N_LAYERS, 1, FFN))
    p["w2"] = wbf16((N_LAYERS, FFN, D));   p["b2"] = zeros((N_LAYERS, 1, D))
    p["final_ln_g"] = ones((1, D))
    p["final_ln_b"] = zeros((1, D))
    return p


# ----------------------------------- main -----------------------------------

if __name__ == "__main__":
    B = 2
    x = jax.random.normal(jax.random.PRNGKey(0), (B, T_SAMPLES), dtype=jnp.float32)
    params = init_params(jax.random.PRNGKey(42))

    fwd = jax.jit(asr_forward)
    out = jax.block_until_ready(fwd(params, x))

    # 330 samples -> 65 -> 32 -> 16 frames after the strided conv stack
    assert out.shape == (B, T3, D), out.shape
    assert out.dtype == jnp.float32
    assert bool(jnp.all(jnp.isfinite(out)))
    print("KERNEL_OK")
</pallas_src>

<mosaic_0001>
module attributes {stable_mosaic.version = 11 : i64} {
  func.func @_frontend_kernel(%arg0: i32, %arg1: memref<1x66x5xf32, #tpu.memory_space<vmem>>, %arg2: memref<10x32xf32, #tpu.memory_space<vmem>>, %arg3: memref<1x32xf32, #tpu.memory_space<vmem>>, %arg4: memref<1x32xf32, #tpu.memory_space<vmem>>, %arg5: memref<96x32xf32, #tpu.memory_space<vmem>>, %arg6: memref<1x32xf32, #tpu.memory_space<vmem>>, %arg7: memref<1x32xf32, #tpu.memory_space<vmem>>, %arg8: memref<64x32xf32, #tpu.memory_space<vmem>>, %arg9: memref<1x32xf32, #tpu.memory_space<vmem>>, %arg10: memref<1x32xf32, #tpu.memory_space<vmem>>, %arg11: memref<1x32xf32, #tpu.memory_space<vmem>>, %arg12: memref<1x32xf32, #tpu.memory_space<vmem>>, %arg13: memref<32x128xbf16, #tpu.memory_space<vmem>>, %arg14: memref<1x128xf32, #tpu.memory_space<vmem>>, %arg15: memref<3x128x128xbf16, #tpu.memory_space<vmem>>, %arg16: memref<1x128xf32, #tpu.memory_space<vmem>>, %arg17: memref<1x16x128xf32, #tpu.memory_space<vmem>>, %arg18: memref<65x32xf32, #tpu.memory_space<vmem>>, %arg19: memref<32x32xf32, #tpu.memory_space<vmem>>) attributes {dimension_semantics = [#tpu.dimension_semantics<parallel>], iteration_bounds = array<i64: 2>, scalar_prefetch = 0 : i64, scratch_operands = 2 : i64, tpu.core_type = #tpu.core_type<tc>, window_params = [{transform_indices = @transform_0, window_bounds = array<i64: 1, 66, 5>}, {pipeline_mode = #tpu.pipeline_mode<synchronous>, transform_indices = @transform_1, window_bounds = array<i64: 10, 32>}, {pipeline_mode = #tpu.pipeline_mode<synchronous>, transform_indices = @transform_2, window_bounds = array<i64: 1, 32>}, {pipeline_mode = #tpu.pipeline_mode<synchronous>, transform_indices = @transform_3, window_bounds = array<i64: 1, 32>}, {pipeline_mode = #tpu.pipeline_mode<synchronous>, transform_indices = @transform_4, window_bounds = array<i64: 96, 32>}, {pipeline_mode = #tpu.pipeline_mode<synchronous>, transform_indices = @transform_5, window_bounds = array<i64: 1, 32>}, {pipeline_mode = #tpu.pipeline_mode<synchronous>, transform_indices = @transform_6, window_bounds = array<i64: 1, 32>}, {pipeline_mode = #tpu.pipeline_mode<synchronous>, transform_indices = @transform_7, window_bounds = array<i64: 64, 32>}, {pipeline_mode = #tpu.pipeline_mode<synchronous>, transform_indices = @transform_8, window_bounds = array<i64: 1, 32>}, {pipeline_mode = #tpu.pipeline_mode<synchronous>, transform_indices = @transform_9, window_bounds = array<i64: 1, 32>}, {pipeline_mode = #tpu.pipeline_mode<synchronous>, transform_indices = @transform_10, window_bounds = array<i64: 1, 32>}, {pipeline_mode = #tpu.pipeline_mode<synchronous>, transform_indices = @transform_11, window_bounds = array<i64: 1, 32>}, {pipeline_mode = #tpu.pipeline_mode<synchronous>, transform_indices = @transform_12, window_bounds = array<i64: 32, 128>}, {pipeline_mode = #tpu.pipeline_mode<synchronous>, transform_indices = @transform_13, window_bounds = array<i64: 1, 128>}, {pipeline_mode = #tpu.pipeline_mode<synchronous>, transform_indices = @transform_14, window_bounds = array<i64: 3, 128, 128>}, {pipeline_mode = #tpu.pipeline_mode<synchronous>, transform_indices = @transform_15, window_bounds = array<i64: 1, 128>}, {transform_indices = @transform_16, window_bounds = array<i64: 1, 16, 128>}]} {
    %c0 = arith.constant 0 : index
    %c0_0 = arith.constant 0 : index
    %c0_1 = arith.constant 0 : index
    %0 = vector.load %arg1[%c0, %c0_0, %c0_1] : memref<1x66x5xf32, #tpu.memory_space<vmem>>, vector<1x66x5xf32>
    %1 = vector.shape_cast %0 : vector<1x66x5xf32> to vector<66x5xf32>
    %2 = vector.extract_strided_slice %1 {offsets = [0, 0], sizes = [65, 5], strides = [1, 1]} : vector<66x5xf32> to vector<65x5xf32>
    %3 = vector.extract_strided_slice %1 {offsets = [1, 0], sizes = [65, 5], strides = [1, 1]} : vector<66x5xf32> to vector<65x5xf32>
    %4 = tpu.concatenate %2, %3 in 1 : vector<65x5xf32>, vector<65x5xf32> -> vector<65x10xf32>
    %c0_2 = arith.constant 0 : index
    %c0_3 = arith.constant 0 : index
    %5 = vector.load %arg2[%c0_2, %c0_3] : memref<10x32xf32, #tpu.memory_space<vmem>>, vector<10x32xf32>
    %cst = arith.constant dense<0.000000e+00> : vector<65x32xf32>
    %6 = tpu.matmul %4, %5, %cst {dimension_numbers = #tpu.dot_dimension_numbers<[1], [0], [0], [1], [0, 0, 1, 1], [], []>} : vector<65x10xf32>, vector<10x32xf32>, vector<65x32xf32> -> vector<65x32xf32>
    %c0_4 = arith.constant 0 : index
    %c0_5 = arith.constant 0 : index
    %7 = vector.load %arg3[%c0_4, %c0_5] : memref<1x32xf32, #tpu.memory_space<vmem>>, vector<1x32xf32>
    %c0_6 = arith.constant 0 : index
    %c0_7 = arith.constant 0 : index
    %8 = vector.load %arg4[%c0_6, %c0_7] : memref<1x32xf32, #tpu.memory_space<vmem>>, vector<1x32xf32>
    %cst_8 = arith.constant dense<0.000000e+00> : vector<65xf32>
    %9 = vector.multi_reduction <add>, %6, %cst_8 [1] : vector<65x32xf32> to vector<65xf32>
    %10 = vector.shape_cast %9 : vector<65xf32> to vector<65x1xf32>
    %cst_9 = arith.constant 3.200000e+01 : f32
    %11 = vector.broadcast %cst_9 : f32 to vector<65x1xf32>
    %12 = arith.divf %10, %11 : vector<65x1xf32>
    %13 = vector.broadcast %12 : vector<65x1xf32> to vector<65x32xf32>
    %14 = arith.subf %6, %13 : vector<65x32xf32>
    %15 = arith.mulf %14, %14 : vector<65x32xf32>
    %cst_10 = arith.constant dense<0.000000e+00> : vector<65xf32>
    %16 = vector.multi_reduction <add>, %15, %cst_10 [1] : vector<65x32xf32> to vector<65xf32>
    %17 = vector.shape_cast %16 : vector<65xf32> to vector<65x1xf32>
    %cst_11 = arith.constant 3.200000e+01 : f32
    %18 = vector.broadcast %cst_11 : f32 to vector<65x1xf32>
    %19 = arith.divf %17, %18 : vector<65x1xf32>
    %20 = vector.broadcast %12 : vector<65x1xf32> to vector<65x32xf32>
    %21 = arith.subf %6, %20 : vector<65x32xf32>
    %cst_12 = arith.constant 9.99999974E-6 : f32
    %22 = vector.broadcast %cst_12 : f32 to vector<65x1xf32>
    %23 = arith.addf %19, %22 : vector<65x1xf32>
    %24 = math.rsqrt %23 : vector<65x1xf32>
    %25 = vector.broadcast %24 : vector<65x1xf32> to vector<65x32xf32>
    %26 = arith.mulf %21, %25 : vector<65x32xf32>
    %27 = vector.broadcast %7 : vector<1x32xf32> to vector<65x32xf32>
    %28 = arith.mulf %26, %27 : vector<65x32xf32>
    %29 = vector.broadcast %8 : vector<1x32xf32> to vector<65x32xf32>
    %30 = arith.addf %28, %29 : vector<65x32xf32>
    %31 = arith.mulf %30, %30 : vector<65x32xf32>
    %32 = arith.mulf %30, %31 : vector<65x32xf32>
    %cst_13 = arith.constant 4.471500e-02 : f32
    %33 = vector.broadcast %cst_13 : f32 to vector<65x32xf32>
    %34 = arith.mulf %33, %32 : vector<65x32xf32>
    %35 = arith.addf %30, %34 : vector<65x32xf32>
    %cst_14 = arith.constant 0.797884583 : f32
    %36 = vector.broadcast %cst_14 : f32 to vector<65x32xf32>
    %37 = arith.mulf %36, %35 : vector<65x32xf32>
    %38 = math.tanh %37 : vector<65x32xf32>
    %cst_15 = arith.constant 1.000000e+00 : f32
    %39 = vector.broadcast %cst_15 : f32 to vector<65x32xf32>
    %40 = arith.addf %39, %38 : vector<65x32xf32>
    %cst_16 = arith.constant 5.000000e-01 : f32
    %41 = vector.broadcast %cst_16 : f32 to vector<65x32xf32>
    %42 = arith.mulf %41, %40 : vector<65x32xf32>
    %43 = arith.mulf %30, %42 : vector<65x32xf32>
    %c0_17 = arith.constant 0 : index
    %c0_18 = arith.constant 0 : index
    %44 = vector.load %arg18[%c0_17, %c0_18] : memref<65x32xf32, #tpu.memory_space<vmem>>, vector<65x32xf32>
    tpu.vector_store %arg18[%c0_17, %c0_18], %43 {strides = array<i32>} : memref<65x32xf32, #tpu.memory_space<vmem>>, vector<65x32xf32>,
    %c0_19 = arith.constant 0 : index
    %c0_20 = arith.constant 0 : index
    %45 = tpu.strided_load %arg18[%c0_19, %c0_20] {strides = array<i32: 2, 1>} : memref<65x32xf32, #tpu.memory_space<vmem>>, vector<32x32xf32>
    %c1 = arith.constant 1 : index
    %c0_21 = arith.constant 0 : index
    %46 = tpu.strided_load %arg18[%c1, %c0_21] {strides = array<i32: 2, 1>} : memref<65x32xf32, #tpu.memory_space<vmem>>, vector<32x32xf32>
    %c2 = arith.constant 2 : index
    %c0_22 = arith.constant 0 : index
    %47 = tpu.strided_load %arg18[%c2, %c0_22] {strides = array<i32: 2, 1>} : memref<65x32xf32, #tpu.memory_space<vmem>>, vector<32x32xf32>
    %48 = tpu.concatenate %45, %46, %47 in 1 : vector<32x32xf32>, vector<32x32xf32>, vector<32x32xf32> -> vector<32x96xf32>
    %c0_23 = arith.constant 0 : index
    %c0_24 = arith.constant 0 : index
    %49 = vector.load %arg5[%c0_23, %c0_24] : memref<96x32xf32, #tpu.memory_space<vmem>>, vector<96x32xf32>
    %cst_25 = arith.constant dense<0.000000e+00> : vector<32x32xf32>
    %50 = tpu.matmul %48, %49, %cst_25 {dimension_numbers = #tpu.dot_dimension_numbers<[1], [0], [0], [1], [0, 0, 1, 1], [], []>} : vector<32x96xf32>, vector<96x32xf32>, vector<32x32xf32> -> vector<32x32xf32>
    %c0_26 = arith.constant 0 : index
    %c0_27 = arith.constant 0 : index
    %51 = vector.load %arg6[%c0_26, %c0_27] : memref<1x32xf32, #tpu.memory_space<vmem>>, vector<1x32xf32>
    %c0_28 = arith.constant 0 : index
    %c0_29 = arith.constant 0 : index
    %52 = vector.load %arg7[%c0_28, %c0_29] : memref<1x32xf32, #tpu.memory_space<vmem>>, vector<1x32xf32>
    %cst_30 = arith.constant dense<0.000000e+00> : vector<32xf32>
    %53 = vector.multi_reduction <add>, %50, %cst_30 [1] : vector<32x32xf32> to vector<32xf32>
    %54 = vector.shape_cast %53 : vector<32xf32> to vector<32x1xf32>
    %cst_31 = arith.constant 3.200000e+01 : f32
    %55 = vector.broadcast %cst_31 : f32 to vector<32x1xf32>
    %56 = arith.divf %54, %55 : vector<32x1xf32>
    %57 = vector.broadcast %56 : vector<32x1xf32> to vector<32x32xf32>
    %58 = arith.subf %50, %57 : vector<32x32xf32>
    %59 = arith.mulf %58, %58 : vector<32x32xf32>
    %cst_32 = arith.constant dense<0.000000e+00> : vector<32xf32>
    %60 = vector.multi_reduction <add>, %59, %cst_32 [1] : vector<32x32xf32> to vector<32xf32>
    %61 = vector.shape_cast %60 : vector<32xf32> to vector<32x1xf32>
    %cst_33 = arith.constant 3.200000e+01 : f32
    %62 = vector.broadcast %cst_33 : f32 to vector<32x1xf32>
    %63 = arith.divf %61, %62 : vector<32x1xf32>
    %64 = vector.broadcast %56 : vector<32x1xf32> to vector<32x32xf32>
    %65 = arith.subf %50, %64 : vector<32x32xf32>
    %cst_34 = arith.constant 9.99999974E-6 : f32
    %66 = vector.broadcast %cst_34 : f32 to vector<32x1xf32>
    %67 = arith.addf %63, %66 : vector<32x1xf32>
    %68 = math.rsqrt %67 : vector<32x1xf32>
    %69 = vector.broadcast %68 : vector<32x1xf32> to vector<32x32xf32>
    %70 = arith.mulf %65, %69 : vector<32x32xf32>
    %71 = vector.broadcast %51 : vector<1x32xf32> to vector<32x32xf32>
    %72 = arith.mulf %70, %71 : vector<32x32xf32>
    %73 = vector.broadcast %52 : vector<1x32xf32> to vector<32x32xf32>
    %74 = arith.addf %72, %73 : vector<32x32xf32>
    %75 = arith.mulf %74, %74 : vector<32x32xf32>
    %76 = arith.mulf %74, %75 : vector<32x32xf32>
    %cst_35 = arith.constant 4.471500e-02 : f32
    %77 = vector.broadcast %cst_35 : f32 to vector<32x32xf32>
    %78 = arith.mulf %77, %76 : vector<32x32xf32>
    %79 = arith.addf %74, %78 : vector<32x32xf32>
    %cst_36 = arith.constant 0.797884583 : f32
    %80 = vector.broadcast %cst_36 : f32 to vector<32x32xf32>
    %81 = arith.mulf %80, %79 : vector<32x32xf32>
    %82 = math.tanh %81 : vector<32x32xf32>
    %cst_37 = arith.constant 1.000000e+00 : f32
    %83 = vector.broadcast %cst_37 : f32 to vector<32x32xf32>
    %84 = arith.addf %83, %82 : vector<32x32xf32>
    %cst_38 = arith.constant 5.000000e-01 : f32
    %85 = vector.broadcast %cst_38 : f32 to vector<32x32xf32>
    %86 = arith.mulf %85, %84 : vector<32x32xf32>
    %87 = arith.mulf %74, %86 : vector<32x32xf32>
    %c0_39 = arith.constant 0 : index
    %c0_40 = arith.constant 0 : index
    %88 = vector.load %arg19[%c0_39, %c0_40] : memref<32x32xf32, #tpu.memory_space<vmem>>, vector<32x32xf32>
    tpu.vector_store %arg19[%c0_39, %c0_40], %87 {strides = array<i32>} : memref<32x32xf32, #tpu.memory_space<vmem>>, vector<32x32xf32>,
    %c0_41 = arith.constant 0 : index
    %c0_42 = arith.constant 0 : index
    %89 = tpu.strided_load %arg19[%c0_41, %c0_42] {strides = array<i32: 2, 1>} : memref<32x32xf32, #tpu.memory_space<vmem>>, vector<16x32xf32>
    %c1_43 = arith.constant 1 : index
    %c0_44 = arith.constant 0 : index
    %90 = tpu.strided_load %arg19[%c1_43, %c0_44] {strides = array<i32: 2, 1>} : memref<32x32xf32, #tpu.memory_space<vmem>>, vector<16x32xf32>
    %91 = tpu.concatenate %89, %90 in 1 : vector<16x32xf32>, vector<16x32xf32> -> vector<16x64xf32>
    %c0_45 = arith.constant 0 : index
    %c0_46 = arith.constant 0 : index
    %92 = vector.load %arg8[%c0_45, %c0_46] : memref<64x32xf32, #tpu.memory_space<vmem>>, vector<64x32xf32>
    %cst_47 = arith.constant dense<0.000000e+00> : vector<16x32xf32>
    %93 = tpu.matmul %91, %92, %cst_47 {dimension_numbers = #tpu.dot_dimension_numbers<[1], [0], [0], [1], [0, 0, 1, 1], [], []>} : vector<16x64xf32>, vector<64x32xf32>, vector<16x32xf32> -> vector<16x32xf32>
    %c0_48 = arith.constant 0 : index
    %c0_49 = arith.constant 0 : index
    %94 = vector.load %arg9[%c0_48, %c0_49] : memref<1x32xf32, #tpu.memory_space<vmem>>, vector<1x32xf32>
    %c0_50 = arith.constant 0 : index
    %c0_51 = arith.constant 0 : index
    %95 = vector.load %arg10[%c0_50, %c0_51] : memref<1x32xf32, #tpu.memory_space<vmem>>, vector<1x32xf32>
    %cst_52 = arith.constant dense<0.000000e+00> : vector<16xf32>
    %96 = vector.multi_reduction <add>, %93, %cst_52 [1] : vector<16x32xf32> to vector<16xf32>
    %97 = vector.shape_cast %96 : vector<16xf32> to vector<16x1xf32>
    %cst_53 = arith.constant 3.200000e+01 : f32
    %98 = vector.broadcast %cst_53 : f32 to vector<16x1xf32>
    %99 = arith.divf %97, %98 : vector<16x1xf32>
    %100 = vector.broadcast %99 : vector<16x1xf32> to vector<16x32xf32>
    %101 = arith.subf %93, %100 : vector<16x32xf32>
    %102 = arith.mulf %101, %101 : vector<16x32xf32>
    %cst_54 = arith.constant dense<0.000000e+00> : vector<16xf32>
    %103 = vector.multi_reduction <add>, %102, %cst_54 [1] : vector<16x32xf32> to vector<16xf32>
    %104 = vector.shape_cast %103 : vector<16xf32> to vector<16x1xf32>
    %cst_55 = arith.constant 3.200000e+01 : f32
    %105 = vector.broadcast %cst_55 : f32 to vector<16x1xf32>
    %106 = arith.divf %104, %105 : vector<16x1xf32>
    %107 = vector.broadcast %99 : vector<16x1xf32> to vector<16x32xf32>
    %108 = arith.subf %93, %107 : vector<16x32xf32>
    %cst_56 = arith.constant 9.99999974E-6 : f32
    %109 = vector.broadcast %cst_56 : f32 to vector<16x1xf32>
    %110 = arith.addf %106, %109 : vector<16x1xf32>
    %111 = math.rsqrt %110 : vector<16x1xf32>
    %112 = vector.broadcast %111 : vector<16x1xf32> to vector<16x32xf32>
    %113 = arith.mulf %108, %112 : vector<16x32xf32>
    %114 = vector.broadcast %94 : vector<1x32xf32> to vector<16x32xf32>
    %115 = arith.mulf %113, %114 : vector<16x32xf32>
    %116 = vector.broadcast %95 : vector<1x32xf32> to vector<16x32xf32>
    %117 = arith.addf %115, %116 : vector<16x32xf32>
    %118 = arith.mulf %117, %117 : vector<16x32xf32>
    %119 = arith.mulf %117, %118 : vector<16x32xf32>
    %cst_57 = arith.constant 4.471500e-02 : f32
    %120 = vector.broadcast %cst_57 : f32 to vector<16x32xf32>
    %121 = arith.mulf %120, %119 : vector<16x32xf32>
    %122 = arith.addf %117, %121 : vector<16x32xf32>
    %cst_58 = arith.constant 0.797884583 : f32
    %123 = vector.broadcast %cst_58 : f32 to vector<16x32xf32>
    %124 = arith.mulf %123, %122 : vector<16x32xf32>
    %125 = math.tanh %124 : vector<16x32xf32>
    %cst_59 = arith.constant 1.000000e+00 : f32
    %126 = vector.broadcast %cst_59 : f32 to vector<16x32xf32>
    %127 = arith.addf %126, %125 : vector<16x32xf32>
    %cst_60 = arith.constant 5.000000e-01 : f32
    %128 = vector.broadcast %cst_60 : f32 to vector<16x32xf32>
    %129 = arith.mulf %128, %127 : vector<16x32xf32>
    %130 = arith.mulf %117, %129 : vector<16x32xf32>
    %c0_61 = arith.constant 0 : index
    %c0_62 = arith.constant 0 : index
    %131 = vector.load %arg11[%c0_61, %c0_62] : memref<1x32xf32, #tpu.memory_space<vmem>>, vector<1x32xf32>
    %c0_63 = arith.constant 0 : index
    %c0_64 = arith.constant 0 : index
    %132 = vector.load %arg12[%c0_63, %c0_64] : memref<1x32xf32, #tpu.memory_space<vmem>>, vector<1x32xf32>
    %cst_65 = arith.constant dense<0.000000e+00> : vector<16xf32>
    %133 = vector.multi_reduction <add>, %130, %cst_65 [1] : vector<16x32xf32> to vector<16xf32>
    %134 = vector.shape_cast %133 : vector<16xf32> to vector<16x1xf32>
    %cst_66 = arith.constant 3.200000e+01 : f32
    %135 = vector.broadcast %cst_66 : f32 to vector<16x1xf32>
    %136 = arith.divf %134, %135 : vector<16x1xf32>
    %137 = vector.broadcast %136 : vector<16x1xf32> to vector<16x32xf32>
    %138 = arith.subf %130, %137 : vector<16x32xf32>
    %139 = arith.mulf %138, %138 : vector<16x32xf32>
    %cst_67 = arith.constant dense<0.000000e+00> : vector<16xf32>
    %140 = vector.multi_reduction <add>, %139, %cst_67 [1] : vector<16x32xf32> to vector<16xf32>
    %141 = vector.shape_cast %140 : vector<16xf32> to vector<16x1xf32>
    %cst_68 = arith.constant 3.200000e+01 : f32
    %142 = vector.broadcast %cst_68 : f32 to vector<16x1xf32>
    %143 = arith.divf %141, %142 : vector<16x1xf32>
    %144 = vector.broadcast %136 : vector<16x1xf32> to vector<16x32xf32>
    %145 = arith.subf %130, %144 : vector<16x32xf32>
    %cst_69 = arith.constant 9.99999974E-6 : f32
    %146 = vector.broadcast %cst_69 : f32 to vector<16x1xf32>
    %147 = arith.addf %143, %146 : vector<16x1xf32>
    %148 = math.rsqrt %147 : vector<16x1xf32>
    %149 = vector.broadcast %148 : vector<16x1xf32> to vector<16x32xf32>
    %150 = arith.mulf %145, %149 : vector<16x32xf32>
    %151 = vector.broadcast %131 : vector<1x32xf32> to vector<16x32xf32>
    %152 = arith.mulf %150, %151 : vector<16x32xf32>
    %153 = vector.broadcast %132 : vector<1x32xf32> to vector<16x32xf32>
    %154 = arith.addf %152, %153 : vector<16x32xf32>
    %155 = arith.truncf %154 : vector<16x32xf32> to vector<16x32xbf16>
    %c0_70 = arith.constant 0 : index
    %c0_71 = arith.constant 0 : index
    %156 = vector.load %arg13[%c0_70, %c0_71] : memref<32x128xbf16, #tpu.memory_space<vmem>>, vector<32x128xbf16>
    %cst_72 = arith.constant dense<0.000000e+00> : vector<16x128xf32>
    %157 = tpu.matmul %155, %156, %cst_72 {dimension_numbers = #tpu.dot_dimension_numbers<[1], [0], [0], [1], [0, 0, 1, 1], [], []>} : vector<16x32xbf16>, vector<32x128xbf16>, vector<16x128xf32> -> vector<16x128xf32>
    %c0_73 = arith.constant 0 : index
    %c0_74 = arith.constant 0 : index
    %158 = vector.load %arg14[%c0_73, %c0_74] : memref<1x128xf32, #tpu.memory_space<vmem>>, vector<1x128xf32>
    %159 = vector.broadcast %158 : vector<1x128xf32> to vector<16x128xf32>
    %160 = arith.addf %157, %159 : vector<16x128xf32>
    %cst_75 = arith.constant 0.000000e+00 : f32
    %161 = vector.broadcast %cst_75 : f32 to vector<1x128xf32>
    %162 = vector.extract_strided_slice %160 {offsets = [0, 0], sizes = [15, 128], strides = [1, 1]} : vector<16x128xf32> to vector<15x128xf32>
    %163 = tpu.concatenate %161, %162 in 0 : vector<1x128xf32>, vector<15x128xf32> -> vector<16x128xf32>
    %164 = arith.truncf %163 : vector<16x128xf32> to vector<16x128xbf16>
    %165 = vector.extract_strided_slice %160 {offsets = [1, 0], sizes = [15, 128], strides = [1, 1]} : vector<16x128xf32> to vector<15x128xf32>
    %166 = tpu.concatenate %165, %161 in 0 : vector<15x128xf32>, vector<1x128xf32> -> vector<16x128xf32>
    %167 = arith.truncf %166 : vector<16x128xf32> to vector<16x128xbf16>
    %c0_76 = arith.constant 0 : index
    %c0_77 = arith.constant 0 : index
    %c0_78 = arith.constant 0 : index
    %168 = vector.load %arg15[%c0_76, %c0_77, %c0_78] : memref<3x128x128xbf16, #tpu.memory_space<vmem>>, vector<1x128x128xbf16>
    %169 = vector.shape_cast %168 : vector<1x128x128xbf16> to vector<128x128xbf16>
    %cst_79 = arith.constant dense<0.000000e+00> : vector<16x128xf32>
    %170 = tpu.matmul %164, %169, %cst_79 {dimension_numbers = #tpu.dot_dimension_numbers<[1], [0], [0], [1], [0, 0, 1, 1], [], []>} : vector<16x128xbf16>, vector<128x128xbf16>, vector<16x128xf32> -> vector<16x128xf32>
    %171 = arith.truncf %160 : vector<16x128xf32> to vector<16x128xbf16>
    %c1_80 = arith.constant 1 : index
    %c0_81 = arith.constant 0 : index
    %c0_82 = arith.constant 0 : index
    %172 = vector.load %arg15[%c1_80, %c0_81, %c0_82] : memref<3x128x128xbf16, #tpu.memory_space<vmem>>, vector<1x128x128xbf16>
    %173 = vector.shape_cast %172 : vector<1x128x128xbf16> to vector<128x128xbf16>
    %cst_83 = arith.constant dense<0.000000e+00> : vector<16x128xf32>
    %174 = tpu.matmul %171, %173, %cst_83 {dimension_numbers = #tpu.dot_dimension_numbers<[1], [0], [0], [1], [0, 0, 1, 1], [], []>} : vector<16x128xbf16>, vector<128x128xbf16>, vector<16x128xf32> -> vector<16x128xf32>
    %175 = arith.addf %170, %174 : vector<16x128xf32>
    %c2_84 = arith.constant 2 : index
    %c0_85 = arith.constant 0 : index
    %c0_86 = arith.constant 0 : index
    %176 = vector.load %arg15[%c2_84, %c0_85, %c0_86] : memref<3x128x128xbf16, #tpu.memory_space<vmem>>, vector<1x128x128xbf16>
    %177 = vector.shape_cast %176 : vector<1x128x128xbf16> to vector<128x128xbf16>
    %cst_87 = arith.constant dense<0.000000e+00> : vector<16x128xf32>
    %178 = tpu.matmul %167, %177, %cst_87 {dimension_numbers = #tpu.dot_dimension_numbers<[1], [0], [0], [1], [0, 0, 1, 1], [], []>} : vector<16x128xbf16>, vector<128x128xbf16>, vector<16x128xf32> -> vector<16x128xf32>
    %179 = arith.addf %175, %178 : vector<16x128xf32>
    %c0_88 = arith.constant 0 : index
    %c0_89 = arith.constant 0 : index
    %180 = vector.load %arg16[%c0_88, %c0_89] : memref<1x128xf32, #tpu.memory_space<vmem>>, vector<1x128xf32>
    %181 = vector.broadcast %180 : vector<1x128xf32> to vector<16x128xf32>
    %182 = arith.addf %179, %181 : vector<16x128xf32>
    %183 = arith.mulf %182, %182 : vector<16x128xf32>
    %184 = arith.mulf %182, %183 : vector<16x128xf32>
    %cst_90 = arith.constant 4.471500e-02 : f32
    %185 = vector.broadcast %cst_90 : f32 to vector<16x128xf32>
    %186 = arith.mulf %185, %184 : vector<16x128xf32>
    %187 = arith.addf %182, %186 : vector<16x128xf32>
    %cst_91 = arith.constant 0.797884583 : f32
    %188 = vector.broadcast %cst_91 : f32 to vector<16x128xf32>
    %189 = arith.mulf %188, %187 : vector<16x128xf32>
    %190 = math.tanh %189 : vector<16x128xf32>
    %cst_92 = arith.constant 1.000000e+00 : f32
    %191 = vector.broadcast %cst_92 : f32 to vector<16x128xf32>
    %192 = arith.addf %191, %190 : vector<16x128xf32>
    %cst_93 = arith.constant 5.000000e-01 : f32
    %193 = vector.broadcast %cst_93 : f32 to vector<16x128xf32>
    %194 = arith.mulf %193, %192 : vector<16x128xf32>
    %195 = arith.mulf %182, %194 : vector<16x128xf32>
    %196 = arith.addf %160, %195 : vector<16x128xf32>
    %c0_94 = arith.constant 0 : index
    %c0_95 = arith.constant 0 : index
    %c0_96 = arith.constant 0 : index
    %197 = vector.load %arg17[%c0_94, %c0_95, %c0_96] : memref<1x16x128xf32, #tpu.memory_space<vmem>>, vector<1x16x128xf32>
    %198 = vector.shape_cast %197 : vector<1x16x128xf32> to vector<16x128xf32>
    %199 = vector.shape_cast %196 : vector<16x128xf32> to vector<1x16x128xf32>
    tpu.vector_store %arg17[%c0_94, %c0_95, %c0_96], %199 {strides = array<i32>} : memref<1x16x128xf32, #tpu.memory_space<vmem>>, vector<1x16x128xf32>,
    return
  }
  func.func @transform_0(%arg0: i32) -> (i32, i32, i32) {
    %c0_i32 = arith.constant 0 : i32
    %c0_i32_0 = arith.constant 0 : i32
    %c0_i32_1 = arith.constant 0 : i32
    return %arg0, %c0_i32, %c0_i32_0 : i32, i32, i32
  }
  func.func @transform_1(%arg0: i32) -> (i32, i32) {
    %c0_i32 = arith.constant 0 : i32
    %c0_i32_0 = arith.constant 0 : i32
    %c0_i32_1 = arith.constant 0 : i32
    return %c0_i32, %c0_i32_0 : i32, i32
  }
  func.func @transform_2(%arg0: i32) -> (i32, i32) {
    %c0_i32 = arith.constant 0 : i32
    %c0_i32_0 = arith.constant 0 : i32
    %c0_i32_1 = arith.constant 0 : i32
    return %c0_i32, %c0_i32_0 : i32, i32
  }
  func.func @transform_3(%arg0: i32) -> (i32, i32) {
    %c0_i32 = arith.constant 0 : i32
    %c0_i32_0 = arith.constant 0 : i32
    %c0_i32_1 = arith.constant 0 : i32
    return %c0_i32, %c0_i32_0 : i32, i32
  }
  func.func @transform_4(%arg0: i32) -> (i32, i32) {
    %c0_i32 = arith.constant 0 : i32
    %c0_i32_0 = arith.constant 0 : i32
    %c0_i32_1 = arith.constant 0 : i32
    return %c0_i32, %c0_i32_0 : i32, i32
  }
  func.func @transform_5(%arg0: i32) -> (i32, i32) {
    %c0_i32 = arith.constant 0 : i32
    %c0_i32_0 = arith.constant 0 : i32
    %c0_i32_1 = arith.constant 0 : i32
    return %c0_i32, %c0_i32_0 : i32, i32
  }
  func.func @transform_6(%arg0: i32) -> (i32, i32) {
    %c0_i32 = arith.constant 0 : i32
    %c0_i32_0 = arith.constant 0 : i32
    %c0_i32_1 = arith.constant 0 : i32
    return %c0_i32, %c0_i32_0 : i32, i32
  }
  func.func @transform_7(%arg0: i32) -> (i32, i32) {
    %c0_i32 = arith.constant 0 : i32
    %c0_i32_0 = arith.constant 0 : i32
    %c0_i32_1 = arith.constant 0 : i32
    return %c0_i32, %c0_i32_0 : i32, i32
  }
  func.func @transform_8(%arg0: i32) -> (i32, i32) {
    %c0_i32 = arith.constant 0 : i32
    %c0_i32_0 = arith.constant 0 : i32
    %c0_i32_1 = arith.constant 0 : i32
    return %c0_i32, %c0_i32_0 : i32, i32
  }
  func.func @transform_9(%arg0: i32) -> (i32, i32) {
    %c0_i32 = arith.constant 0 : i32
    %c0_i32_0 = arith.constant 0 : i32
    %c0_i32_1 = arith.constant 0 : i32
    return %c0_i32, %c0_i32_0 : i32, i32
  }
  func.func @transform_10(%arg0: i32) -> (i32, i32) {
    %c0_i32 = arith.constant 0 : i32
    %c0_i32_0 = arith.constant 0 : i32
    %c0_i32_1 = arith.constant 0 : i32
    return %c0_i32, %c0_i32_0 : i32, i32
  }
  func.func @transform_11(%arg0: i32) -> (i32, i32) {
    %c0_i32 = arith.constant 0 : i32
    %c0_i32_0 = arith.constant 0 : i32
    %c0_i32_1 = arith.constant 0 : i32
    return %c0_i32, %c0_i32_0 : i32, i32
  }
  func.func @transform_12(%arg0: i32) -> (i32, i32) {
    %c0_i32 = arith.constant 0 : i32
    %c0_i32_0 = arith.constant 0 : i32
    %c0_i32_1 = arith.constant 0 : i32
    return %c0_i32, %c0_i32_0 : i32, i32
  }
  func.func @transform_13(%arg0: i32) -> (i32, i32) {
    %c0_i32 = arith.constant 0 : i32
    %c0_i32_0 = arith.constant 0 : i32
    %c0_i32_1 = arith.constant 0 : i32
    return %c0_i32, %c0_i32_0 : i32, i32
  }
  func.func @transform_14(%arg0: i32) -> (i32, i32, i32) {
    %c0_i32 = arith.constant 0 : i32
    %c0_i32_0 = arith.constant 0 : i32
    %c0_i32_1 = arith.constant 0 : i32
    %c0_i32_2 = arith.constant 0 : i32
    return %c0_i32, %c0_i32_0, %c0_i32_1 : i32, i32, i32
  }
  func.func @transform_15(%arg0: i32) -> (i32, i32) {
    %c0_i32 = arith.constant 0 : i32
    %c0_i32_0 = arith.constant 0 : i32
    %c0_i32_1 = arith.constant 0 : i32
    return %c0_i32, %c0_i32_0 : i32, i32
  }
  func.func @transform_16(%arg0: i32) -> (i32, i32, i32) {
    %c0_i32 = arith.constant 0 : i32
    %c0_i32_0 = arith.constant 0 : i32
    %c0_i32_1 = arith.constant 0 : i32
    return %arg0, %c0_i32, %c0_i32_0 : i32, i32, i32
  }
}

module attributes {stable_mosaic.version = 11 : i64} {
  func.func @_encoder_stack_kernel(%arg0: i32, %arg1: i32, %arg2: memref<1x16x128xf32, #tpu.memory_space<vmem>>, %arg3: memref<1x1x128xf32, #tpu.memory_space<vmem>>, %arg4: memref<1x1x128xf32, #tpu.memory_space<vmem>>, %arg5: memref<1x128x384xbf16, #tpu.memory_space<vmem>>, %arg6: memref<1x1x384xf32, #tpu.memory_space<vmem>>, %arg7: memref<1x128x128xbf16, #tpu.memory_space<vmem>>, %arg8: memref<1x1x128xf32, #tpu.memory_space<vmem>>, %arg9: memref<1x1x128xf32, #tpu.memory_space<vmem>>, %arg10: memref<1x1x128xf32, #tpu.memory_space<vmem>>, %arg11: memref<1x128x256xbf16, #tpu.memory_space<vmem>>, %arg12: memref<1x1x256xf32, #tpu.memory_space<vmem>>, %arg13: memref<1x256x128xbf16, #tpu.memory_space<vmem>>, %arg14: memref<1x1x128xf32, #tpu.memory_space<vmem>>, %arg15: memref<1x128xf32, #tpu.memory_space<vmem>>, %arg16: memref<1x128xf32, #tpu.memory_space<vmem>>, %arg17: memref<1x16x128xf32, #tpu.memory_space<vmem>>, %arg18: memref<16x128xf32, #tpu.memory_space<vmem>>, %arg19: memref<16x128xf32, #tpu.memory_space<vmem>>) attributes {dimension_semantics = [#tpu.dimension_semantics<parallel>, #tpu.dimension_semantics<arbitrary>], iteration_bounds = array<i64: 2, 2>, scalar_prefetch = 0 : i64, scratch_operands = 2 : i64, tpu.core_type = #tpu.core_type<tc>, window_params = [{transform_indices = @transform_0, window_bounds = array<i64: 1, 16, 128>}, {transform_indices = @transform_1, window_bounds = array<i64: 1, 1, 128>}, {transform_indices = @transform_2, window_bounds = array<i64: 1, 1, 128>}, {transform_indices = @transform_3, window_bounds = array<i64: 1, 128, 384>}, {transform_indices = @transform_4, window_bounds = array<i64: 1, 1, 384>}, {transform_indices = @transform_5, window_bounds = array<i64: 1, 128, 128>}, {transform_indices = @transform_6, window_bounds = array<i64: 1, 1, 128>}, {transform_indices = @transform_7, window_bounds = array<i64: 1, 1, 128>}, {transform_indices = @transform_8, window_bounds = array<i64: 1, 1, 128>}, {transform_indices = @transform_9, window_bounds = array<i64: 1, 128, 256>}, {transform_indices = @transform_10, window_bounds = array<i64: 1, 1, 256>}, {transform_indices = @transform_11, window_bounds = array<i64: 1, 256, 128>}, {transform_indices = @transform_12, window_bounds = array<i64: 1, 1, 128>}, {pipeline_mode = #tpu.pipeline_mode<synchronous>, transform_indices = @transform_13, window_bounds = array<i64: 1, 128>}, {pipeline_mode = #tpu.pipeline_mode<synchronous>, transform_indices = @transform_14, window_bounds = array<i64: 1, 128>}, {transform_indices = @transform_15, window_bounds = array<i64: 1, 16, 128>}]} {
    %c0_i32 = arith.constant 0 : i32
    %0 = arith.cmpi eq, %arg1, %c0_i32 : i32
    %1 = arith.extui %0 : i1 to i32
    %c0_i32_0 = arith.constant 0 : i32
    %2 = arith.cmpi ne, %1, %c0_i32_0 : i32
    scf.if %2 {
      %c0_85 = arith.constant 0 : index
      %c0_86 = arith.constant 0 : index
      %c0_87 = arith.constant 0 : index
      %196 = vector.load %arg2[%c0_85, %c0_86, %c0_87] : memref<1x16x128xf32, #tpu.memory_space<vmem>>, vector<1x16x128xf32>
      %197 = vector.shape_cast %196 : vector<1x16x128xf32> to vector<16x128xf32>
      %c0_88 = arith.constant 0 : index
      %c0_89 = arith.constant 0 : index
      %198 = vector.load %arg18[%c0_88, %c0_89] : memref<16x128xf32, #tpu.memory_space<vmem>>, vector<16x128xf32>
      tpu.vector_store %arg18[%c0_88, %c0_89], %197 {strides = array<i32>} : memref<16x128xf32, #tpu.memory_space<vmem>>, vector<16x128xf32>,
    } else {
    }
    %c0 = arith.constant 0 : index
    %c0_1 = arith.constant 0 : index
    %3 = vector.load %arg18[%c0, %c0_1] : memref<16x128xf32, #tpu.memory_space<vmem>>, vector<16x128xf32>
    %c0_2 = arith.constant 0 : index
    %c0_3 = arith.constant 0 : index
    %c0_4 = arith.constant 0 : index
    %4 = vector.load %arg3[%c0_2, %c0_3, %c0_4] : memref<1x1x128xf32, #tpu.memory_space<vmem>>, vector<1x1x128xf32>
    %5 = vector.shape_cast %4 : vector<1x1x128xf32> to vector<1x128xf32>
    %c0_5 = arith.constant 0 : index
    %c0_6 = arith.constant 0 : index
    %c0_7 = arith.constant 0 : index
    %6 = vector.load %arg4[%c0_5, %c0_6, %c0_7] : memref<1x1x128xf32, #tpu.memory_space<vmem>>, vector<1x1x128xf32>
    %7 = vector.shape_cast %6 : vector<1x1x128xf32> to vector<1x128xf32>
    %cst = arith.constant dense<0.000000e+00> : vector<16xf32>
    %8 = vector.multi_reduction <add>, %3, %cst [1] : vector<16x128xf32> to vector<16xf32>
    %9 = vector.shape_cast %8 : vector<16xf32> to vector<16x1xf32>
    %cst_8 = arith.constant 1.280000e+02 : f32
    %10 = vector.broadcast %cst_8 : f32 to vector<16x1xf32>
    %11 = arith.divf %9, %10 : vector<16x1xf32>
    %12 = vector.broadcast %11 : vector<16x1xf32> to vector<16x128xf32>
    %13 = arith.subf %3, %12 : vector<16x128xf32>
    %14 = arith.mulf %13, %13 : vector<16x128xf32>
    %cst_9 = arith.constant dense<0.000000e+00> : vector<16xf32>
    %15 = vector.multi_reduction <add>, %14, %cst_9 [1] : vector<16x128xf32> to vector<16xf32>
    %16 = vector.shape_cast %15 : vector<16xf32> to vector<16x1xf32>
    %cst_10 = arith.constant 1.280000e+02 : f32
    %17 = vector.broadcast %cst_10 : f32 to vector<16x1xf32>
    %18 = arith.divf %16, %17 : vector<16x1xf32>
    %19 = vector.broadcast %11 : vector<16x1xf32> to vector<16x128xf32>
    %20 = arith.subf %3, %19 : vector<16x128xf32>
    %cst_11 = arith.constant 9.99999974E-6 : f32
    %21 = vector.broadcast %cst_11 : f32 to vector<16x1xf32>
    %22 = arith.addf %18, %21 : vector<16x1xf32>
    %23 = math.rsqrt %22 : vector<16x1xf32>
    %24 = vector.broadcast %23 : vector<16x1xf32> to vector<16x128xf32>
    %25 = arith.mulf %20, %24 : vector<16x128xf32>
    %26 = vector.broadcast %5 : vector<1x128xf32> to vector<16x128xf32>
    %27 = arith.mulf %25, %26 : vector<16x128xf32>
    %28 = vector.broadcast %7 : vector<1x128xf32> to vector<16x128xf32>
    %29 = arith.addf %27, %28 : vector<16x128xf32>
    %30 = arith.truncf %29 : vector<16x128xf32> to vector<16x128xbf16>
    %c0_12 = arith.constant 0 : index
    %c0_13 = arith.constant 0 : index
    %c0_14 = arith.constant 0 : index
    %31 = vector.load %arg5[%c0_12, %c0_13, %c0_14] : memref<1x128x384xbf16, #tpu.memory_space<vmem>>, vector<1x128x384xbf16>
    %32 = vector.shape_cast %31 : vector<1x128x384xbf16> to vector<128x384xbf16>
    %cst_15 = arith.constant dense<0.000000e+00> : vector<16x384xf32>
    %33 = tpu.matmul %30, %32, %cst_15 {dimension_numbers = #tpu.dot_dimension_numbers<[1], [0], [0], [1], [0, 0, 1, 1], [], []>} : vector<16x128xbf16>, vector<128x384xbf16>, vector<16x384xf32> -> vector<16x384xf32>
    %c0_16 = arith.constant 0 : index
    %c0_17 = arith.constant 0 : index
    %c0_18 = arith.constant 0 : index
    %34 = vector.load %arg6[%c0_16, %c0_17, %c0_18] : memref<1x1x384xf32, #tpu.memory_space<vmem>>, vector<1x1x384xf32>
    %35 = vector.shape_cast %34 : vector<1x1x384xf32> to vector<1x384xf32>
    %36 = vector.broadcast %35 : vector<1x384xf32> to vector<16x384xf32>
    %37 = arith.addf %33, %36 : vector<16x384xf32>
    %38 = vector.extract_strided_slice %37 {offsets = [0, 0], sizes = [16, 32], strides = [1, 1]} : vector<16x384xf32> to vector<16x32xf32>
    %cst_19 = arith.constant 0.176776692 : f32
    %39 = vector.broadcast %cst_19 : f32 to vector<16x32xf32>
    %40 = arith.mulf %38, %39 : vector<16x32xf32>
    %41 = arith.truncf %40 : vector<16x32xf32> to vector<16x32xbf16>
    %42 = vector.extract_strided_slice %37 {offsets = [0, 128], sizes = [16, 32], strides = [1, 1]} : vector<16x384xf32> to vector<16x32xf32>
    %43 = arith.truncf %42 : vector<16x32xf32> to vector<16x32xbf16>
    %44 = vector.extract_strided_slice %37 {offsets = [0, 256], sizes = [16, 32], strides = [1, 1]} : vector<16x384xf32> to vector<16x32xf32>
    %45 = arith.truncf %44 : vector<16x32xf32> to vector<16x32xbf16>
    %cst_20 = arith.constant dense<0.000000e+00> : vector<16x16xf32>
    %46 = tpu.matmul %41, %43, %cst_20 {dimension_numbers = #tpu.dot_dimension_numbers<[1], [1], [0], [0], [0, 0, 1, 0], [], []>} : vector<16x32xbf16>, vector<16x32xbf16>, vector<16x16xf32> -> vector<16x16xf32>
    %cst_21 = arith.constant dense<0xFF800000> : vector<16xf32>
    %47 = vector.multi_reduction <maximumf>, %46, %cst_21 [1] : vector<16x16xf32> to vector<16xf32>
    %48 = vector.shape_cast %47 : vector<16xf32> to vector<16x1xf32>
    %49 = vector.broadcast %48 : vector<16x1xf32> to vector<16x16xf32>
    %50 = arith.subf %46, %49 : vector<16x16xf32>
    %51 = math.exp %50 : vector<16x16xf32>
    %cst_22 = arith.constant dense<0.000000e+00> : vector<16xf32>
    %52 = vector.multi_reduction <add>, %51, %cst_22 [1] : vector<16x16xf32> to vector<16xf32>
    %53 = vector.shape_cast %52 : vector<16xf32> to vector<16x1xf32>
    %54 = tpu.reciprocal %53 {approx = true} : vector<16x1xf32> -> vector<16x1xf32>
    %55 = vector.broadcast %54 : vector<16x1xf32> to vector<16x16xf32>
    %56 = arith.mulf %51, %55 : vector<16x16xf32>
    %57 = arith.truncf %56 : vector<16x16xf32> to vector<16x16xbf16>
    %cst_23 = arith.constant dense<0.000000e+00> : vector<16x32xf32>
    %58 = tpu.matmul %57, %45, %cst_23 {dimension_numbers = #tpu.dot_dimension_numbers<[1], [0], [0], [1], [0, 0, 1, 1], [], []>} : vector<16x16xbf16>, vector<16x32xbf16>, vector<16x32xf32> -> vector<16x32xf32>
    %c0_24 = arith.constant 0 : index
    %c0_25 = arith.constant 0 : index
    %59 = vector.load %arg19[%c0_24, %c0_25] : memref<16x128xf32, #tpu.memory_space<vmem>>, vector<16x32xf32>
    tpu.vector_store %arg19[%c0_24, %c0_25], %58 {strides = array<i32>} : memref<16x128xf32, #tpu.memory_space<vmem>>, vector<16x32xf32>,
    %60 = vector.extract_strided_slice %37 {offsets = [0, 32], sizes = [16, 32], strides = [1, 1]} : vector<16x384xf32> to vector<16x32xf32>
    %cst_26 = arith.constant 0.176776692 : f32
    %61 = vector.broadcast %cst_26 : f32 to vector<16x32xf32>
    %62 = arith.mulf %60, %61 : vector<16x32xf32>
    %63 = arith.truncf %62 : vector<16x32xf32> to vector<16x32xbf16>
    %64 = vector.extract_strided_slice %37 {offsets = [0, 160], sizes = [16, 32], strides = [1, 1]} : vector<16x384xf32> to vector<16x32xf32>
    %65 = arith.truncf %64 : vector<16x32xf32> to vector<16x32xbf16>
    %66 = vector.extract_strided_slice %37 {offsets = [0, 288], sizes = [16, 32], strides = [1, 1]} : vector<16x384xf32> to vector<16x32xf32>
    %67 = arith.truncf %66 : vector<16x32xf32> to vector<16x32xbf16>
    %cst_27 = arith.constant dense<0.000000e+00> : vector<16x16xf32>
    %68 = tpu.matmul %63, %65, %cst_27 {dimension_numbers = #tpu.dot_dimension_numbers<[1], [1], [0], [0], [0, 0, 1, 0], [], []>} : vector<16x32xbf16>, vector<16x32xbf16>, vector<16x16xf32> -> vector<16x16xf32>
    %cst_28 = arith.constant dense<0xFF800000> : vector<16xf32>
    %69 = vector.multi_reduction <maximumf>, %68, %cst_28 [1] : vector<16x16xf32> to vector<16xf32>
    %70 = vector.shape_cast %69 : vector<16xf32> to vector<16x1xf32>
    %71 = vector.broadcast %70 : vector<16x1xf32> to vector<16x16xf32>
    %72 = arith.subf %68, %71 : vector<16x16xf32>
    %73 = math.exp %72 : vector<16x16xf32>
    %cst_29 = arith.constant dense<0.000000e+00> : vector<16xf32>
    %74 = vector.multi_reduction <add>, %73, %cst_29 [1] : vector<16x16xf32> to vector<16xf32>
    %75 = vector.shape_cast %74 : vector<16xf32> to vector<16x1xf32>
    %76 = tpu.reciprocal %75 {approx = true} : vector<16x1xf32> -> vector<16x1xf32>
    %77 = vector.broadcast %76 : vector<16x1xf32> to vector<16x16xf32>
    %78 = arith.mulf %73, %77 : vector<16x16xf32>
    %79 = arith.truncf %78 : vector<16x16xf32> to vector<16x16xbf16>
    %cst_30 = arith.constant dense<0.000000e+00> : vector<16x32xf32>
    %80 = tpu.matmul %79, %67, %cst_30 {dimension_numbers = #tpu.dot_dimension_numbers<[1], [0], [0], [1], [0, 0, 1, 1], [], []>} : vector<16x16xbf16>, vector<16x32xbf16>, vector<16x32xf32> -> vector<16x32xf32>
    %c0_31 = arith.constant 0 : index
    %c32 = arith.constant 32 : index
    %81 = vector.load %arg19[%c0_31, %c32] : memref<16x128xf32, #tpu.memory_space<vmem>>, vector<16x32xf32>
    tpu.vector_store %arg19[%c0_31, %c32], %80 {strides = array<i32>} : memref<16x128xf32, #tpu.memory_space<vmem>>, vector<16x32xf32>,
    %82 = vector.extract_strided_slice %37 {offsets = [0, 64], sizes = [16, 32], strides = [1, 1]} : vector<16x384xf32> to vector<16x32xf32>
    %cst_32 = arith.constant 0.176776692 : f32
    %83 = vector.broadcast %cst_32 : f32 to vector<16x32xf32>
    %84 = arith.mulf %82, %83 : vector<16x32xf32>
    %85 = arith.truncf %84 : vector<16x32xf32> to vector<16x32xbf16>
    %86 = vector.extract_strided_slice %37 {offsets = [0, 192], sizes = [16, 32], strides = [1, 1]} : vector<16x384xf32> to vector<16x32xf32>
    %87 = arith.truncf %86 : vector<16x32xf32> to vector<16x32xbf16>
    %88 = vector.extract_strided_slice %37 {offsets = [0, 320], sizes = [16, 32], strides = [1, 1]} : vector<16x384xf32> to vector<16x32xf32>
    %89 = arith.truncf %88 : vector<16x32xf32> to vector<16x32xbf16>
    %cst_33 = arith.constant dense<0.000000e+00> : vector<16x16xf32>
    %90 = tpu.matmul %85, %87, %cst_33 {dimension_numbers = #tpu.dot_dimension_numbers<[1], [1], [0], [0], [0, 0, 1, 0], [], []>} : vector<16x32xbf16>, vector<16x32xbf16>, vector<16x16xf32> -> vector<16x16xf32>
    %cst_34 = arith.constant dense<0xFF800000> : vector<16xf32>
    %91 = vector.multi_reduction <maximumf>, %90, %cst_34 [1] : vector<16x16xf32> to vector<16xf32>
    %92 = vector.shape_cast %91 : vector<16xf32> to vector<16x1xf32>
    %93 = vector.broadcast %92 : vector<16x1xf32> to vector<16x16xf32>
    %94 = arith.subf %90, %93 : vector<16x16xf32>
    %95 = math.exp %94 : vector<16x16xf32>
    %cst_35 = arith.constant dense<0.000000e+00> : vector<16xf32>
    %96 = vector.multi_reduction <add>, %95, %cst_35 [1] : vector<16x16xf32> to vector<16xf32>
    %97 = vector.shape_cast %96 : vector<16xf32> to vector<16x1xf32>
    %98 = tpu.reciprocal %97 {approx = true} : vector<16x1xf32> -> vector<16x1xf32>
    %99 = vector.broadcast %98 : vector<16x1xf32> to vector<16x16xf32>
    %100 = arith.mulf %95, %99 : vector<16x16xf32>
    %101 = arith.truncf %100 : vector<16x16xf32> to vector<16x16xbf16>
    %cst_36 = arith.constant dense<0.000000e+00> : vector<16x32xf32>
    %102 = tpu.matmul %101, %89, %cst_36 {dimension_numbers = #tpu.dot_dimension_numbers<[1], [0], [0], [1], [0, 0, 1, 1], [], []>} : vector<16x16xbf16>, vector<16x32xbf16>, vector<16x32xf32> -> vector<16x32xf32>
    %c0_37 = arith.constant 0 : index
    %c64 = arith.constant 64 : index
    %103 = vector.load %arg19[%c0_37, %c64] : memref<16x128xf32, #tpu.memory_space<vmem>>, vector<16x32xf32>
    tpu.vector_store %arg19[%c0_37, %c64], %102 {strides = array<i32>} : memref<16x128xf32, #tpu.memory_space<vmem>>, vector<16x32xf32>,
    %104 = vector.extract_strided_slice %37 {offsets = [0, 96], sizes = [16, 32], strides = [1, 1]} : vector<16x384xf32> to vector<16x32xf32>
    %cst_38 = arith.constant 0.176776692 : f32
    %105 = vector.broadcast %cst_38 : f32 to vector<16x32xf32>
    %106 = arith.mulf %104, %105 : vector<16x32xf32>
    %107 = arith.truncf %106 : vector<16x32xf32> to vector<16x32xbf16>
    %108 = vector.extract_strided_slice %37 {offsets = [0, 224], sizes = [16, 32], strides = [1, 1]} : vector<16x384xf32> to vector<16x32xf32>
    %109 = arith.truncf %108 : vector<16x32xf32> to vector<16x32xbf16>
    %110 = vector.extract_strided_slice %37 {offsets = [0, 352], sizes = [16, 32], strides = [1, 1]} : vector<16x384xf32> to vector<16x32xf32>
    %111 = arith.truncf %110 : vector<16x32xf32> to vector<16x32xbf16>
    %cst_39 = arith.constant dense<0.000000e+00> : vector<16x16xf32>
    %112 = tpu.matmul %107, %109, %cst_39 {dimension_numbers = #tpu.dot_dimension_numbers<[1], [1], [0], [0], [0, 0, 1, 0], [], []>} : vector<16x32xbf16>, vector<16x32xbf16>, vector<16x16xf32> -> vector<16x16xf32>
    %cst_40 = arith.constant dense<0xFF800000> : vector<16xf32>
    %113 = vector.multi_reduction <maximumf>, %112, %cst_40 [1] : vector<16x16xf32> to vector<16xf32>
    %114 = vector.shape_cast %113 : vector<16xf32> to vector<16x1xf32>
    %115 = vector.broadcast %114 : vector<16x1xf32> to vector<16x16xf32>
    %116 = arith.subf %112, %115 : vector<16x16xf32>
    %117 = math.exp %116 : vector<16x16xf32>
    %cst_41 = arith.constant dense<0.000000e+00> : vector<16xf32>
    %118 = vector.multi_reduction <add>, %117, %cst_41 [1] : vector<16x16xf32> to vector<16xf32>
    %119 = vector.shape_cast %118 : vector<16xf32> to vector<16x1xf32>
    %120 = tpu.reciprocal %119 {approx = true} : vector<16x1xf32> -> vector<16x1xf32>
    %121 = vector.broadcast %120 : vector<16x1xf32> to vector<16x16xf32>
    %122 = arith.mulf %117, %121 : vector<16x16xf32>
    %123 = arith.truncf %122 : vector<16x16xf32> to vector<16x16xbf16>
    %cst_42 = arith.constant dense<0.000000e+00> : vector<16x32xf32>
    %124 = tpu.matmul %123, %111, %cst_42 {dimension_numbers = #tpu.dot_dimension_numbers<[1], [0], [0], [1], [0, 0, 1, 1], [], []>} : vector<16x16xbf16>, vector<16x32xbf16>, vector<16x32xf32> -> vector<16x32xf32>
    %c0_43 = arith.constant 0 : index
    %c96 = arith.constant 96 : index
    %125 = vector.load %arg19[%c0_43, %c96] : memref<16x128xf32, #tpu.memory_space<vmem>>, vector<16x32xf32>
    tpu.vector_store %arg19[%c0_43, %c96], %124 {strides = array<i32>} : memref<16x128xf32, #tpu.memory_space<vmem>>, vector<16x32xf32>,
    %c0_44 = arith.constant 0 : index
    %c0_45 = arith.constant 0 : index
    %126 = vector.load %arg19[%c0_44, %c0_45] : memref<16x128xf32, #tpu.memory_space<vmem>>, vector<16x128xf32>
    %127 = arith.truncf %126 : vector<16x128xf32> to vector<16x128xbf16>
    %c0_46 = arith.constant 0 : index
    %c0_47 = arith.constant 0 : index
    %c0_48 = arith.constant 0 : index
    %128 = vector.load %arg7[%c0_46, %c0_47, %c0_48] : memref<1x128x128xbf16, #tpu.memory_space<vmem>>, vector<1x128x128xbf16>
    %129 = vector.shape_cast %128 : vector<1x128x128xbf16> to vector<128x128xbf16>
    %cst_49 = arith.constant dense<0.000000e+00> : vector<16x128xf32>
    %130 = tpu.matmul %127, %129, %cst_49 {dimension_numbers = #tpu.dot_dimension_numbers<[1], [0], [0], [1], [0, 0, 1, 1], [], []>} : vector<16x128xbf16>, vector<128x128xbf16>, vector<16x128xf32> -> vector<16x128xf32>
    %131 = arith.addf %3, %130 : vector<16x128xf32>
    %c0_50 = arith.constant 0 : index
    %c0_51 = arith.constant 0 : index
    %c0_52 = arith.constant 0 : index
    %132 = vector.load %arg8[%c0_50, %c0_51, %c0_52] : memref<1x1x128xf32, #tpu.memory_space<vmem>>, vector<1x1x128xf32>
    %133 = vector.shape_cast %132 : vector<1x1x128xf32> to vector<1x128xf32>
    %134 = vector.broadcast %133 : vector<1x128xf32> to vector<16x128xf32>
    %135 = arith.addf %131, %134 : vector<16x128xf32>
    %c0_53 = arith.constant 0 : index
    %c0_54 = arith.constant 0 : index
    %c0_55 = arith.constant 0 : index
    %136 = vector.load %arg9[%c0_53, %c0_54, %c0_55] : memref<1x1x128xf32, #tpu.memory_space<vmem>>, vector<1x1x128xf32>
    %137 = vector.shape_cast %136 : vector<1x1x128xf32> to vector<1x128xf32>
    %c0_56 = arith.constant 0 : index
    %c0_57 = arith.constant 0 : index
    %c0_58 = arith.constant 0 : index
    %138 = vector.load %arg10[%c0_56, %c0_57, %c0_58] : memref<1x1x128xf32, #tpu.memory_space<vmem>>, vector<1x1x128xf32>
    %139 = vector.shape_cast %138 : vector<1x1x128xf32> to vector<1x128xf32>
    %cst_59 = arith.constant dense<0.000000e+00> : vector<16xf32>
    %140 = vector.multi_reduction <add>, %135, %cst_59 [1] : vector<16x128xf32> to vector<16xf32>
    %141 = vector.shape_cast %140 : vector<16xf32> to vector<16x1xf32>
    %cst_60 = arith.constant 1.280000e+02 : f32
    %142 = vector.broadcast %cst_60 : f32 to vector<16x1xf32>
    %143 = arith.divf %141, %142 : vector<16x1xf32>
    %144 = vector.broadcast %143 : vector<16x1xf32> to vector<16x128xf32>
    %145 = arith.subf %135, %144 : vector<16x128xf32>
    %146 = arith.mulf %145, %145 : vector<16x128xf32>
    %cst_61 = arith.constant dense<0.000000e+00> : vector<16xf32>
    %147 = vector.multi_reduction <add>, %146, %cst_61 [1] : vector<16x128xf32> to vector<16xf32>
    %148 = vector.shape_cast %147 : vector<16xf32> to vector<16x1xf32>
    %cst_62 = arith.constant 1.280000e+02 : f32
    %149 = vector.broadcast %cst_62 : f32 to vector<16x1xf32>
    %150 = arith.divf %148, %149 : vector<16x1xf32>
    %151 = vector.broadcast %143 : vector<16x1xf32> to vector<16x128xf32>
    %152 = arith.subf %135, %151 : vector<16x128xf32>
    %cst_63 = arith.constant 9.99999974E-6 : f32
    %153 = vector.broadcast %cst_63 : f32 to vector<16x1xf32>
    %154 = arith.addf %150, %153 : vector<16x1xf32>
    %155 = math.rsqrt %154 : vector<16x1xf32>
    %156 = vector.broadcast %155 : vector<16x1xf32> to vector<16x128xf32>
    %157 = arith.mulf %152, %156 : vector<16x128xf32>
    %158 = vector.broadcast %137 : vector<1x128xf32> to vector<16x128xf32>
    %159 = arith.mulf %157, %158 : vector<16x128xf32>
    %160 = vector.broadcast %139 : vector<1x128xf32> to vector<16x128xf32>
    %161 = arith.addf %159, %160 : vector<16x128xf32>
    %162 = arith.truncf %161 : vector<16x128xf32> to vector<16x128xbf16>
    %c0_64 = arith.constant 0 : index
    %c0_65 = arith.constant 0 : index
    %c0_66 = arith.constant 0 : index
    %163 = vector.load %arg11[%c0_64, %c0_65, %c0_66] : memref<1x128x256xbf16, #tpu.memory_space<vmem>>, vector<1x128x256xbf16>
    %164 = vector.shape_cast %163 : vector<1x128x256xbf16> to vector<128x256xbf16>
    %cst_67 = arith.constant dense<0.000000e+00> : vector<16x256xf32>
    %165 = tpu.matmul %162, %164, %cst_67 {dimension_numbers = #tpu.dot_dimension_numbers<[1], [0], [0], [1], [0, 0, 1, 1], [], []>} : vector<16x128xbf16>, vector<128x256xbf16>, vector<16x256xf32> -> vector<16x256xf32>
    %c0_68 = arith.constant 0 : index
    %c0_69 = arith.constant 0 : index
    %c0_70 = arith.constant 0 : index
    %166 = vector.load %arg12[%c0_68, %c0_69, %c0_70] : memref<1x1x256xf32, #tpu.memory_space<vmem>>, vector<1x1x256xf32>
    %167 = vector.shape_cast %166 : vector<1x1x256xf32> to vector<1x256xf32>
    %168 = vector.broadcast %167 : vector<1x256xf32> to vector<16x256xf32>
    %169 = arith.addf %165, %168 : vector<16x256xf32>
    %170 = arith.mulf %169, %169 : vector<16x256xf32>
    %171 = arith.mulf %169, %170 : vector<16x256xf32>
    %cst_71 = arith.constant 4.471500e-02 : f32
    %172 = vector.broadcast %cst_71 : f32 to vector<16x256xf32>
    %173 = arith.mulf %172, %171 : vector<16x256xf32>
    %174 = arith.addf %169, %173 : vector<16x256xf32>
    %cst_72 = arith.constant 0.797884583 : f32
    %175 = vector.broadcast %cst_72 : f32 to vector<16x256xf32>
    %176 = arith.mulf %175, %174 : vector<16x256xf32>
    %177 = math.tanh %176 : vector<16x256xf32>
    %cst_73 = arith.constant 1.000000e+00 : f32
    %178 = vector.broadcast %cst_73 : f32 to vector<16x256xf32>
    %179 = arith.addf %178, %177 : vector<16x256xf32>
    %cst_74 = arith.constant 5.000000e-01 : f32
    %180 = vector.broadcast %cst_74 : f32 to vector<16x256xf32>
    %181 = arith.mulf %180, %179 : vector<16x256xf32>
    %182 = arith.mulf %169, %181 : vector<16x256xf32>
    %183 = arith.truncf %182 : vector<16x256xf32> to vector<16x256xbf16>
    %c0_75 = arith.constant 0 : index
    %c0_76 = arith.constant 0 : index
    %c0_77 = arith.constant 0 : index
    %184 = vector.load %arg13[%c0_75, %c0_76, %c0_77] : memref<1x256x128xbf16, #tpu.memory_space<vmem>>, vector<1x256x128xbf16>
    %185 = vector.shape_cast %184 : vector<1x256x128xbf16> to vector<256x128xbf16>
    %cst_78 = arith.constant dense<0.000000e+00> : vector<16x128xf32>
    %186 = tpu.matmul %183, %185, %cst_78 {dimension_numbers = #tpu.dot_dimension_numbers<[1], [0], [0], [1], [0, 0, 1, 1], [], []>} : vector<16x256xbf16>, vector<256x128xbf16>, vector<16x128xf32> -> vector<16x128xf32>
    %187 = arith.addf %135, %186 : vector<16x128xf32>
    %c0_79 = arith.constant 0 : index
    %c0_80 = arith.constant 0 : index
    %c0_81 = arith.constant 0 : index
    %188 = vector.load %arg14[%c0_79, %c0_80, %c0_81] : memref<1x1x128xf32, #tpu.memory_space<vmem>>, vector<1x1x128xf32>
    %189 = vector.shape_cast %188 : vector<1x1x128xf32> to vector<1x128xf32>
    %190 = vector.broadcast %189 : vector<1x128xf32> to vector<16x128xf32>
    %191 = arith.addf %187, %190 : vector<16x128xf32>
    %c0_82 = arith.constant 0 : index
    %c0_83 = arith.constant 0 : index
    %192 = vector.load %arg18[%c0_82, %c0_83] : memref<16x128xf32, #tpu.memory_space<vmem>>, vector<16x128xf32>
    tpu.vector_store %arg18[%c0_82, %c0_83], %191 {strides = array<i32>} : memref<16x128xf32, #tpu.memory_space<vmem>>, vector<16x128xf32>,
    %c1_i32 = arith.constant 1 : i32
    %193 = arith.cmpi eq, %arg1, %c1_i32 : i32
    %194 = arith.extui %193 : i1 to i32
    %c0_i32_84 = arith.constant 0 : i32
    %195 = arith.cmpi ne, %194, %c0_i32_84 : i32
    scf.if %195 {
      %c0_85 = arith.constant 0 : index
      %c0_86 = arith.constant 0 : index
      %196 = vector.load %arg15[%c0_85, %c0_86] : memref<1x128xf32, #tpu.memory_space<vmem>>, vector<1x128xf32>
      %c0_87 = arith.constant 0 : index
      %c0_88 = arith.constant 0 : index
      %197 = vector.load %arg16[%c0_87, %c0_88] : memref<1x128xf32, #tpu.memory_space<vmem>>, vector<1x128xf32>
      %cst_89 = arith.constant dense<0.000000e+00> : vector<16xf32>
      %198 = vector.multi_reduction <add>, %191, %cst_89 [1] : vector<16x128xf32> to vector<16xf32>
      %199 = vector.shape_cast %198 : vector<16xf32> to vector<16x1xf32>
      %cst_90 = arith.constant 1.280000e+02 : f32
      %200 = vector.broadcast %cst_90 : f32 to vector<16x1xf32>
      %201 = arith.divf %199, %200 : vector<16x1xf32>
      %202 = vector.broadcast %201 : vector<16x1xf32> to vector<16x128xf32>
      %203 = arith.subf %191, %202 : vector<16x128xf32>
      %204 = arith.mulf %203, %203 : vector<16x128xf32>
      %cst_91 = arith.constant dense<0.000000e+00> : vector<16xf32>
      %205 = vector.multi_reduction <add>, %204, %cst_91 [1] : vector<16x128xf32> to vector<16xf32>
      %206 = vector.shape_cast %205 : vector<16xf32> to vector<16x1xf32>
      %cst_92 = arith.constant 1.280000e+02 : f32
      %207 = vector.broadcast %cst_92 : f32 to vector<16x1xf32>
      %208 = arith.divf %206, %207 : vector<16x1xf32>
      %209 = vector.broadcast %201 : vector<16x1xf32> to vector<16x128xf32>
      %210 = arith.subf %191, %209 : vector<16x128xf32>
      %cst_93 = arith.constant 9.99999974E-6 : f32
      %211 = vector.broadcast %cst_93 : f32 to vector<16x1xf32>
      %212 = arith.addf %208, %211 : vector<16x1xf32>
      %213 = math.rsqrt %212 : vector<16x1xf32>
      %214 = vector.broadcast %213 : vector<16x1xf32> to vector<16x128xf32>
      %215 = arith.mulf %210, %214 : vector<16x128xf32>
      %216 = vector.broadcast %196 : vector<1x128xf32> to vector<16x128xf32>
      %217 = arith.mulf %215, %216 : vector<16x128xf32>
      %218 = vector.broadcast %197 : vector<1x128xf32> to vector<16x128xf32>
      %219 = arith.addf %217, %218 : vector<16x128xf32>
      %c0_94 = arith.constant 0 : index
      %c0_95 = arith.constant 0 : index
      %c0_96 = arith.constant 0 : index
      %220 = vector.load %arg17[%c0_94, %c0_95, %c0_96] : memref<1x16x128xf32, #tpu.memory_space<vmem>>, vector<1x16x128xf32>
      %221 = vector.shape_cast %220 : vector<1x16x128xf32> to vector<16x128xf32>
      %222 = vector.shape_cast %219 : vector<16x128xf32> to vector<1x16x128xf32>
      tpu.vector_store %arg17[%c0_94, %c0_95, %c0_96], %222 {strides = array<i32>} : memref<1x16x128xf32, #tpu.memory_space<vmem>>, vector<1x16x128xf32>,
    } else {
    }
    return
  }
  func.func @transform_0(%arg0: i32, %arg1: i32) -> (i32, i32, i32) {
    %c0_i32 = arith.constant 0 : i32
    %c0_i32_0 = arith.constant 0 : i32
    %c0_i32_1 = arith.constant 0 : i32
    return %arg0, %c0_i32, %c0_i32_0 : i32, i32, i32
  }
  func.func @transform_1(%arg0: i32, %arg1: i32) -> (i32, i32, i32) {
    %c0_i32 = arith.constant 0 : i32
    %c0_i32_0 = arith.constant 0 : i32
    %c0_i32_1 = arith.constant 0 : i32
    return %arg1, %c0_i32, %c0_i32_0 : i32, i32, i32
  }
  func.func @transform_2(%arg0: i32, %arg1: i32) -> (i32, i32, i32) {
    %c0_i32 = arith.constant 0 : i32
    %c0_i32_0 = arith.constant 0 : i32
    %c0_i32_1 = arith.constant 0 : i32
    return %arg1, %c0_i32, %c0_i32_0 : i32, i32, i32
  }
  func.func @transform_3(%arg0: i32, %arg1: i32) -> (i32, i32, i32) {
    %c0_i32 = arith.constant 0 : i32
    %c0_i32_0 = arith.constant 0 : i32
    %c0_i32_1 = arith.constant 0 : i32
    return %arg1, %c0_i32, %c0_i32_0 : i32, i32, i32
  }
  func.func @transform_4(%arg0: i32, %arg1: i32) -> (i32, i32, i32) {
    %c0_i32 = arith.constant 0 : i32
    %c0_i32_0 = arith.constant 0 : i32
    %c0_i32_1 = arith.constant 0 : i32
    return %arg1, %c0_i32, %c0_i32_0 : i32, i32, i32
  }
  func.func @transform_5(%arg0: i32, %arg1: i32) -> (i32, i32, i32) {
    %c0_i32 = arith.constant 0 : i32
    %c0_i32_0 = arith.constant 0 : i32
    %c0_i32_1 = arith.constant 0 : i32
    return %arg1, %c0_i32, %c0_i32_0 : i32, i32, i32
  }
  func.func @transform_6(%arg0: i32, %arg1: i32) -> (i32, i32, i32) {
    %c0_i32 = arith.constant 0 : i32
    %c0_i32_0 = arith.constant 0 : i32
    %c0_i32_1 = arith.constant 0 : i32
    return %arg1, %c0_i32, %c0_i32_0 : i32, i32, i32
  }
  func.func @transform_7(%arg0: i32, %arg1: i32) -> (i32, i32, i32) {
    %c0_i32 = arith.constant 0 : i32
    %c0_i32_0 = arith.constant 0 : i32
    %c0_i32_1 = arith.constant 0 : i32
    return %arg1, %c0_i32, %c0_i32_0 : i32, i32, i32
  }
  func.func @transform_8(%arg0: i32, %arg1: i32) -> (i32, i32, i32) {
    %c0_i32 = arith.constant 0 : i32
    %c0_i32_0 = arith.constant 0 : i32
    %c0_i32_1 = arith.constant 0 : i32
    return %arg1, %c0_i32, %c0_i32_0 : i32, i32, i32
  }
  func.func @transform_9(%arg0: i32, %arg1: i32) -> (i32, i32, i32) {
    %c0_i32 = arith.constant 0 : i32
    %c0_i32_0 = arith.constant 0 : i32
    %c0_i32_1 = arith.constant 0 : i32
    return %arg1, %c0_i32, %c0_i32_0 : i32, i32, i32
  }
  func.func @transform_10(%arg0: i32, %arg1: i32) -> (i32, i32, i32) {
    %c0_i32 = arith.constant 0 : i32
    %c0_i32_0 = arith.constant 0 : i32
    %c0_i32_1 = arith.constant 0 : i32
    return %arg1, %c0_i32, %c0_i32_0 : i32, i32, i32
  }
  func.func @transform_11(%arg0: i32, %arg1: i32) -> (i32, i32, i32) {
    %c0_i32 = arith.constant 0 : i32
    %c0_i32_0 = arith.constant 0 : i32
    %c0_i32_1 = arith.constant 0 : i32
    return %arg1, %c0_i32, %c0_i32_0 : i32, i32, i32
  }
  func.func @transform_12(%arg0: i32, %arg1: i32) -> (i32, i32, i32) {
    %c0_i32 = arith.constant 0 : i32
    %c0_i32_0 = arith.constant 0 : i32
    %c0_i32_1 = arith.constant 0 : i32
    return %arg1, %c0_i32, %c0_i32_0 : i32, i32, i32
  }
  func.func @transform_13(%arg0: i32, %arg1: i32) -> (i32, i32) {
    %c0_i32 = arith.constant 0 : i32
    %c0_i32_0 = arith.constant 0 : i32
    %c0_i32_1 = arith.constant 0 : i32
    return %c0_i32, %c0_i32_0 : i32, i32
  }
  func.func @transform_14(%arg0: i32, %arg1: i32) -> (i32, i32) {
    %c0_i32 = arith.constant 0 : i32
    %c0_i32_0 = arith.constant 0 : i32
    %c0_i32_1 = arith.constant 0 : i32
    return %c0_i32, %c0_i32_0 : i32, i32
  }
  func.func @transform_15(%arg0: i32, %arg1: i32) -> (i32, i32, i32) {
    %c0_i32 = arith.constant 0 : i32
    %c0_i32_0 = arith.constant 0 : i32
    %c0_i32_1 = arith.constant 0 : i32
    return %arg0, %c0_i32, %c0_i32_0 : i32, i32, i32
  }
}

</mosaic_0001>

<llo_original>
// kernel: asr_forward.2
$region0: #{asr_forward.2}
  #allocation0 [shape = 'u32[]', space=smem, size = 0x4, offset = 0x4, fixed_abs, tag = 'smem constant byte address 0x4 - core index']
  #allocation1 [shape = 'u32[144,128]{1,0:T(1,128)}', space=vmem, size = 0x12000, scoped, tag = 'internal scratch']
  #allocation2 [shape = 'f32[65,32]{1,0:T(8,128)}', space=vmem, size = 0x9000, scoped, tag = 'scratch operand']
  #allocation3 [shape = 'f32[32,32]{1,0:T(8,128)}', space=vmem, size = 0x4000, scoped, tag = 'scratch operand']
  %s0 = inlined_call_operand.vmem [shape: f32[2,66,5], index: 0, kind: input, shape index: {}]
  %s1 = inlined_call_operand.hbm [shape: f32[10,32], index: 1, kind: input, shape index: {}]
  %s2 = inlined_call_operand.hbm [shape: f32[1,32], index: 2, kind: input, shape index: {}]
  %s3 = inlined_call_operand.hbm [shape: f32[1,32], index: 3, kind: input, shape index: {}]
  %s4 = inlined_call_operand.vmem [shape: f32[96,32], index: 4, kind: input, shape index: {}]
  %s5 = inlined_call_operand.hbm [shape: f32[1,32], index: 5, kind: input, shape index: {}]
  %s6 = inlined_call_operand.hbm [shape: f32[1,32], index: 6, kind: input, shape index: {}]
  %s7 = inlined_call_operand.vmem [shape: f32[64,32], index: 7, kind: input, shape index: {}]
  %s8 = inlined_call_operand.hbm [shape: f32[1,32], index: 8, kind: input, shape index: {}]
  %s9 = inlined_call_operand.hbm [shape: f32[1,32], index: 9, kind: input, shape index: {}]
  %s10 = inlined_call_operand.hbm [shape: f32[1,32], index: 10, kind: input, shape index: {}]
  %s11 = inlined_call_operand.hbm [shape: f32[1,32], index: 11, kind: input, shape index: {}]
  %s12 = inlined_call_operand.hbm [shape: bf16[32,128], index: 12, kind: input, shape index: {}]
  %s13 = inlined_call_operand.hbm [shape: f32[1,128], index: 13, kind: input, shape index: {}]
  %s14 = inlined_call_operand.hbm [shape: bf16[3,128,128], index: 14, kind: input, shape index: {}]
  %s15 = inlined_call_operand.hbm [shape: f32[1,128], index: 15, kind: input, shape index: {}]
  %s16 = inlined_call_operand.vmem [shape: f32[2,16,128], index: 16, kind: output, shape index: {}]
  %s17 = sld [smem:[#allocation0]]
  $region149: #{asr_forward.2} parent=0
    _
  %s19 = ssub.s32 1, %s17
  %s20 = scalar_select 0, %s19, %s17
  $region1: #{asr_forward.2} parent=0
    #allocation4 [shape = 'u8[8192]{0}', space=vmem, size = 0x2000, scoped, tag = 'input window, operand 1, single buffered']
    #allocation5 [shape = 's32[2]{0}', space=sflag, size = 0x8, scoped, tag = 'scoped memory for asr_forward.2']
    #allocation6 [shape = 'u8[512]{0}', space=vmem, size = 0x400, scoped, tag = 'input window, operand 2, single buffered']
    #allocation7 [shape = 's32[1]{0}', space=sflag, size = 0x4, scoped, tag = 'scoped memory for asr_forward.2']
    #allocation8 [shape = 'u8[512]{0}', space=vmem, size = 0x400, scoped, tag = 'input window, operand 3, single buffered']
    #allocation9 [shape = 'u8[512]{0}', space=vmem, size = 0x400, scoped, tag = 'input window, operand 5, single buffered']
    #allocation10 [shape = 's32[1]{0}', space=sflag, size = 0x4, scoped, tag = 'scoped memory for asr_forward.2']
    #allocation11 [shape = 'u8[512]{0}', space=vmem, size = 0x400, scoped, tag = 'input window, operand 6, single buffered']
    #allocation12 [shape = 'u8[512]{0}', space=vmem, size = 0x400, scoped, tag = 'input window, operand 8, single buffered']
    #allocation13 [shape = 's32[1]{0}', space=sflag, size = 0x4, scoped, tag = 'scoped memory for asr_forward.2']
    #allocation14 [shape = 'u8[512]{0}', space=vmem, size = 0x400, scoped, tag = 'input window, operand 9, single buffered']
    #allocation15 [shape = 'u8[512]{0}', space=vmem, size = 0x400, scoped, tag = 'input window, operand 10, single buffered']
    #allocation16 [shape = 's32[1]{0}', space=sflag, size = 0x4, scoped, tag = 'scoped memory for asr_forward.2']
    #allocation17 [shape = 'u8[512]{0}', space=vmem, size = 0x400, scoped, tag = 'input window, operand 11, single buffered']
    #allocation18 [shape = 'u8[8192]{0}', space=vmem, size = 0x2000, scoped, tag = 'input window, operand 12, single buffered']
    #allocation19 [shape = 's32[1]{0}', space=sflag, size = 0x4, scoped, tag = 'scoped memory for asr_forward.2']
    #allocation20 [shape = 'u8[512]{0}', space=vmem, size = 0x400, scoped, tag = 'input window, operand 13, single buffered']
    #allocation21 [shape = 'u8[98304]{0}', space=vmem, size = 0x18000, scoped, tag = 'input window, operand 14, single buffered']
    #allocation22 [shape = 's32[1]{0}', space=sflag, size = 0x4, scoped, tag = 'scoped memory for asr_forward.2']
    #allocation23 [shape = 'u8[512]{0}', space=vmem, size = 0x400, scoped, tag = 'input window, operand 15, single buffered']
    %21 = vsyncpa [#allocation5], 0
    %22 = vsyncpa [#allocation7], 0
    %23 = vsyncpa [#allocation10], 0
    %24 = vsyncpa [#allocation13], 0
    %25 = vsyncpa [#allocation16], 0
    %26 = vsyncpa [#allocation19], 0
    %27 = vsyncpa [#allocation22], 0
    loop: start=0, step=1, limit=4
    $region2: #{asr_forward.2} parent=1 // loop_pre_header
      _
    $region3: #{asr_forward.2} parent=1 // loop_header
      %s29 = sphi 0, %s33
      %p30 = scmp.ge.s32.totalorder %s29, 4
      %s39 = sphi 0, %s41
      %s42 = sphi 0, %s39
      %s43 = sphi 0, %s42
      %s59 = sphi 0, %s43
      %s63 = sphi 0, %s63
      %s65 = sphi 0, %s63
      %s66 = sphi 0, %s65
      %s80 = sphi 0, %s66
      %s84 = sphi 0, %s84
      %s86 = sphi 0, %s84
      %s87 = sphi 0, %s86
      %s101 = sphi 0, %s87
      %s105 = sphi 0, %s105
      %s107 = sphi 0, %s105
      %s108 = sphi 0, %s107
      %s122 = sphi 0, %s108
      %s126 = sphi 0, %s126
      %s128 = sphi 0, %s126
      %s129 = sphi 0, %s128
      %s143 = sphi 0, %s129
      %s147 = sphi 0, %s147
      %s149 = sphi 0, %s147
      %s150 = sphi 0, %s149
      %s164 = sphi 0, %s150
      %s168 = sphi 0, %s168
      %s170 = sphi 0, %s168
      %s171 = sphi 0, %s170
      %s185 = sphi 0, %s171
      %s189 = sphi 0, %s189
      %s191 = sphi 0, %s189
      %s192 = sphi 0, %s191
      %s206 = sphi 0, %s192
      %s210 = sphi 0, %s210
      %s212 = sphi 0, %s210
      %s213 = sphi 0, %s212
      %s227 = sphi 0, %s213
      %s231 = sphi 0, %s231
      %s233 = sphi 0, %s231
      %s234 = sphi 0, %s233
      %s248 = sphi 0, %s234
      %s252 = sphi 0, %s252
      %s254 = sphi 0, %s252
      %s255 = sphi 0, %s254
      %s269 = sphi 0, %s255
      %s273 = sphi 0, %s273
      %s275 = sphi 0, %s273
      %s276 = sphi 0, %s275
      %s290 = sphi 0, %s276
      %s294 = sphi 0, %s294
      %s296 = sphi 0, %s294
      %s297 = sphi 0, %s296
      %s311 = sphi 0, %s297
      %s315 = sphi 0, %s315
      %s317 = sphi 0, %s315
      %s318 = sphi 0, %s317
      %s332 = sphi 0, %s318
      %s336 = sphi 0, %s336
      %s338 = sphi 0, %s336
      %s339 = sphi 0, %s338
      %s353 = sphi 0, %s339
      %s357 = sphi 0, %s357
      %s359 = sphi 0, %s357
      %s360 = sphi 0, %s359
      %s374 = sphi 0, %s360
      %s380 = sphi 0, %s382
      %s383 = sphi 0, %s380
      %s384 = sphi 0, %s383
      %s400 = sphi 0, %s384
    $region4: #{asr_forward.2} parent=1 // loop_header_branch
      %32 = sbr.rel (%p30) target = $region8
    $region5: #{asr_forward.2} parent=1 // loop_body
      %s34 = ssub.s32 %s29, 1
      %s35 = ssub.s32 %s29, 2
      %s36 = sadd.s32 %s29, 1
      %s37 = ssub.s32 %s29, %s36
      %p38 = scmp.eq.s32.totalorder %s37, 0
      %s40 = sadd.s32 %s39, 1
      %s41 = scalar_select %p38, %s39, %s40
      %p44 = pneg %p38
      %p45 = scmp.eq.s32.totalorder %s29, 1
      %p46 = por %p44, %p45
      %p47 = scmp.ne.s32.totalorder %s39, %s42
      %p48 = scmp.eq.s32.totalorder %s29, 0
      %p49 = por %p47, %p48
      %p50 = scmp.ne.s32.totalorder %s39, %s42
      %p51 = scmp.eq.s32.totalorder %s34, 1
      %p52 = por %p50, %p51
      %p53 = scmp.ne.s32.totalorder %s42, %s43
      %p54 = scmp.eq.s32.totalorder %s34, 0
      %p55 = por %p53, %p54
      %p56 = scmp.ne.s32.totalorder %s42, %s43
      %p57 = scmp.eq.s32.totalorder %s35, 1
      %p58 = por %p56, %p57
      %p60 = scmp.ne.s32.totalorder %s43, %s59
      %p61 = scmp.eq.s32.totalorder %s35, 0
      %p62 = por %p60, %p61
      %s64 = sadd.s32 %s63, 1
      %p67 = scmp.eq.s32.totalorder %s29, 1
      %p68 = scmp.ne.s32.totalorder %s63, %s65
      %p69 = scmp.eq.s32.totalorder %s29, 0
      %p70 = por %p68, %p69
      %p71 = scmp.ne.s32.totalorder %s63, %s65
      %p72 = scmp.eq.s32.totalorder %s34, 1
      %p73 = por %p71, %p72
      %p74 = scmp.ne.s32.totalorder %s65, %s66
      %p75 = scmp.eq.s32.totalorder %s34, 0
      %p76 = por %p74, %p75
      %p77 = scmp.ne.s32.totalorder %s65, %s66
      %p78 = scmp.eq.s32.totalorder %s35, 1
      %p79 = por %p77, %p78
      %p81 = scmp.ne.s32.totalorder %s66, %s80
      %p82 = scmp.eq.s32.totalorder %s35, 0
      %p83 = por %p81, %p82
      %s85 = sadd.s32 %s84, 1
      %p88 = scmp.eq.s32.totalorder %s29, 1
      %p89 = scmp.ne.s32.totalorder %s84, %s86
      %p90 = scmp.eq.s32.totalorder %s29, 0
      %p91 = por %p89, %p90
      %p92 = scmp.ne.s32.totalorder %s84, %s86
      %p93 = scmp.eq.s32.totalorder %s34, 1
      %p94 = por %p92, %p93
      %p95 = scmp.ne.s32.totalorder %s86, %s87
      %p96 = scmp.eq.s32.totalorder %s34, 0
      %p97 = por %p95, %p96
      %p98 = scmp.ne.s32.totalorder %s86, %s87
      %p99 = scmp.eq.s32.totalorder %s35, 1
      %p100 = por %p98, %p99
      %p102 = scmp.ne.s32.totalorder %s87, %s101
      %p103 = scmp.eq.s32.totalorder %s35, 0
      %p104 = por %p102, %p103
      %s106 = sadd.s32 %s105, 1
      %p109 = scmp.eq.s32.totalorder %s29, 1
      %p110 = scmp.ne.s32.totalorder %s105, %s107
      %p111 = scmp.eq.s32.totalorder %s29, 0
      %p112 = por %p110, %p111
      %p113 = scmp.ne.s32.totalorder %s105, %s107
      %p114 = scmp.eq.s32.totalorder %s34, 1
      %p115 = por %p113, %p114
      %p116 = scmp.ne.s32.totalorder %s107, %s108
      %p117 = scmp.eq.s32.totalorder %s34, 0
      %p118 = por %p116, %p117
      %p119 = scmp.ne.s32.totalorder %s107, %s108
      %p120 = scmp.eq.s32.totalorder %s35, 1
      %p121 = por %p119, %p120
      %p123 = scmp.ne.s32.totalorder %s108, %s122
      %p124 = scmp.eq.s32.totalorder %s35, 0
      %p125 = por %p123, %p124
      %s127 = sadd.s32 %s126, 1
      %p130 = scmp.eq.s32.totalorder %s29, 1
      %p131 = scmp.ne.s32.totalorder %s126, %s128
      %p132 = scmp.eq.s32.totalorder %s29, 0
      %p133 = por %p131, %p132
      %p134 = scmp.ne.s32.totalorder %s126, %s128
      %p135 = scmp.eq.s32.totalorder %s34, 1
      %p136 = por %p134, %p135
      %p137 = scmp.ne.s32.totalorder %s128, %s129
      %p138 = scmp.eq.s32.totalorder %s34, 0
      %p139 = por %p137, %p138
      %p140 = scmp.ne.s32.totalorder %s128, %s129
      %p141 = scmp.eq.s32.totalorder %s35, 1
      %p142 = por %p140, %p141
      %p144 = scmp.ne.s32.totalorder %s129, %s143
      %p145 = scmp.eq.s32.totalorder %s35, 0
      %p146 = por %p144, %p145
      %s148 = sadd.s32 %s147, 1
      %p151 = scmp.eq.s32.totalorder %s29, 1
      %p152 = scmp.ne.s32.totalorder %s147, %s149
      %p153 = scmp.eq.s32.totalorder %s29, 0
      %p154 = por %p152, %p153
      %p155 = scmp.ne.s32.totalorder %s147, %s149
      %p156 = scmp.eq.s32.totalorder %s34, 1
      %p157 = por %p155, %p156
      %p158 = scmp.ne.s32.totalorder %s149, %s150
      %p159 = scmp.eq.s32.totalorder %s34, 0
      %p160 = por %p158, %p159
      %p161 = scmp.ne.s32.totalorder %s149, %s150
      %p162 = scmp.eq.s32.totalorder %s35, 1
      %p163 = por %p161, %p162
      %p165 = scmp.ne.s32.totalorder %s150, %s164
      %p166 = scmp.eq.s32.totalorder %s35, 0
      %p167 = por %p165, %p166
      %s169 = sadd.s32 %s168, 1
      %p172 = scmp.eq.s32.totalorder %s29, 1
      %p173 = scmp.ne.s32.totalorder %s168, %s170
      %p174 = scmp.eq.s32.totalorder %s29, 0
      %p175 = por %p173, %p174
      %p176 = scmp.ne.s32.totalorder %s168, %s170
      %p177 = scmp.eq.s32.totalorder %s34, 1
      %p178 = por %p176, %p177
      %p179 = scmp.ne.s32.totalorder %s170, %s171
      %p180 = scmp.eq.s32.totalorder %s34, 0
      %p181 = por %p179, %p180
      %p182 = scmp.ne.s32.totalorder %s170, %s171
      %p183 = scmp.eq.s32.totalorder %s35, 1
      %p184 = por %p182, %p183
      %p186 = scmp.ne.s32.totalorder %s171, %s185
      %p187 = scmp.eq.s32.totalorder %s35, 0
      %p188 = por %p186, %p187
      %s190 = sadd.s32 %s189, 1
      %p193 = scmp.eq.s32.totalorder %s29, 1
      %p194 = scmp.ne.s32.totalorder %s189, %s191
      %p195 = scmp.eq.s32.totalorder %s29, 0
      %p196 = por %p194, %p195
      %p197 = scmp.ne.s32.totalorder %s189, %s191
      %p198 = scmp.eq.s32.totalorder %s34, 1
      %p199 = por %p197, %p198
      %p200 = scmp.ne.s32.totalorder %s191, %s192
      %p201 = scmp.eq.s32.totalorder %s34, 0
      %p202 = por %p200, %p201
      %p203 = scmp.ne.s32.totalorder %s191, %s192
      %p204 = scmp.eq.s32.totalorder %s35, 1
      %p205 = por %p203, %p204
      %p207 = scmp.ne.s32.totalorder %s192, %s206
      %p208 = scmp.eq.s32.totalorder %s35, 0
      %p209 = por %p207, %p208
      %s211 = sadd.s32 %s210, 1
      %p214 = scmp.eq.s32.totalorder %s29, 1
      %p215 = scmp.ne.s32.totalorder %s210, %s212
      %p216 = scmp.eq.s32.totalorder %s29, 0
      %p217 = por %p215, %p216
      %p218 = scmp.ne.s32.totalorder %s210, %s212
      %p219 = scmp.eq.s32.totalorder %s34, 1
      %p220 = por %p218, %p219
      %p221 = scmp.ne.s32.totalorder %s212, %s213
      %p222 = scmp.eq.s32.totalorder %s34, 0
      %p223 = por %p221, %p222
      %p224 = scmp.ne.s32.totalorder %s212, %s213
      %p225 = scmp.eq.s32.totalorder %s35, 1
      %p226 = por %p224, %p225
      %p228 = scmp.ne.s32.totalorder %s213, %s227
      %p229 = scmp.eq.s32.totalorder %s35, 0
      %p230 = por %p228, %p229
      %s232 = sadd.s32 %s231, 1
      %p235 = scmp.eq.s32.totalorder %s29, 1
      %p236 = scmp.ne.s32.totalorder %s231, %s233
      %p237 = scmp.eq.s32.totalorder %s29, 0
      %p238 = por %p236, %p237
      %p239 = scmp.ne.s32.totalorder %s231, %s233
      %p240 = scmp.eq.s32.totalorder %s34, 1
      %p241 = por %p239, %p240
      %p242 = scmp.ne.s32.totalorder %s233, %s234
      %p243 = scmp.eq.s32.totalorder %s34, 0
      %p244 = por %p242, %p243
      %p245 = scmp.ne.s32.totalorder %s233, %s234
      %p246 = scmp.eq.s32.totalorder %s35, 1
      %p247 = por %p245, %p246
      %p249 = scmp.ne.s32.totalorder %s234, %s248
      %p250 = scmp.eq.s32.totalorder %s35, 0
      %p251 = por %p249, %p250
      %s253 = sadd.s32 %s252, 1
      %p256 = scmp.eq.s32.totalorder %s29, 1
      %p257 = scmp.ne.s32.totalorder %s252, %s254
      %p258 = scmp.eq.s32.totalorder %s29, 0
      %p259 = por %p257, %p258
      %p260 = scmp.ne.s32.totalorder %s252, %s254
      %p261 = scmp.eq.s32.totalorder %s34, 1
      %p262 = por %p260, %p261
      %p263 = scmp.ne.s32.totalorder %s254, %s255
      %p264 = scmp.eq.s32.totalorder %s34, 0
      %p265 = por %p263, %p264
      %p266 = scmp.ne.s32.totalorder %s254, %s255
      %p267 = scmp.eq.s32.totalorder %s35, 1
      %p268 = por %p266, %p267
      %p270 = scmp.ne.s32.totalorder %s255, %s269
      %p271 = scmp.eq.s32.totalorder %s35, 0
      %p272 = por %p270, %p271
      %s274 = sadd.s32 %s273, 1
      %p277 = scmp.eq.s32.totalorder %s29, 1
      %p278 = scmp.ne.s32.totalorder %s273, %s275
      %p279 = scmp.eq.s32.totalorder %s29, 0
      %p280 = por %p278, %p279
      %p281 = scmp.ne.s32.totalorder %s273, %s275
      %p282 = scmp.eq.s32.totalorder %s34, 1
      %p283 = por %p281, %p282
      %p284 = scmp.ne.s32.totalorder %s275, %s276
      %p285 = scmp.eq.s32.totalorder %s34, 0
      %p286 = por %p284, %p285
      %p287 = scmp.ne.s32.totalorder %s275, %s276
      %p288 = scmp.eq.s32.totalorder %s35, 1
      %p289 = por %p287, %p288
      %p291 = scmp.ne.s32.totalorder %s276, %s290
      %p292 = scmp.eq.s32.totalorder %s35, 0
      %p293 = por %p291, %p292
      %s295 = sadd.s32 %s294, 1
      %p298 = scmp.eq.s32.totalorder %s29, 1
      %p299 = scmp.ne.s32.totalorder %s294, %s296
      %p300 = scmp.eq.s32.totalorder %s29, 0
      %p301 = por %p299, %p300
      %p302 = scmp.ne.s32.totalorder %s294, %s296
      %p303 = scmp.eq.s32.totalorder %s34, 1
      %p304 = por %p302, %p303
      %p305 = scmp.ne.s32.totalorder %s296, %s297
      %p306 = scmp.eq.s32.totalorder %s34, 0
      %p307 = por %p305, %p306
      %p308 = scmp.ne.s32.totalorder %s296, %s297
      %p309 = scmp.eq.s32.totalorder %s35, 1
      %p310 = por %p308, %p309
      %p312 = scmp.ne.s32.totalorder %s297, %s311
      %p313 = scmp.eq.s32.totalorder %s35, 0
      %p314 = por %p312, %p313
      %s316 = sadd.s32 %s315, 1
      %p319 = scmp.eq.s32.totalorder %s29, 1
      %p320 = scmp.ne.s32.totalorder %s315, %s317
      %p321 = scmp.eq.s32.totalorder %s29, 0
      %p322 = por %p320, %p321
      %p323 = scmp.ne.s32.totalorder %s315, %s317
      %p324 = scmp.eq.s32.totalorder %s34, 1
      %p325 = por %p323, %p324
      %p326 = scmp.ne.s32.totalorder %s317, %s318
      %p327 = scmp.eq.s32.totalorder %s34, 0
      %p328 = por %p326, %p327
      %p329 = scmp.ne.s32.totalorder %s317, %s318
      %p330 = scmp.eq.s32.totalorder %s35, 1
      %p331 = por %p329, %p330
      %p333 = scmp.ne.s32.totalorder %s318, %s332
      %p334 = scmp.eq.s32.totalorder %s35, 0
      %p335 = por %p333, %p334
      %s337 = sadd.s32 %s336, 1
      %p340 = scmp.eq.s32.totalorder %s29, 1
      %p341 = scmp.ne.s32.totalorder %s336, %s338
      %p342 = scmp.eq.s32.totalorder %s29, 0
      %p343 = por %p341, %p342
      %p344 = scmp.ne.s32.totalorder %s336, %s338
      %p345 = scmp.eq.s32.totalorder %s34, 1
      %p346 = por %p344, %p345
      %p347 = scmp.ne.s32.totalorder %s338, %s339
      %p348 = scmp.eq.s32.totalorder %s34, 0
      %p349 = por %p347, %p348
      %p350 = scmp.ne.s32.totalorder %s338, %s339
      %p351 = scmp.eq.s32.totalorder %s35, 1
      %p352 = por %p350, %p351
      %p354 = scmp.ne.s32.totalorder %s339, %s353
      %p355 = scmp.eq.s32.totalorder %s35, 0
      %p356 = por %p354, %p355
      %s358 = sadd.s32 %s357, 1
      %p361 = scmp.eq.s32.totalorder %s29, 1
      %p362 = scmp.ne.s32.totalorder %s357, %s359
      %p363 = scmp.eq.s32.totalorder %s29, 0
      %p364 = por %p362, %p363
      %p365 = scmp.ne.s32.totalorder %s357, %s359
      %p366 = scmp.eq.s32.totalorder %s34, 1
      %p367 = por %p365, %p366
      %p368 = scmp.ne.s32.totalorder %s359, %s360
      %p369 = scmp.eq.s32.totalorder %s34, 0
      %p370 = por %p368, %p369
      %p371 = scmp.ne.s32.totalorder %s359, %s360
      %p372 = scmp.eq.s32.totalorder %s35, 1
      %p373 = por %p371, %p372
      %p375 = scmp.ne.s32.totalorder %s360, %s374
      %p376 = scmp.eq.s32.totalorder %s35, 0
      %p377 = por %p375, %p376
      %s378 = ssub.s32 %s29, %s36
      %p379 = scmp.eq.s32.totalorder %s378, 0
      %s381 = sadd.s32 %s380, 1
      %s382 = scalar_select %p379, %s380, %s381
      %p385 = pneg %p379
      %p386 = scmp.eq.s32.totalorder %s29, 1
      %p387 = por %p385, %p386
      %p388 = scmp.ne.s32.totalorder %s380, %s383
      %p389 = scmp.eq.s32.totalorder %s29, 0
      %p390 = por %p388, %p389
      %p391 = scmp.ne.s32.totalorder %s380, %s383
      %p392 = scmp.eq.s32.totalorder %s34, 1
      %p393 = por %p391, %p392
      %p394 = scmp.ne.s32.totalorder %s383, %s384
      %p395 = scmp.eq.s32.totalorder %s34, 0
      %p396 = por %p394, %p395
      %p397 = scmp.ne.s32.totalorder %s383, %s384
      %p398 = scmp.eq.s32.totalorder %s35, 1
      %p399 = por %p397, %p398
      %p401 = scmp.ne.s32.totalorder %s384, %s400
      %p402 = scmp.eq.s32.totalorder %s35, 0
      %p403 = por %p401, %p402
      %p404 = scmp.le.s32.totalorder 1, %s29
      %p405 = scmp.lt.s32.totalorder %s29, 3
      %p406 = pnand %p404, %p405
      %p407 = pneg %p406
      // Predicated region
      $region9: #{asr_forward.2} parent=5 // pred_check
        _
      $region10: #{asr_forward.2} parent=5 // pred_check_branch
        %409 = sbr.rel (%p406) target = $region12
      $region11: #{asr_forward.2} parent=5 // pred_region
        %s410 = ssub.s32 %s29, 1
        // Predicated region
        $region13: #{asr_forward.2} parent=11 // pred_check
          %p411 = pneg %p76
        $region14: #{asr_forward.2} parent=11 // pred_check_branch
          %413 = sbr.rel (%p411) target = $region16
        $region15: #{asr_forward.2} parent=11 // pred_region
          %s415 = ssub.s32 256, 256
          %416 = vsyncadd [#allocation5], %s415
          %s417 = sshll.u32 [#allocation4], 4
          %s418 = int_to_ptr.vmem [resolvable:$true] %s417
          %423 = dma.hbm_to_vmem [thread:$0]  %s1, 256, %s418, [#allocation5], 128, 128, 8
        $region16: #{asr_forward.2} parent=11 // pred_fallthru
          _
        // Predicated region
        $region17: #{asr_forward.2} parent=11 // pred_check
          %p424 = pneg %p97
        $region18: #{asr_forward.2} parent=11 // pred_check_branch
          %426 = sbr.rel (%p424) target = $region20
        $region19: #{asr_forward.2} parent=11 // pred_region
          %s428 = ssub.s32 16, 16
          %429 = vsyncadd [#allocation7], %s428
          %s431 = sshll.u32 [#allocation6], 4
          %s432 = int_to_ptr.vmem [resolvable:$true] %s431
          %434 = dma.hbm_to_vmem [thread:$0]  %s2, 16, %s432, [#allocation7]
        $region20: #{asr_forward.2} parent=11 // pred_fallthru
          _
        // Predicated region
        $region21: #{asr_forward.2} parent=11 // pred_check
          %p435 = pneg %p118
        $region22: #{asr_forward.2} parent=11 // pred_check_branch
          %437 = sbr.rel (%p435) target = $region24
        $region23: #{asr_forward.2} parent=11 // pred_region
          %s439 = ssub.s32 16, 16
          %440 = vsyncadd [#allocation7], %s439
          %s442 = sshll.u32 [#allocation8], 4
          %s443 = int_to_ptr.vmem [resolvable:$true] %s442
          %445 = dma.hbm_to_vmem [thread:$0]  %s3, 16, %s443, [#allocation7]
        $region24: #{asr_forward.2} parent=11 // pred_fallthru
          _
        // Predicated region
        $region25: #{asr_forward.2} parent=11 // pred_check
          %p446 = pneg %p139
        $region26: #{asr_forward.2} parent=11 // pred_check_branch
          %448 = sbr.rel (%p446) target = $region28
        $region27: #{asr_forward.2} parent=11 // pred_region
          _
        $region28: #{asr_forward.2} parent=11 // pred_fallthru
          _
        // Predicated region
        $region29: #{asr_forward.2} parent=11 // pred_check
          %p449 = pneg %p160
        $region30: #{asr_forward.2} parent=11 // pred_check_branch
          %451 = sbr.rel (%p449) target = $region32
        $region31: #{asr_forward.2} parent=11 // pred_region
          %s453 = ssub.s32 16, 16
          %454 = vsyncadd [#allocation10], %s453
          %s456 = sshll.u32 [#allocation9], 4
          %s457 = int_to_ptr.vmem [resolvable:$true] %s456
          %459 = dma.hbm_to_vmem [thread:$0]  %s5, 16, %s457, [#allocation10]
        $region32: #{asr_forward.2} parent=11 // pred_fallthru
          _
        // Predicated region
        $region33: #{asr_forward.2} parent=11 // pred_check
          %p460 = pneg %p181
        $region34: #{asr_forward.2} parent=11 // pred_check_branch
          %462 = sbr.rel (%p460) target = $region36
        $region35: #{asr_forward.2} parent=11 // pred_region
          %s464 = ssub.s32 16, 16
          %465 = vsyncadd [#allocation10], %s464
          %s467 = sshll.u32 [#allocation11], 4
          %s468 = int_to_ptr.vmem [resolvable:$true] %s467
          %470 = dma.hbm_to_vmem [thread:$0]  %s6, 16, %s468, [#allocation10]
        $region36: #{asr_forward.2} parent=11 // pred_fallthru
          _
        // Predicated region
        $region37: #{asr_forward.2} parent=11 // pred_check
          %p471 = pneg %p202
        $region38: #{asr_forward.2} parent=11 // pred_check_branch
          %473 = sbr.rel (%p471) target = $region40
        $region39: #{asr_forward.2} parent=11 // pred_region
          _
        $region40: #{asr_forward.2} parent=11 // pred_fallthru
          _
        // Predicated region
        $region41: #{asr_forward.2} parent=11 // pred_check
          %p474 = pneg %p223
        $region42: #{asr_forward.2} parent=11 // pred_check_branch
          %476 = sbr.rel (%p474) target = $region44
        $region43: #{asr_forward.2} parent=11 // pred_region
          %s478 = ssub.s32 16, 16
          %479 = vsyncadd [#allocation13], %s478
          %s481 = sshll.u32 [#allocation12], 4
          %s482 = int_to_ptr.vmem [resolvable:$true] %s481
          %484 = dma.hbm_to_vmem [thread:$0]  %s8, 16, %s482, [#allocation13]
        $region44: #{asr_forward.2} parent=11 // pred_fallthru
          _
        // Predicated region
        $region45: #{asr_forward.2} parent=11 // pred_check
          %p485 = pneg %p244
        $region46: #{asr_forward.2} parent=11 // pred_check_branch
          %487 = sbr.rel (%p485) target = $region48
        $region47: #{asr_forward.2} parent=11 // pred_region
          %s489 = ssub.s32 16, 16
          %490 = vsyncadd [#allocation13], %s489
          %s492 = sshll.u32 [#allocation14], 4
          %s493 = int_to_ptr.vmem [resolvable:$true] %s492
          %495 = dma.hbm_to_vmem [thread:$0]  %s9, 16, %s493, [#allocation13]
        $region48: #{asr_forward.2} parent=11 // pred_fallthru
          _
        // Predicated region
        $region49: #{asr_forward.2} parent=11 // pred_check
          %p496 = pneg %p265
        $region50: #{asr_forward.2} parent=11 // pred_check_branch
          %498 = sbr.rel (%p496) target = $region52
        $region51: #{asr_forward.2} parent=11 // pred_region
          %s500 = ssub.s32 16, 16
          %501 = vsyncadd [#allocation16], %s500
          %s503 = sshll.u32 [#allocation15], 4
          %s504 = int_to_ptr.vmem [resolvable:$true] %s503
          %506 = dma.hbm_to_vmem [thread:$0]  %s10, 16, %s504, [#allocation16]
        $region52: #{asr_forward.2} parent=11 // pred_fallthru
          _
        // Predicated region
        $region53: #{asr_forward.2} parent=11 // pred_check
          %p507 = pneg %p286
        $region54: #{asr_forward.2} parent=11 // pred_check_branch
          %509 = sbr.rel (%p507) target = $region56
        $region55: #{asr_forward.2} parent=11 // pred_region
          %s511 = ssub.s32 16, 16
          %512 = vsyncadd [#allocation16], %s511
          %s514 = sshll.u32 [#allocation17], 4
          %s515 = int_to_ptr.vmem [resolvable:$true] %s514
          %517 = dma.hbm_to_vmem [thread:$0]  %s11, 16, %s515, [#allocation16]
        $region56: #{asr_forward.2} parent=11 // pred_fallthru
          _
        // Predicated region
        $region57: #{asr_forward.2} parent=11 // pred_check
          %p518 = pneg %p307
        $region58: #{asr_forward.2} parent=11 // pred_check_branch
          %520 = sbr.rel (%p518) target = $region60
        $region59: #{asr_forward.2} parent=11 // pred_region
          %s522 = ssub.s32 256, 256
          %523 = vsyncadd [#allocation19], %s522
          %s524 = sshll.u32 [#allocation18], 4
          %s525 = int_to_ptr.vmem [resolvable:$true] %s524
          %530 = dma.hbm_to_vmem [thread:$0]  %s12, 256, %s525, [#allocation19], 64, 64, 4
        $region60: #{asr_forward.2} parent=11 // pred_fallthru
          _
        // Predicated region
        $region61: #{asr_forward.2} parent=11 // pred_check
          %p531 = pneg %p328
        $region62: #{asr_forward.2} parent=11 // pred_check_branch
          %533 = sbr.rel (%p531) target = $region64
        $region63: #{asr_forward.2} parent=11 // pred_region
          %s535 = ssub.s32 16, 16
          %536 = vsyncadd [#allocation19], %s535
          %s538 = sshll.u32 [#allocation20], 4
          %s539 = int_to_ptr.vmem [resolvable:$true] %s538
          %541 = dma.hbm_to_vmem [thread:$0]  %s13, 16, %s539, [#allocation19]
        $region64: #{asr_forward.2} parent=11 // pred_fallthru
          _
        // Predicated region
        $region65: #{asr_forward.2} parent=11 // pred_check
          %p542 = pneg %p349
        $region66: #{asr_forward.2} parent=11 // pred_check_branch
          %544 = sbr.rel (%p542) target = $region68
        $region67: #{asr_forward.2} parent=11 // pred_region
          %s546 = ssub.s32 3072, 3072
          %547 = vsyncadd [#allocation22], %s546
          %s548 = sshll.u32 [#allocation21], 4
          %s549 = int_to_ptr.vmem [resolvable:$true] %s548
          %554 = dma.hbm_to_vmem [thread:$0]  %s14, 3072, %s549, [#allocation22], 64, 64, 4
        $region68: #{asr_forward.2} parent=11 // pred_fallthru
          _
        // Predicated region
        $region69: #{asr_forward.2} parent=11 // pred_check
          %p555 = pneg %p370
        $region70: #{asr_forward.2} parent=11 // pred_check_branch
          %557 = sbr.rel (%p555) target = $region72
        $region71: #{asr_forward.2} parent=11 // pred_region
          %s559 = ssub.s32 16, 16
          %560 = vsyncadd [#allocation22], %s559
          %s562 = sshll.u32 [#allocation23], 4
          %s563 = int_to_ptr.vmem [resolvable:$true] %s562
          %565 = dma.hbm_to_vmem [thread:$0]  %s15, 16, %s563, [#allocation22]
        $region72: #{asr_forward.2} parent=11 // pred_fallthru
          _
      $region12: #{asr_forward.2} parent=5 // pred_fallthru
        _
      %p566 = scmp.lt.s32.totalorder %s29, 2
      // Predicated region
      $region73: #{asr_forward.2} parent=5 // pred_check
        %p567 = pneg %p566
      $region74: #{asr_forward.2} parent=5 // pred_check_branch
        %569 = sbr.rel (%p567) target = $region76
      $region75: #{asr_forward.2} parent=5 // pred_region
        // Predicated region
        $region77: #{asr_forward.2} parent=75 // pred_check
          %p570 = pneg %p49
        $region78: #{asr_forward.2} parent=75 // pred_check_branch
          %572 = sbr.rel (%p570) target = $region80
        $region79: #{asr_forward.2} parent=75 // pred_region
          %p573 = scmp.lt.s32.totalorder %s29, 1
          %s574 = scalar_select %p573, %s29, 1
          %s575 = smul.addr %s574, 9
          %s576 = smul.addr %s575, 8
          %s577 = scalar_lea.vmem %s0, %s576
        $region80: #{asr_forward.2} parent=75 // pred_fallthru
          _
      $region76: #{asr_forward.2} parent=5 // pred_fallthru
        _
      %p578 = scmp.le.s32.totalorder 1, %s29
      %p579 = scmp.lt.s32.totalorder %s29, 3
      %p580 = pnand %p578, %p579
      %p581 = pneg %p580
      // Predicated region
      $region81: #{asr_forward.2} parent=5 // pred_check
        _
      $region82: #{asr_forward.2} parent=5 // pred_check_branch
        %583 = sbr.rel (%p580) target = $region84
      $region83: #{asr_forward.2} parent=5 // pred_region
        %s584 = ssub.s32 %s29, 1
        // Predicated region
        $region85: #{asr_forward.2} parent=83 // pred_check
          %p585 = pneg %p76
        $region86: #{asr_forward.2} parent=83 // pred_check_branch
          %587 = sbr.rel (%p585) target = $region88
        $region87: #{asr_forward.2} parent=83 // pred_region
          %588 = dma.done [#allocation5], 256
        $region88: #{asr_forward.2} parent=83 // pred_fallthru
          _
        // Predicated region
        $region89: #{asr_forward.2} parent=83 // pred_check
          %p589 = pneg %p97
        $region90: #{asr_forward.2} parent=83 // pred_check_branch
          %591 = sbr.rel (%p589) target = $region92
        $region91: #{asr_forward.2} parent=83 // pred_region
          %592 = dma.done [#allocation7], 16
        $region92: #{asr_forward.2} parent=83 // pred_fallthru
          _
        // Predicated region
        $region93: #{asr_forward.2} parent=83 // pred_check
          %p593 = pneg %p118
        $region94: #{asr_forward.2} parent=83 // pred_check_branch
          %595 = sbr.rel (%p593) target = $region96
        $region95: #{asr_forward.2} parent=83 // pred_region
          %596 = dma.done [#allocation7], 16
        $region96: #{asr_forward.2} parent=83 // pred_fallthru
          _
        // Predicated region
        $region97: #{asr_forward.2} parent=83 // pred_check
          %p597 = pneg %p160
        $region98: #{asr_forward.2} parent=83 // pred_check_branch
          %599 = sbr.rel (%p597) target = $region100
        $region99: #{asr_forward.2} parent=83 // pred_region
          %600 = dma.done [#allocation10], 16
        $region100: #{asr_forward.2} parent=83 // pred_fallthru
          _
        // Predicated region
        $region101: #{asr_forward.2} parent=83 // pred_check
          %p601 = pneg %p181
        $region102: #{asr_forward.2} parent=83 // pred_check_branch
          %603 = sbr.rel (%p601) target = $region104
        $region103: #{asr_forward.2} parent=83 // pred_region
          %604 = dma.done [#allocation10], 16
        $region104: #{asr_forward.2} parent=83 // pred_fallthru
          _
        // Predicated region
        $region105: #{asr_forward.2} parent=83 // pred_check
          %p605 = pneg %p223
        $region106: #{asr_forward.2} parent=83 // pred_check_branch
          %607 = sbr.rel (%p605) target = $region108
        $region107: #{asr_forward.2} parent=83 // pred_region
          %608 = dma.done [#allocation13], 16
        $region108: #{asr_forward.2} parent=83 // pred_fallthru
          _
        // Predicated region
        $region109: #{asr_forward.2} parent=83 // pred_check
          %p609 = pneg %p244
        $region110: #{asr_forward.2} parent=83 // pred_check_branch
          %611 = sbr.rel (%p609) target = $region112
        $region111: #{asr_forward.2} parent=83 // pred_region
          %612 = dma.done [#allocation13], 16
        $region112: #{asr_forward.2} parent=83 // pred_fallthru
          _
        // Predicated region
        $region113: #{asr_forward.2} parent=83 // pred_check
          %p613 = pneg %p265
        $region114: #{asr_forward.2} parent=83 // pred_check_branch
          %615 = sbr.rel (%p613) target = $region116
        $region115: #{asr_forward.2} parent=83 // pred_region
          %616 = dma.done [#allocation16], 16
        $region116: #{asr_forward.2} parent=83 // pred_fallthru
          _
        // Predicated region
        $region117: #{asr_forward.2} parent=83 // pred_check
          %p617 = pneg %p286
        $region118: #{asr_forward.2} parent=83 // pred_check_branch
          %619 = sbr.rel (%p617) target = $region120
        $region119: #{asr_forward.2} parent=83 // pred_region
          %620 = dma.done [#allocation16], 16
        $region120: #{asr_forward.2} parent=83 // pred_fallthru
          _
        // Predicated region
        $region121: #{asr_forward.2} parent=83 // pred_check
          %p621 = pneg %p307
        $region122: #{asr_forward.2} parent=83 // pred_check_branch
          %623 = sbr.rel (%p621) target = $region124
        $region123: #{asr_forward.2} parent=83 // pred_region
          %624 = dma.done [#allocation19], 256
        $region124: #{asr_forward.2} parent=83 // pred_fallthru
          _
        // Predicated region
        $region125: #{asr_forward.2} parent=83 // pred_check
          %p625 = pneg %p328
        $region126: #{asr_forward.2} parent=83 // pred_check_branch
          %627 = sbr.rel (%p625) target = $region128
        $region127: #{asr_forward.2} parent=83 // pred_region
          %628 = dma.done [#allocation19], 16
        $region128: #{asr_forward.2} parent=83 // pred_fallthru
          _
        // Predicated region
        $region129: #{asr_forward.2} parent=83 // pred_check
          %p629 = pneg %p349
        $region130: #{asr_forward.2} parent=83 // pred_check_branch
          %631 = sbr.rel (%p629) target = $region132
        $region131: #{asr_forward.2} parent=83 // pred_region
          %632 = dma.done [#allocation22], 3072
        $region132: #{asr_forward.2} parent=83 // pred_fallthru
          _
        // Predicated region
        $region133: #{asr_forward.2} parent=83 // pred_check
          %p633 = pneg %p370
        $region134: #{asr_forward.2} parent=83 // pred_check_branch
          %635 = sbr.rel (%p633) target = $region136
        $region135: #{asr_forward.2} parent=83 // pred_region
          %636 = dma.done [#allocation22], 16
        $region136: #{asr_forward.2} parent=83 // pred_fallthru
          _
        %p637 = scmp.lt.s32.totalorder %s34, 1
        %s638 = scalar_select %p637, %s34, 1
        %s639 = smul.addr %s638, 9
        %s640 = smul.addr %s639, 8
        %s641 = scalar_lea.vmem %s0, %s640
        %p642 = pneg %p55
        %p643 = pneg %p52
        %p644 = pneg %p76
        %p645 = pneg %p73
        %p646 = pneg %p97
        %p647 = pneg %p94
        %p648 = pneg %p118
        %p649 = pneg %p115
        %p650 = pneg %p139
        %p651 = pneg %p136
        %p652 = pneg %p160
        %p653 = pneg %p157
        %p654 = pneg %p181
        %p655 = pneg %p178
        %p656 = pneg %p202
        %p657 = pneg %p199
        %p658 = pneg %p223
        %p659 = pneg %p220
        %p660 = pneg %p244
        %p661 = pneg %p241
        %p662 = pneg %p265
        %p663 = pneg %p262
        %p664 = pneg %p286
        %p665 = pneg %p283
        %p666 = pneg %p307
        %p667 = pneg %p304
        %p668 = pneg %p328
        %p669 = pneg %p325
        %p670 = pneg %p349
        %p671 = pneg %p346
        %p672 = pneg %p370
        %p673 = pneg %p367
        %p674 = pneg %p396
        %p675 = pneg %p393
        %p676 = scmp.lt.s32.totalorder %s34, 1
        %s677 = scalar_select %p676, %s34, 1
        %s678 = smul.addr %s677, 2
        %s679 = smul.addr %s678, 8
        %s680 = scalar_lea.vmem %s16, %s679
        %p681 = scmp.lt.s32.totalorder %s34, 1
        %s682 = scalar_select %p681, %s34, 1
        %s683 = smul.addr %s682, 9
        %s684 = smul.addr %s683, 8
        %s685 = scalar_lea.vmem %s0, %s684
        %p686 = scmp.lt.s32.totalorder %s34, 1
        %s687 = scalar_select %p686, %s34, 1
        %s688 = smul.addr %s687, 2
        %s689 = smul.addr %s688, 8
        %s690 = scalar_lea.vmem %s16, %s689
        %v692 = vld [vmem:[%s685] sm:$0xff]
        %v693 = vld [vmem:[%s685 + $0x8] sm:$0xff]
        %v694 = vld [vmem:[%s685 + $0x10] sm:$0xff]
        %v695 = vld [vmem:[%s685 + $0x18] sm:$0xff]
        %v696 = vld [vmem:[%s685 + $0x20] sm:$0xff]
        %v697 = vld [vmem:[%s685 + $0x28] sm:$0xff]
        %v698 = vld [vmem:[%s685 + $0x30] sm:$0xff]
        %v699 = vld [vmem:[%s685 + $0x38] sm:$0xff]
        %v700 = vld [vmem:[%s685 + $0x40] sm:$0x3]
        %vm710 = vcmask 1046528
        %v711 = vrot.slane %v692, 1
        %v712 = vrot.slane %v693, 1
        %v713 = vsel %vm710, %v711, %v712
        %v714 = vrot.slane %v694, 1
        %v715 = vsel %vm710, %v712, %v714
        %v716 = vrot.slane %v695, 1
        %v717 = vsel %vm710, %v714, %v716
        %v718 = vrot.slane %v696, 1
        %v719 = vsel %vm710, %v716, %v718
        %v720 = vrot.slane %v697, 1
        %v721 = vsel %vm710, %v718, %v720
        %v722 = vrot.slane %v698, 1
        %v723 = vsel %vm710, %v720, %v722
        %v724 = vrot.slane %v699, 1
        %v725 = vsel %vm710, %v722, %v724
        %v726 = vrot.slane %v700, 1
        %v727 = vsel %vm710, %v724, %v726
        %728 = vrot.lane.b32.xlu0 %v713, 5
        %v729 = vpop.permute.xlu0 %728
        %730 = vrot.lane.b32.xlu0 %v715, 5
        %v731 = vpop.permute.xlu0 %730
        %732 = vrot.lane.b32.xlu0 %v717, 5
        %v733 = vpop.permute.xlu0 %732
        %734 = vrot.lane.b32.xlu0 %v719, 5
        %v735 = vpop.permute.xlu0 %734
        %736 = vrot.lane.b32.xlu0 %v721, 5
        %v737 = vpop.permute.xlu0 %736
        %738 = vrot.lane.b32.xlu0 %v723, 5
        %v739 = vpop.permute.xlu0 %738
        %740 = vrot.lane.b32.xlu0 %v725, 5
        %v741 = vpop.permute.xlu0 %740
        %742 = vrot.lane.b32.xlu0 %v727, 5
        %v743 = vpop.permute.xlu0 %742
        %744 = vrot.lane.b32.xlu0 %v726, 5
        %v745 = vpop.permute.xlu0 %744
        %vm755 = vcmask 39936
        %v756 = vsel %vm755, %v692, %v729
        %v757 = vsel %vm755, %v693, %v731
        %v758 = vsel %vm755, %v694, %v733
        %v759 = vsel %vm755, %v695, %v735
        %v760 = vsel %vm755, %v696, %v737
        %v761 = vsel %vm755, %v697, %v739
        %v762 = vsel %vm755, %v698, %v741
        %v763 = vsel %vm755, %v699, %v743
        %v764 = vsel %vm755, %v700, %v745
        %v765 = vld [vmem:[#allocation4] sm:$0xff]
        %v766 = vld [vmem:[#allocation4 + $0x8] sm:$0x3]
        %vm767 = vcmask 80896
        %v769 = vsel %vm767, %v756, 0
        %v772 = vsel %vm767, %v757, 0
        %v775 = vsel %vm767, %v758, 0
        %v778 = vsel %vm767, %v759, 0
        %v781 = vsel %vm767, %v760, 0
        %v784 = vsel %vm767, %v761, 0
        %v787 = vsel %vm767, %v762, 0
        %v790 = vsel %vm767, %v763, 0
        %v793 = vsel %vm767, %v764, 0
        %vm795 = vcmask 1041408
        %v797 = vsel %vm795, %v766, 0
        %799 = vmatprep.subr.mxu0 0.0
        %800 = vmatpush1.msra.mxu0 %v765
        %801 = vmatprep.subr.mxu0 0.0
        %802 = vmatpush1.msra.mxu0 %v797
        %803 = vmatprep.subr.mxu0 0.0
        %804 = vmatpush1.msra.mxu0 0.0
        %805 = vmatprep.subr.mxu0 0.0
        %806 = vmatpush1.msra.mxu0 0.0
        %807 = vmatprep.subr.mxu0 0.0
        %808 = vmatpush1.msra.mxu0 0.0
        %809 = vmatprep.subr.mxu0 0.0
        %810 = vmatpush1.msra.mxu0 0.0
        %811 = vmatprep.subr.mxu0 0.0
        %812 = vmatpush1.msra.mxu0 0.0
        %813 = vmatprep.subr.mxu0 0.0
        %814 = vmatpush1.msra.mxu0 0.0
        %815 = vmatprep.subr.mxu0 0.0
        %816 = vmatpush1.msra.mxu0 0.0
        %817 = vmatprep.subr.mxu0 0.0
        %818 = vmatpush1.msra.mxu0 0.0
        %819 = vmatprep.subr.mxu0 0.0
        %820 = vmatpush1.msra.mxu0 0.0
        %821 = vmatprep.subr.mxu0 0.0
        %822 = vmatpush1.msra.mxu0 0.0
        %823 = vmatprep.subr.mxu0 0.0
        %824 = vmatpush1.msra.mxu0 0.0
        %825 = vmatprep.subr.mxu0 0.0
        %826 = vmatpush1.msra.mxu0 0.0
        %827 = vmatprep.subr.mxu0 0.0
        %828 = vmatpush1.msra.mxu0 0.0
        %829 = vmatprep.subr.mxu0 0.0
        %830 = vmatpush1.msra.mxu0 0.0
        %831 = vmatprep.subr.mxu0 0.0
        %832 = vmatpush1.msra.mxu0 0.0
        %833 = vmatprep.subr.mxu0 0.0
        %834 = vmatpush1.msra.mxu0 0.0
        %835 = vmatprep.subr.mxu0 0.0
        %836 = vmatpush1.msra.mxu0 0.0
        %837 = vmatprep.subr.mxu0 0.0
        %838 = vmatpush1.msra.mxu0 0.0
        %839 = vmatprep.subr.mxu0 0.0
        %840 = vmatpush1.msra.mxu0 0.0
        %841 = vmatprep.subr.mxu0 0.0
        %842 = vmatpush1.msra.mxu0 0.0
        %843 = vmatprep.subr.mxu0 0.0
        %844 = vmatpush1.msra.mxu0 0.0
        %845 = vmatprep.subr.mxu0 0.0
        %846 = vmatpush1.msra.mxu0 0.0
        %847 = vmatprep.subr.mxu0 0.0
        %848 = vmatpush1.msra.mxu0 0.0
        %849 = vmatprep.subr.mxu0 0.0
        %850 = vmatpush1.msra.mxu0 0.0
        %851 = vmatprep.subr.mxu0 0.0
        %852 = vmatpush1.msra.mxu0 0.0
        %853 = vmatprep.subr.mxu0 0.0
        %854 = vmatpush1.msra.mxu0 0.0
        %855 = vmatprep.subr.mxu0 0.0
        %856 = vmatpush1.msra.mxu0 0.0
        %857 = vmatprep.subr.mxu0 0.0
        %858 = vmatpush1.msra.mxu0 0.0
        %859 = vmatprep.subr.mxu0 0.0
        %860 = vmatpush1.msra.mxu0 0.0
        %861 = vmatprep.subr.mxu0 0.0
        %862 = vmatpush1.msra.mxu0 0.0
        %863 = vmatprep.mubr.f32.mxu0 0.0
        %864 = vmatmul.mubr.f32.gmra.mrb[0].mxu0 %v769
        %v865 = vpop.f32.mrb[0].mxu0
        %v866 = vadd.f32 0.0, %v865
        %v867 = vpop.f32.mrb[0].mxu0
        %868 = vmatprep.mubr.f32.mxu0 0.0
        %869 = vmatmul.mubr.f32.gmra.mrb[0].mxu0 %v772
        %v870 = vpop.f32.mrb[0].mxu0
        %v871 = vadd.f32 0.0, %v870
        %v872 = vpop.f32.mrb[0].mxu0
        %873 = vmatprep.mubr.f32.mxu0 0.0
        %874 = vmatmul.mubr.f32.gmra.mrb[0].mxu0 %v775
        %v875 = vpop.f32.mrb[0].mxu0
        %v876 = vadd.f32 0.0, %v875
        %v877 = vpop.f32.mrb[0].mxu0
        %878 = vmatprep.mubr.f32.mxu0 0.0
        %879 = vmatmul.mubr.f32.gmra.mrb[0].mxu0 %v778
        %v880 = vpop.f32.mrb[0].mxu0
        %v881 = vadd.f32 0.0, %v880
        %v882 = vpop.f32.mrb[0].mxu0
        %883 = vmatprep.mubr.f32.mxu0 0.0
        %884 = vmatmul.mubr.f32.gmra.mrb[0].mxu0 %v781
        %v885 = vpop.f32.mrb[0].mxu0
        %v886 = vadd.f32 0.0, %v885
        %v887 = vpop.f32.mrb[0].mxu0
        %888 = vmatprep.mubr.f32.mxu0 0.0
        %889 = vmatmul.mubr.f32.gmra.mrb[0].mxu0 %v784
        %v890 = vpop.f32.mrb[0].mxu0
        %v891 = vadd.f32 0.0, %v890
        %v892 = vpop.f32.mrb[0].mxu0
        %893 = vmatprep.mubr.f32.mxu0 0.0
        %894 = vmatmul.mubr.f32.gmra.mrb[0].mxu0 %v787
        %v895 = vpop.f32.mrb[0].mxu0
        %v896 = vadd.f32 0.0, %v895
        %v897 = vpop.f32.mrb[0].mxu0
        %898 = vmatprep.mubr.f32.mxu0 0.0
        %899 = vmatmul.mubr.f32.gmra.mrb[0].mxu0 %v790
        %v900 = vpop.f32.mrb[0].mxu0
        %v901 = vadd.f32 0.0, %v900
        %v902 = vpop.f32.mrb[0].mxu0
        %903 = vmatprep.mubr.f32.mxu0 0.0
        %904 = vmatmul.mubr.f32.gmra.mrb[0].mxu0 %v793
        %v905 = vpop.f32.mrb[0].mxu0
        %v906 = vadd.f32 0.0, %v905
        %v907 = vpop.f32.mrb[0].mxu0
        %908 = vdwg.mxu0
        %v909 = vld [vmem:[#allocation6] sm:$0x1]
        %v910 = vld [vmem:[#allocation8] sm:$0x1]
        %vm911 = vcmask 261120
        %v912 = vsel %vm911, %v866, 0.0
        %913 = vadd.xlane.f32.xlu0 %v912
        %v914 = vpop.xlane.xlu0 %913
        %v915 = vsel %vm911, %v871, 0.0
        %916 = vadd.xlane.f32.xlu0 %v915
        %v917 = vpop.xlane.xlu0 %916
        %v918 = vsel %vm911, %v876, 0.0
        %919 = vadd.xlane.f32.xlu0 %v918
        %v920 = vpop.xlane.xlu0 %919
        %v921 = vsel %vm911, %v881, 0.0
        %922 = vadd.xlane.f32.xlu0 %v921
        %v923 = vpop.xlane.xlu0 %922
        %v924 = vsel %vm911, %v886, 0.0
        %925 = vadd.xlane.f32.xlu0 %v924
        %v926 = vpop.xlane.xlu0 %925
        %v927 = vsel %vm911, %v891, 0.0
        %928 = vadd.xlane.f32.xlu0 %v927
        %v929 = vpop.xlane.xlu0 %928
        %v930 = vsel %vm911, %v896, 0.0
        %931 = vadd.xlane.f32.xlu0 %v930
        %v932 = vpop.xlane.xlu0 %931
        %v933 = vsel %vm911, %v901, 0.0
        %934 = vadd.xlane.f32.xlu0 %v933
        %v935 = vpop.xlane.xlu0 %934
        %vm936 = vcmask 253952
        %v937 = vsel %vm936, %v906, 0.0
        %938 = vadd.xlane.f32.xlu0 %v937
        %v939 = vpop.xlane.xlu0 %938
        %v940 = vrcp.pop 32.0
        %v941 = vmul.f32 %v914, %v940
        %v942 = vmul.f32 %v917, %v940
        %v943 = vmul.f32 %v920, %v940
        %v944 = vmul.f32 %v923, %v940
        %v945 = vmul.f32 %v926, %v940
        %v946 = vmul.f32 %v929, %v940
        %v947 = vmul.f32 %v932, %v940
        %v948 = vmul.f32 %v935, %v940
        %v949 = vmul.f32 %v939, %v940
        %v950 = vsub.f32 %v866, %v941
        %v951 = vsub.f32 %v871, %v942
        %v952 = vsub.f32 %v876, %v943
        %v953 = vsub.f32 %v881, %v944
        %v954 = vsub.f32 %v886, %v945
        %v955 = vsub.f32 %v891, %v946
        %v956 = vsub.f32 %v896, %v947
        %v957 = vsub.f32 %v901, %v948
        %v958 = vsub.f32 %v906, %v949
        %v959 = vmul.f32 %v950, %v950
        %v960 = vmul.f32 %v951, %v951
        %v961 = vmul.f32 %v952, %v952
        %v962 = vmul.f32 %v953, %v953
        %v963 = vmul.f32 %v954, %v954
        %v964 = vmul.f32 %v955, %v955
        %v965 = vmul.f32 %v956, %v956
        %v966 = vmul.f32 %v957, %v957
        %v967 = vmul.f32 %v958, %v958
        %v968 = vsel %vm911, %v959, 0.0
        %969 = vadd.xlane.f32.xlu0 %v968
        %v970 = vpop.xlane.xlu0 %969
        %v971 = vsel %vm911, %v960, 0.0
        %972 = vadd.xlane.f32.xlu0 %v971
        %v973 = vpop.xlane.xlu0 %972
        %v974 = vsel %vm911, %v961, 0.0
        %975 = vadd.xlane.f32.xlu0 %v974
        %v976 = vpop.xlane.xlu0 %975
        %v977 = vsel %vm911, %v962, 0.0
        %978 = vadd.xlane.f32.xlu0 %v977
        %v979 = vpop.xlane.xlu0 %978
        %v980 = vsel %vm911, %v963, 0.0
        %981 = vadd.xlane.f32.xlu0 %v980
        %v982 = vpop.xlane.xlu0 %981
        %v983 = vsel %vm911, %v964, 0.0
        %984 = vadd.xlane.f32.xlu0 %v983
        %v985 = vpop.xlane.xlu0 %984
        %v986 = vsel %vm911, %v965, 0.0
        %987 = vadd.xlane.f32.xlu0 %v986
        %v988 = vpop.xlane.xlu0 %987
        %v989 = vsel %vm911, %v966, 0.0
        %990 = vadd.xlane.f32.xlu0 %v989
        %v991 = vpop.xlane.xlu0 %990
        %v992 = vsel %vm936, %v967, 0.0
        %993 = vadd.xlane.f32.xlu0 %v992
        %v994 = vpop.xlane.xlu0 %993
        %v995 = vmul.f32 %v970, %v940
        %v996 = vmul.f32 %v973, %v940
        %v997 = vmul.f32 %v976, %v940
        %v998 = vmul.f32 %v979, %v940
        %v999 = vmul.f32 %v982, %v940
        %v1000 = vmul.f32 %v985, %v940
        %v1001 = vmul.f32 %v988, %v940
        %v1002 = vmul.f32 %v991, %v940
        %v1003 = vmul.f32 %v994, %v940
        %v1004 = vadd.f32 %v995, 1e-05
        %v1005 = vadd.f32 %v996, 1e-05
        %v1006 = vadd.f32 %v997, 1e-05
        %v1007 = vadd.f32 %v998, 1e-05
        %v1008 = vadd.f32 %v999, 1e-05
        %v1009 = vadd.f32 %v1000, 1e-05
        %v1010 = vadd.f32 %v1001, 1e-05
        %v1011 = vadd.f32 %v1002, 1e-05
        %v1012 = vadd.f32 %v1003, 1e-05
        %v1013 = vrsqrt.pop %v1004
        %v1014 = vrsqrt.pop %v1005
        %v1015 = vrsqrt.pop %v1006
        %v1016 = vrsqrt.pop %v1007
        %v1017 = vrsqrt.pop %v1008
        %v1018 = vrsqrt.pop %v1009
        %v1019 = vrsqrt.pop %v1010
        %v1020 = vrsqrt.pop %v1011
        %v1021 = vrsqrt.pop %v1012
        %v1022 = vmul.f32 %v950, %v1013
        %v1023 = vmul.f32 %v951, %v1014
        %v1024 = vmul.f32 %v952, %v1015
        %v1025 = vmul.f32 %v953, %v1016
        %v1026 = vmul.f32 %v954, %v1017
        %v1027 = vmul.f32 %v955, %v1018
        %v1028 = vmul.f32 %v956, %v1019
        %v1029 = vmul.f32 %v957, %v1020
        %v1030 = vmul.f32 %v958, %v1021
        %v1032 = vlaneseq
        %v1033 = vshrl.u32 %v1032, 7
        %v1034 = vsub.s32 0, %v1033
        %v1035 = vrot.slane %v909, %v1034
        %v1037 = vmul.f32 %v1022, %v1035
        %v1038 = vmul.f32 %v1023, %v1035
        %v1039 = vmul.f32 %v1024, %v1035
        %v1040 = vmul.f32 %v1025, %v1035
        %v1041 = vmul.f32 %v1026, %v1035
        %v1042 = vmul.f32 %v1027, %v1035
        %v1043 = vmul.f32 %v1028, %v1035
        %v1044 = vmul.f32 %v1029, %v1035
        %v1045 = vmul.f32 %v1030, %v1035
        %v1047 = vlaneseq
        %v1048 = vshrl.u32 %v1047, 7
        %v1049 = vsub.s32 0, %v1048
        %v1050 = vrot.slane %v910, %v1049
        %v1052 = vadd.f32 %v1037, %v1050
        %v1053 = vadd.f32 %v1038, %v1050
        %v1054 = vadd.f32 %v1039, %v1050
        %v1055 = vadd.f32 %v1040, %v1050
        %v1056 = vadd.f32 %v1041, %v1050
        %v1057 = vadd.f32 %v1042, %v1050
        %v1058 = vadd.f32 %v1043, %v1050
        %v1059 = vadd.f32 %v1044, %v1050
        %v1060 = vadd.f32 %v1045, %v1050
        %v1061 = vmul.f32 %v1052, %v1052
        %v1062 = vmul.f32 %v1053, %v1053
        %v1063 = vmul.f32 %v1054, %v1054
        %v1064 = vmul.f32 %v1055, %v1055
        %v1065 = vmul.f32 %v1056, %v1056
        %v1066 = vmul.f32 %v1057, %v1057
        %v1067 = vmul.f32 %v1058, %v1058
        %v1068 = vmul.f32 %v1059, %v1059
        %v1069 = vmul.f32 %v1060, %v1060
        %v1070 = vmul.f32 %v1052, %v1061
        %v1071 = vmul.f32 %v1053, %v1062
        %v1072 = vmul.f32 %v1054, %v1063
        %v1073 = vmul.f32 %v1055, %v1064
        %v1074 = vmul.f32 %v1056, %v1065
        %v1075 = vmul.f32 %v1057, %v1066
        %v1076 = vmul.f32 %v1058, %v1067
        %v1077 = vmul.f32 %v1059, %v1068
        %v1078 = vmul.f32 %v1060, %v1069
        %v1079 = vmul.f32 %v1070, 0.044715
        %v1080 = vmul.f32 %v1071, 0.044715
        %v1081 = vmul.f32 %v1072, 0.044715
        %v1082 = vmul.f32 %v1073, 0.044715
        %v1083 = vmul.f32 %v1074, 0.044715
        %v1084 = vmul.f32 %v1075, 0.044715
        %v1085 = vmul.f32 %v1076, 0.044715
        %v1086 = vmul.f32 %v1077, 0.044715
        %v1087 = vmul.f32 %v1078, 0.044715
        %v1088 = vadd.f32 %v1052, %v1079
        %v1089 = vadd.f32 %v1053, %v1080
        %v1090 = vadd.f32 %v1054, %v1081
        %v1091 = vadd.f32 %v1055, %v1082
        %v1092 = vadd.f32 %v1056, %v1083
        %v1093 = vadd.f32 %v1057, %v1084
        %v1094 = vadd.f32 %v1058, %v1085
        %v1095 = vadd.f32 %v1059, %v1086
        %v1096 = vadd.f32 %v1060, %v1087
        %v1097 = vmul.f32 %v1088, 0.7978846
        %v1098 = vmul.f32 %v1089, 0.7978846
        %v1099 = vmul.f32 %v1090, 0.7978846
        %v1100 = vmul.f32 %v1091, 0.7978846
        %v1101 = vmul.f32 %v1092, 0.7978846
        %v1102 = vmul.f32 %v1093, 0.7978846
        %v1103 = vmul.f32 %v1094, 0.7978846
        %v1104 = vmul.f32 %v1095, 0.7978846
        %v1105 = vmul.f32 %v1096, 0.7978846
        %v1106 = vtanh.pop %v1097
        %v1107 = vtanh.pop %v1098
        %v1108 = vtanh.pop %v1099
        %v1109 = vtanh.pop %v1100
        %v1110 = vtanh.pop %v1101
        %v1111 = vtanh.pop %v1102
        %v1112 = vtanh.pop %v1103
        %v1113 = vtanh.pop %v1104
        %v1114 = vtanh.pop %v1105
        %v1115 = vadd.f32 %v1106, 1.0
        %v1116 = vadd.f32 %v1107, 1.0
        %v1117 = vadd.f32 %v1108, 1.0
        %v1118 = vadd.f32 %v1109, 1.0
        %v1119 = vadd.f32 %v1110, 1.0
        %v1120 = vadd.f32 %v1111, 1.0
        %v1121 = vadd.f32 %v1112, 1.0
        %v1122 = vadd.f32 %v1113, 1.0
        %v1123 = vadd.f32 %v1114, 1.0
        %v1124 = vmul.f32 %v1115, 0.5
        %v1125 = vmul.f32 %v1116, 0.5
        %v1126 = vmul.f32 %v1117, 0.5
        %v1127 = vmul.f32 %v1118, 0.5
        %v1128 = vmul.f32 %v1119, 0.5
        %v1129 = vmul.f32 %v1120, 0.5
        %v1130 = vmul.f32 %v1121, 0.5
        %v1131 = vmul.f32 %v1122, 0.5
        %v1132 = vmul.f32 %v1123, 0.5
        %v1133 = vmul.f32 %v1052, %v1124
        %v1134 = vmul.f32 %v1053, %v1125
        %v1135 = vmul.f32 %v1054, %v1126
        %v1136 = vmul.f32 %v1055, %v1127
        %v1137 = vmul.f32 %v1056, %v1128
        %v1138 = vmul.f32 %v1057, %v1129
        %v1139 = vmul.f32 %v1058, %v1130
        %v1140 = vmul.f32 %v1059, %v1131
        %v1141 = vmul.f32 %v1060, %v1132
        %1142 = vst.msk [vmem:[#allocation2] sm:$0xff] %vm911, %v1133
        %1143 = vst.msk [vmem:[#allocation2 + $0x8] sm:$0xff] %vm911, %v1134
        %1144 = vst.msk [vmem:[#allocation2 + $0x10] sm:$0xff] %vm911, %v1135
        %1145 = vst.msk [vmem:[#allocation2 + $0x18] sm:$0xff] %vm911, %v1136
        %1146 = vst.msk [vmem:[#allocation2 + $0x20] sm:$0xff] %vm911, %v1137
        %1147 = vst.msk [vmem:[#allocation2 + $0x28] sm:$0xff] %vm911, %v1138
        %1148 = vst.msk [vmem:[#allocation2 + $0x30] sm:$0xff] %vm911, %v1139
        %1149 = vst.msk [vmem:[#allocation2 + $0x38] sm:$0xff] %vm911, %v1140
        %1150 = vst.msk [vmem:[#allocation2 + $0x40] sm:$0x1] %vm936, %v1141
        %v1151 = vld [vmem:[#allocation2] ss:$2 sm:$0xff]
        %s1152 = scalar_lea.vmem [#allocation2], 16
        %v1153 = vld [vmem:[%s1152] ss:$2 sm:$0xff]
        %s1154 = scalar_lea.vmem [#allocation2], 32
        %v1155 = vld [vmem:[%s1154] ss:$2 sm:$0xff]
        %s1156 = scalar_lea.vmem [#allocation2], 48
        %v1157 = vld [vmem:[%s1156] ss:$2 sm:$0xff]
        %s1158 = scalar_lea.vmem [#allocation2], 1
        %v1159 = vld [vmem:[%s1158] ss:$2 sm:$0xff]
        %s1160 = scalar_lea.vmem [#allocation2], 17
        %v1161 = vld [vmem:[%s1160] ss:$2 sm:$0xff]
        %s1162 = scalar_lea.vmem [#allocation2], 33
        %v1163 = vld [vmem:[%s1162] ss:$2 sm:$0xff]
        %s1164 = scalar_lea.vmem [#allocation2], 49
        %v1165 = vld [vmem:[%s1164] ss:$2 sm:$0xff]
        %s1166 = scalar_lea.vmem [#allocation2], 2
        %v1167 = vld [vmem:[%s1166] ss:$2 sm:$0xff]
        %s1168 = scalar_lea.vmem [#allocation2], 18
        %v1169 = vld [vmem:[%s1168] ss:$2 sm:$0xff]
        %s1170 = scalar_lea.vmem [#allocation2], 34
        %v1171 = vld [vmem:[%s1170] ss:$2 sm:$0xff]
        %s1172 = scalar_lea.vmem [#allocation2], 50
        %v1173 = vld [vmem:[%s1172] ss:$2 sm:$0xff]
        %1178 = vrot.lane.b32.xlu0 %v1159, 32
        %v1179 = vpop.permute.xlu0 %1178
        %1180 = vrot.lane.b32.xlu0 %v1161, 32
        %v1181 = vpop.permute.xlu0 %1180
        %1182 = vrot.lane.b32.xlu0 %v1163, 32
        %v1183 = vpop.permute.xlu0 %1182
        %1184 = vrot.lane.b32.xlu0 %v1165, 32
        %v1185 = vpop.permute.xlu0 %1184
        %1194 = vrot.lane.b32.xlu0 %v1167, 64
        %v1195 = vpop.permute.xlu0 %1194
        %1196 = vrot.lane.b32.xlu0 %v1169, 64
        %v1197 = vpop.permute.xlu0 %1196
        %1198 = vrot.lane.b32.xlu0 %v1171, 64
        %v1199 = vpop.permute.xlu0 %1198
        %1200 = vrot.lane.b32.xlu0 %v1173, 64
        %v1201 = vpop.permute.xlu0 %1200
        %v1206 = vsel %vm911, %v1151, %v1179
        %v1207 = vsel %vm911, %v1153, %v1181
        %v1208 = vsel %vm911, %v1155, %v1183
        %v1209 = vsel %vm911, %v1157, %v1185
        %vm1210 = vcmask 523264
        %v1211 = vsel %vm1210, %v1206, %v1195
        %v1212 = vsel %vm1210, %v1207, %v1197
        %v1213 = vsel %vm1210, %v1208, %v1199
        %v1214 = vsel %vm1210, %v1209, %v1201
        %v1215 = vld [vmem:[%s4] sm:$0xff]
        %v1216 = vld [vmem:[%s4 + $0x8] sm:$0xff]
        %v1217 = vld [vmem:[%s4 + $0x10] sm:$0xff]
        %v1218 = vld [vmem:[%s4 + $0x18] sm:$0xff]
        %v1219 = vld [vmem:[%s4 + $0x20] sm:$0xff]
        %v1220 = vld [vmem:[%s4 + $0x28] sm:$0xff]
        %v1221 = vld [vmem:[%s4 + $0x30] sm:$0xff]
        %v1222 = vld [vmem:[%s4 + $0x38] sm:$0xff]
        %v1223 = vld [vmem:[%s4 + $0x40] sm:$0xff]
        %v1224 = vld [vmem:[%s4 + $0x48] sm:$0xff]
        %v1225 = vld [vmem:[%s4 + $0x50] sm:$0xff]
        %v1226 = vld [vmem:[%s4 + $0x58] sm:$0xff]
        %vm1227 = vcmask 785408
        %v1229 = vsel %vm1227, %v1211, 0
        %v1232 = vsel %vm1227, %v1212, 0
        %v1235 = vsel %vm1227, %v1213, 0
        %v1238 = vsel %vm1227, %v1214, 0
        %1240 = vmatprep.subr.mxu0 0.0
        %1241 = vmatpush1.msra.mxu0 %v1215
        %1242 = vmatprep.subr.mxu0 0.0
        %1243 = vmatpush1.msra.mxu0 %v1216
        %1244 = vmatprep.subr.mxu0 0.0
        %1245 = vmatpush1.msra.mxu0 %v1217
        %1246 = vmatprep.subr.mxu0 0.0
        %1247 = vmatpush1.msra.mxu0 %v1218
        %1248 = vmatprep.subr.mxu0 0.0
        %1249 = vmatpush1.msra.mxu0 %v1219
        %1250 = vmatprep.subr.mxu0 0.0
        %1251 = vmatpush1.msra.mxu0 %v1220
        %1252 = vmatprep.subr.mxu0 0.0
        %1253 = vmatpush1.msra.mxu0 %v1221
        %1254 = vmatprep.subr.mxu0 0.0
        %1255 = vmatpush1.msra.mxu0 %v1222
        %1256 = vmatprep.subr.mxu0 0.0
        %1257 = vmatpush1.msra.mxu0 %v1223
        %1258 = vmatprep.subr.mxu0 0.0
        %1259 = vmatpush1.msra.mxu0 %v1224
        %1260 = vmatprep.subr.mxu0 0.0
        %1261 = vmatpush1.msra.mxu0 %v1225
        %1262 = vmatprep.subr.mxu0 0.0
        %1263 = vmatpush1.msra.mxu0 %v1226
        %1264 = vmatprep.subr.mxu0 0.0
        %1265 = vmatpush1.msra.mxu0 0.0
        %1266 = vmatprep.subr.mxu0 0.0
        %1267 = vmatpush1.msra.mxu0 0.0
        %1268 = vmatprep.subr.mxu0 0.0
        %1269 = vmatpush1.msra.mxu0 0.0
        %1270 = vmatprep.subr.mxu0 0.0
        %1271 = vmatpush1.msra.mxu0 0.0
        %1272 = vmatprep.subr.mxu0 0.0
        %1273 = vmatpush1.msra.mxu0 0.0
        %1274 = vmatprep.subr.mxu0 0.0
        %1275 = vmatpush1.msra.mxu0 0.0
        %1276 = vmatprep.subr.mxu0 0.0
        %1277 = vmatpush1.msra.mxu0 0.0
        %1278 = vmatprep.subr.mxu0 0.0
        %1279 = vmatpush1.msra.mxu0 0.0
        %1280 = vmatprep.subr.mxu0 0.0
        %1281 = vmatpush1.msra.mxu0 0.0
        %1282 = vmatprep.subr.mxu0 0.0
        %1283 = vmatpush1.msra.mxu0 0.0
        %1284 = vmatprep.subr.mxu0 0.0
        %1285 = vmatpush1.msra.mxu0 0.0
        %1286 = vmatprep.subr.mxu0 0.0
        %1287 = vmatpush1.msra.mxu0 0.0
        %1288 = vmatprep.subr.mxu0 0.0
        %1289 = vmatpush1.msra.mxu0 0.0
        %1290 = vmatprep.subr.mxu0 0.0
        %1291 = vmatpush1.msra.mxu0 0.0
        %1292 = vmatprep.subr.mxu0 0.0
        %1293 = vmatpush1.msra.mxu0 0.0
        %1294 = vmatprep.subr.mxu0 0.0
        %1295 = vmatpush1.msra.mxu0 0.0
        %1296 = vmatprep.subr.mxu0 0.0
        %1297 = vmatpush1.msra.mxu0 0.0
        %1298 = vmatprep.subr.mxu0 0.0
        %1299 = vmatpush1.msra.mxu0 0.0
        %1300 = vmatprep.subr.mxu0 0.0
        %1301 = vmatpush1.msra.mxu0 0.0
        %1302 = vmatprep.subr.mxu0 0.0
        %1303 = vmatpush1.msra.mxu0 0.0
        %1304 = vmatprep.mubr.f32.mxu0 0.0
        %1305 = vmatmul.mubr.f32.gmra.mrb[0].mxu0 %v1229
        %v1306 = vpop.f32.mrb[0].mxu0
        %v1307 = vadd.f32 0.0, %v1306
        %v1308 = vpop.f32.mrb[0].mxu0
        %1309 = vmatprep.mubr.f32.mxu0 0.0
        %1310 = vmatmul.mubr.f32.gmra.mrb[0].mxu0 %v1232
        %v1311 = vpop.f32.mrb[0].mxu0
        %v1312 = vadd.f32 0.0, %v1311
        %v1313 = vpop.f32.mrb[0].mxu0
        %1314 = vmatprep.mubr.f32.mxu0 0.0
        %1315 = vmatmul.mubr.f32.gmra.mrb[0].mxu0 %v1235
        %v1316 = vpop.f32.mrb[0].mxu0
        %v1317 = vadd.f32 0.0, %v1316
        %v1318 = vpop.f32.mrb[0].mxu0
        %1319 = vmatprep.mubr.f32.mxu0 0.0
        %1320 = vmatmul.mubr.f32.gmra.mrb[0].mxu0 %v1238
        %v1321 = vpop.f32.mrb[0].mxu0
        %v1322 = vadd.f32 0.0, %v1321
        %v1323 = vpop.f32.mrb[0].mxu0
        %1324 = vdwg.mxu0
        %v1325 = vld [vmem:[#allocation9] sm:$0x1]
        %v1326 = vld [vmem:[#allocation11] sm:$0x1]
        %v1327 = vsel %vm911, %v1307, 0.0
        %1328 = vadd.xlane.f32.xlu0 %v1327
        %v1329 = vpop.xlane.xlu0 %1328
        %v1330 = vsel %vm911, %v1312, 0.0
        %1331 = vadd.xlane.f32.xlu0 %v1330
        %v1332 = vpop.xlane.xlu0 %1331
        %v1333 = vsel %vm911, %v1317, 0.0
        %1334 = vadd.xlane.f32.xlu0 %v1333
        %v1335 = vpop.xlane.xlu0 %1334
        %v1336 = vsel %vm911, %v1322, 0.0
        %1337 = vadd.xlane.f32.xlu0 %v1336
        %v1338 = vpop.xlane.xlu0 %1337
        %v1339 = vmul.f32 %v1329, %v940
        %v1340 = vmul.f32 %v1332, %v940
        %v1341 = vmul.f32 %v1335, %v940
        %v1342 = vmul.f32 %v1338, %v940
        %v1343 = vsub.f32 %v1307, %v1339
        %v1344 = vsub.f32 %v1312, %v1340
        %v1345 = vsub.f32 %v1317, %v1341
        %v1346 = vsub.f32 %v1322, %v1342
        %v1347 = vmul.f32 %v1343, %v1343
        %v1348 = vmul.f32 %v1344, %v1344
        %v1349 = vmul.f32 %v1345, %v1345
        %v1350 = vmul.f32 %v1346, %v1346
        %v1351 = vsel %vm911, %v1347, 0.0
        %1352 = vadd.xlane.f32.xlu0 %v1351
        %v1353 = vpop.xlane.xlu0 %1352
        %v1354 = vsel %vm911, %v1348, 0.0
        %1355 = vadd.xlane.f32.xlu0 %v1354
        %v1356 = vpop.xlane.xlu0 %1355
        %v1357 = vsel %vm911, %v1349, 0.0
        %1358 = vadd.xlane.f32.xlu0 %v1357
        %v1359 = vpop.xlane.xlu0 %1358
        %v1360 = vsel %vm911, %v1350, 0.0
        %1361 = vadd.xlane.f32.xlu0 %v1360
        %v1362 = vpop.xlane.xlu0 %1361
        %v1363 = vmul.f32 %v1353, %v940
        %v1364 = vmul.f32 %v1356, %v940
        %v1365 = vmul.f32 %v1359, %v940
        %v1366 = vmul.f32 %v1362, %v940
        %v1367 = vadd.f32 %v1363, 1e-05
        %v1368 = vadd.f32 %v1364, 1e-05
        %v1369 = vadd.f32 %v1365, 1e-05
        %v1370 = vadd.f32 %v1366, 1e-05
        %v1371 = vrsqrt.pop %v1367
        %v1372 = vrsqrt.pop %v1368
        %v1373 = vrsqrt.pop %v1369
        %v1374 = vrsqrt.pop %v1370
        %v1375 = vmul.f32 %v1343, %v1371
        %v1376 = vmul.f32 %v1344, %v1372
        %v1377 = vmul.f32 %v1345, %v1373
        %v1378 = vmul.f32 %v1346, %v1374
        %v1380 = vlaneseq
        %v1381 = vshrl.u32 %v1380, 7
        %v1382 = vsub.s32 0, %v1381
        %v1383 = vrot.slane %v1325, %v1382
        %v1385 = vmul.f32 %v1375, %v1383
        %v1386 = vmul.f32 %v1376, %v1383
        %v1387 = vmul.f32 %v1377, %v1383
        %v1388 = vmul.f32 %v1378, %v1383
        %v1390 = vlaneseq
        %v1391 = vshrl.u32 %v1390, 7
        %v1392 = vsub.s32 0, %v1391
        %v1393 = vrot.slane %v1326, %v1392
        %v1395 = vadd.f32 %v1385, %v1393
        %v1396 = vadd.f32 %v1386, %v1393
        %v1397 = vadd.f32 %v1387, %v1393
        %v1398 = vadd.f32 %v1388, %v1393
        %v1399 = vmul.f32 %v1395, %v1395
        %v1400 = vmul.f32 %v1396, %v1396
        %v1401 = vmul.f32 %v1397, %v1397
        %v1402 = vmul.f32 %v1398, %v1398
        %v1403 = vmul.f32 %v1395, %v1399
        %v1404 = vmul.f32 %v1396, %v1400
        %v1405 = vmul.f32 %v1397, %v1401
        %v1406 = vmul.f32 %v1398, %v1402
        %v1407 = vmul.f32 %v1403, 0.044715
        %v1408 = vmul.f32 %v1404, 0.044715
        %v1409 = vmul.f32 %v1405, 0.044715
        %v1410 = vmul.f32 %v1406, 0.044715
        %v1411 = vadd.f32 %v1395, %v1407
        %v1412 = vadd.f32 %v1396, %v1408
        %v1413 = vadd.f32 %v1397, %v1409
        %v1414 = vadd.f32 %v1398, %v1410
        %v1415 = vmul.f32 %v1411, 0.7978846
        %v1416 = vmul.f32 %v1412, 0.7978846
        %v1417 = vmul.f32 %v1413, 0.7978846
        %v1418 = vmul.f32 %v1414, 0.7978846
        %v1419 = vtanh.pop %v1415
        %v1420 = vtanh.pop %v1416
        %v1421 = vtanh.pop %v1417
        %v1422 = vtanh.pop %v1418
        %v1423 = vadd.f32 %v1419, 1.0
        %v1424 = vadd.f32 %v1420, 1.0
        %v1425 = vadd.f32 %v1421, 1.0
        %v1426 = vadd.f32 %v1422, 1.0
        %v1427 = vmul.f32 %v1423, 0.5
        %v1428 = vmul.f32 %v1424, 0.5
        %v1429 = vmul.f32 %v1425, 0.5
        %v1430 = vmul.f32 %v1426, 0.5
        %v1431 = vmul.f32 %v1395, %v1427
        %v1432 = vmul.f32 %v1396, %v1428
        %v1433 = vmul.f32 %v1397, %v1429
        %v1434 = vmul.f32 %v1398, %v1430
        %1435 = vst.msk [vmem:[#allocation3] sm:$0xff] %vm911, %v1431
        %1436 = vst.msk [vmem:[#allocation3 + $0x8] sm:$0xff] %vm911, %v1432
        %1437 = vst.msk [vmem:[#allocation3 + $0x10] sm:$0xff] %vm911, %v1433
        %1438 = vst.msk [vmem:[#allocation3 + $0x18] sm:$0xff] %vm911, %v1434
        %v1439 = vld [vmem:[#allocation3] ss:$2 sm:$0xff]
        %s1440 = scalar_lea.vmem [#allocation3], 16
        %v1441 = vld [vmem:[%s1440] ss:$2 sm:$0xff]
        %s1442 = scalar_lea.vmem [#allocation3], 1
        %v1443 = vld [vmem:[%s1442] ss:$2 sm:$0xff]
        %s1444 = scalar_lea.vmem [#allocation3], 17
        %v1445 = vld [vmem:[%s1444] ss:$2 sm:$0xff]
        %1448 = vrot.lane.b32.xlu0 %v1443, 32
        %v1449 = vpop.permute.xlu0 %1448
        %1450 = vrot.lane.b32.xlu0 %v1445, 32
        %v1451 = vpop.permute.xlu0 %1450
        %v1454 = vsel %vm911, %v1439, %v1449
        %v1455 = vsel %vm911, %v1441, %v1451
        %v1456 = vld [vmem:[%s7] sm:$0xff]
        %v1457 = vld [vmem:[%s7 + $0x8] sm:$0xff]
        %v1458 = vld [vmem:[%s7 + $0x10] sm:$0xff]
        %v1459 = vld [vmem:[%s7 + $0x18] sm:$0xff]
        %v1460 = vld [vmem:[%s7 + $0x20] sm:$0xff]
        %v1461 = vld [vmem:[%s7 + $0x28] sm:$0xff]
        %v1462 = vld [vmem:[%s7 + $0x30] sm:$0xff]
        %v1463 = vld [vmem:[%s7 + $0x38] sm:$0xff]
        %v1465 = vsel %vm1210, %v1454, 0
        %v1468 = vsel %vm1210, %v1455, 0
        %1470 = vmatprep.subr.mxu0 0.0
        %1471 = vmatpush1.msra.mxu0 %v1456
        %1472 = vmatprep.subr.mxu0 0.0
        %1473 = vmatpush1.msra.mxu0 %v1457
        %1474 = vmatprep.subr.mxu0 0.0
        %1475 = vmatpush1.msra.mxu0 %v1458
        %1476 = vmatprep.subr.mxu0 0.0
        %1477 = vmatpush1.msra.mxu0 %v1459
        %1478 = vmatprep.subr.mxu0 0.0
        %1479 = vmatpush1.msra.mxu0 %v1460
        %1480 = vmatprep.subr.mxu0 0.0
        %1481 = vmatpush1.msra.mxu0 %v1461
        %1482 = vmatprep.subr.mxu0 0.0
        %1483 = vmatpush1.msra.mxu0 %v1462
        %1484 = vmatprep.subr.mxu0 0.0
        %1485 = vmatpush1.msra.mxu0 %v1463
        %1486 = vmatprep.subr.mxu0 0.0
        %1487 = vmatpush1.msra.mxu0 0.0
        %1488 = vmatprep.subr.mxu0 0.0
        %1489 = vmatpush1.msra.mxu0 0.0
        %1490 = vmatprep.subr.mxu0 0.0
        %1491 = vmatpush1.msra.mxu0 0.0
        %1492 = vmatprep.subr.mxu0 0.0
        %1493 = vmatpush1.msra.mxu0 0.0
        %1494 = vmatprep.subr.mxu0 0.0
        %1495 = vmatpush1.msra.mxu0 0.0
        %1496 = vmatprep.subr.mxu0 0.0
        %1497 = vmatpush1.msra.mxu0 0.0
        %1498 = vmatprep.subr.mxu0 0.0
        %1499 = vmatpush1.msra.mxu0 0.0
        %1500 = vmatprep.subr.mxu0 0.0
        %1501 = vmatpush1.msra.mxu0 0.0
        %1502 = vmatprep.subr.mxu0 0.0
        %1503 = vmatpush1.msra.mxu0 0.0
        %1504 = vmatprep.subr.mxu0 0.0
        %1505 = vmatpush1.msra.mxu0 0.0
        %1506 = vmatprep.subr.mxu0 0.0
        %1507 = vmatpush1.msra.mxu0 0.0
        %1508 = vmatprep.subr.mxu0 0.0
        %1509 = vmatpush1.msra.mxu0 0.0
        %1510 = vmatprep.subr.mxu0 0.0
        %1511 = vmatpush1.msra.mxu0 0.0
        %1512 = vmatprep.subr.mxu0 0.0
        %1513 = vmatpush1.msra.mxu0 0.0
        %1514 = vmatprep.subr.mxu0 0.0
        %1515 = vmatpush1.msra.mxu0 0.0
        %1516 = vmatprep.subr.mxu0 0.0
        %1517 = vmatpush1.msra.mxu0 0.0
        %1518 = vmatprep.subr.mxu0 0.0
        %1519 = vmatpush1.msra.mxu0 0.0
        %1520 = vmatprep.subr.mxu0 0.0
        %1521 = vmatpush1.msra.mxu0 0.0
        %1522 = vmatprep.subr.mxu0 0.0
        %1523 = vmatpush1.msra.mxu0 0.0
        %1524 = vmatprep.subr.mxu0 0.0
        %1525 = vmatpush1.msra.mxu0 0.0
        %1526 = vmatprep.subr.mxu0 0.0
        %1527 = vmatpush1.msra.mxu0 0.0
        %1528 = vmatprep.subr.mxu0 0.0
        %1529 = vmatpush1.msra.mxu0 0.0
        %1530 = vmatprep.subr.mxu0 0.0
        %1531 = vmatpush1.msra.mxu0 0.0
        %1532 = vmatprep.subr.mxu0 0.0
        %1533 = vmatpush1.msra.mxu0 0.0
        %1534 = vmatprep.mubr.f32.mxu0 0.0
        %1535 = vmatmul.mubr.f32.gmra.mrb[0].mxu0 %v1465
        %v1536 = vpop.f32.mrb[0].mxu0
        %v1537 = vadd.f32 0.0, %v1536
        %v1538 = vpop.f32.mrb[0].mxu0
        %1539 = vmatprep.mubr.f32.mxu0 0.0
        %1540 = vmatmul.mubr.f32.gmra.mrb[0].mxu0 %v1468
        %v1541 = vpop.f32.mrb[0].mxu0
        %v1542 = vadd.f32 0.0, %v1541
        %v1543 = vpop.f32.mrb[0].mxu0
        %1544 = vdwg.mxu0
        %v1545 = vld [vmem:[#allocation12] sm:$0x1]
        %v1546 = vld [vmem:[#allocation14] sm:$0x1]
        %v1547 = vsel %vm911, %v1537, 0.0
        %1548 = vadd.xlane.f32.xlu0 %v1547
        %v1549 = vpop.xlane.xlu0 %1548
        %v1550 = vsel %vm911, %v1542, 0.0
        %1551 = vadd.xlane.f32.xlu0 %v1550
        %v1552 = vpop.xlane.xlu0 %1551
        %v1553 = vmul.f32 %v1549, %v940
        %v1554 = vmul.f32 %v1552, %v940
        %v1555 = vsub.f32 %v1537, %v1553
        %v1556 = vsub.f32 %v1542, %v1554
        %v1557 = vmul.f32 %v1555, %v1555
        %v1558 = vmul.f32 %v1556, %v1556
        %v1559 = vsel %vm911, %v1557, 0.0
        %1560 = vadd.xlane.f32.xlu0 %v1559
        %v1561 = vpop.xlane.xlu0 %1560
        %v1562 = vsel %vm911, %v1558, 0.0
        %1563 = vadd.xlane.f32.xlu0 %v1562
        %v1564 = vpop.xlane.xlu0 %1563
        %v1565 = vmul.f32 %v1561, %v940
        %v1566 = vmul.f32 %v1564, %v940
        %v1567 = vadd.f32 %v1565, 1e-05
        %v1568 = vadd.f32 %v1566, 1e-05
        %v1569 = vrsqrt.pop %v1567
        %v1570 = vrsqrt.pop %v1568
        %v1571 = vmul.f32 %v1555, %v1569
        %v1572 = vmul.f32 %v1556, %v1570
        %v1574 = vlaneseq
        %v1575 = vshrl.u32 %v1574, 7
        %v1576 = vsub.s32 0, %v1575
        %v1577 = vrot.slane %v1545, %v1576
        %v1579 = vmul.f32 %v1571, %v1577
        %v1580 = vmul.f32 %v1572, %v1577
        %v1582 = vlaneseq
        %v1583 = vshrl.u32 %v1582, 7
        %v1584 = vsub.s32 0, %v1583
        %v1585 = vrot.slane %v1546, %v1584
        %v1587 = vadd.f32 %v1579, %v1585
        %v1588 = vadd.f32 %v1580, %v1585
        %v1589 = vmul.f32 %v1587, %v1587
        %v1590 = vmul.f32 %v1588, %v1588
        %v1591 = vmul.f32 %v1587, %v1589
        %v1592 = vmul.f32 %v1588, %v1590
        %v1593 = vmul.f32 %v1591, 0.044715
        %v1594 = vmul.f32 %v1592, 0.044715
        %v1595 = vadd.f32 %v1587, %v1593
        %v1596 = vadd.f32 %v1588, %v1594
        %v1597 = vmul.f32 %v1595, 0.7978846
        %v1598 = vmul.f32 %v1596, 0.7978846
        %v1599 = vtanh.pop %v1597
        %v1600 = vtanh.pop %v1598
        %v1601 = vadd.f32 %v1599, 1.0
        %v1602 = vadd.f32 %v1600, 1.0
        %v1603 = vmul.f32 %v1601, 0.5
        %v1604 = vmul.f32 %v1602, 0.5
        %v1605 = vmul.f32 %v1587, %v1603
        %v1606 = vmul.f32 %v1588, %v1604
        %v1607 = vld [vmem:[#allocation15] sm:$0x1]
        %v1608 = vld [vmem:[#allocation17] sm:$0x1]
        %v1609 = vsel %vm911, %v1605, 0.0
        %1610 = vadd.xlane.f32.xlu0 %v1609
        %v1611 = vpop.xlane.xlu0 %1610
        %v1612 = vsel %vm911, %v1606, 0.0
        %1613 = vadd.xlane.f32.xlu0 %v1612
        %v1614 = vpop.xlane.xlu0 %1613
        %v1615 = vmul.f32 %v1611, %v940
        %v1616 = vmul.f32 %v1614, %v940
        %v1617 = vsub.f32 %v1605, %v1615
        %v1618 = vsub.f32 %v1606, %v1616
        %v1619 = vmul.f32 %v1617, %v1617
        %v1620 = vmul.f32 %v1618, %v1618
        %v1621 = vsel %vm911, %v1619, 0.0
        %1622 = vadd.xlane.f32.xlu0 %v1621
        %v1623 = vpop.xlane.xlu0 %1622
        %v1624 = vsel %vm911, %v1620, 0.0
        %1625 = vadd.xlane.f32.xlu0 %v1624
        %v1626 = vpop.xlane.xlu0 %1625
        %v1627 = vmul.f32 %v1623, %v940
        %v1628 = vmul.f32 %v1626, %v940
        %v1629 = vadd.f32 %v1627, 1e-05
        %v1630 = vadd.f32 %v1628, 1e-05
        %v1631 = vrsqrt.pop %v1629
        %v1632 = vrsqrt.pop %v1630
        %v1633 = vmul.f32 %v1617, %v1631
        %v1634 = vmul.f32 %v1618, %v1632
        %v1636 = vlaneseq
        %v1637 = vshrl.u32 %v1636, 7
        %v1638 = vsub.s32 0, %v1637
        %v1639 = vrot.slane %v1607, %v1638
        %v1641 = vmul.f32 %v1633, %v1639
        %v1642 = vmul.f32 %v1634, %v1639
        %v1644 = vlaneseq
        %v1645 = vshrl.u32 %v1644, 7
        %v1646 = vsub.s32 0, %v1645
        %v1647 = vrot.slane %v1608, %v1646
        %v1649 = vadd.f32 %v1641, %v1647
        %v1650 = vadd.f32 %v1642, %v1647
        %v1651 = vpack.c.bf16 %v1650, %v1649
        %v1652 = vld [vmem:[#allocation18] sm:$0xf]
        %v1653 = vld [vmem:[#allocation18 + $0x4] sm:$0xf]
        %v1654 = vld [vmem:[#allocation18 + $0x8] sm:$0xf]
        %v1655 = vld [vmem:[#allocation18 + $0xc] sm:$0xf]
        %v1656 = vld [vmem:[#allocation20] sm:$0x1]
        %v1658 = vlaneseq
        %v1659 = vshrl.u32 %v1658, 7
        %v1660 = vsub.s32 0, %v1659
        %v1661 = vrot.slane %v1656, %v1660
        %v1667 = vunpack.c.l.b16 %v1652
        %v1668 = vunpack.c.l.b16 %v1653
        %v1669 = vunpack.c.l.b16 %v1654
        %v1670 = vunpack.c.l.b16 %v1655
        %v1671 = vpack.c.b16 %v1668, %v1667
        %v1672 = vpack.c.b16 %v1670, %v1669
        %v1676 = vsel %vm911, %v1651, 0
        %1678 = vmatprep.subr.bf16.mxu0 0
        %1679 = vmatpush1.bf16.msra.mxu0 %v1671
        %1680 = vmatprep.subr.bf16.mxu0 0
        %1681 = vmatpush1.bf16.msra.mxu0 %v1672
        %1682 = vmatprep.subr.bf16.mxu0 0
        %1683 = vmatpush1.bf16.msra.mxu0 0
        %1684 = vmatprep.subr.bf16.mxu0 0
        %1685 = vmatpush1.bf16.msra.mxu0 0
        %1686 = vmatprep.subr.bf16.mxu0 0
        %1687 = vmatpush1.bf16.msra.mxu0 0
        %1688 = vmatprep.subr.bf16.mxu0 0
        %1689 = vmatpush1.bf16.msra.mxu0 0
        %1690 = vmatprep.subr.bf16.mxu0 0
        %1691 = vmatpush1.bf16.msra.mxu0 0
        %1692 = vmatprep.subr.bf16.mxu0 0
        %1693 = vmatpush1.bf16.msra.mxu0 0
        %1694 = vmatprep.subr.bf16.mxu0 0
        %1695 = vmatpush1.bf16.msra.mxu0 0
        %1696 = vmatprep.subr.bf16.mxu0 0
        %1697 = vmatpush1.bf16.msra.mxu0 0
        %1698 = vmatprep.subr.bf16.mxu0 0
        %1699 = vmatpush1.bf16.msra.mxu0 0
        %1700 = vmatprep.subr.bf16.mxu0 0
        %1701 = vmatpush1.bf16.msra.mxu0 0
        %1702 = vmatprep.subr.bf16.mxu0 0
        %1703 = vmatpush1.bf16.msra.mxu0 0
        %1704 = vmatprep.subr.bf16.mxu0 0
        %1705 = vmatpush1.bf16.msra.mxu0 0
        %1706 = vmatprep.subr.bf16.mxu0 0
        %1707 = vmatpush1.bf16.msra.mxu0 0
        %1708 = vmatprep.subr.bf16.mxu0 0
        %1709 = vmatpush1.bf16.msra.mxu0 0
        %1710 = vmatprep.mubr.bf16.mxu0 0
        %1711 = vmatmul.mubr.bf16.gmra.mrb[0].mxu0 %v1676
        %v1712 = vpop.f32.mrb[0].mxu0
        %v1713 = vadd.f32 %v1661, %v1712
        %v1714 = vpop.f32.mrb[0].mxu0
        %v1715 = vpop.f32.mrb[0].mxu0
        %v1716 = vadd.f32 %v1661, %v1715
        %v1717 = vpop.f32.mrb[0].mxu0
        %1718 = vdwg.mxu0
        %vm1721 = vcmask 1040384
        %v1722 = vrot.slane %v1713, 7
        %v1723 = vrot.slane %v1716, 7
        %v1724 = vsel %vm1721, %v1722, %v1723
        %v1727 = vsel %vm1721, 0.0, %v1722
        %v1728 = vpack.c.bf16 %v1724, %v1727
        %v1729 = vrot.slane %v1713, 1
        %v1730 = vrot.slane %v1716, 1
        %v1731 = vsel %vm710, %v1729, %v1730
        %v1734 = vsel %vm710, %v1730, 0.0
        %v1735 = vpack.c.bf16 %v1734, %v1731
        %v1736 = vld [vmem:[#allocation21] sm:$0xf]
        %v1737 = vld [vmem:[#allocation21 + $0x4] sm:$0xf]
        %v1738 = vld [vmem:[#allocation21 + $0x8] sm:$0xf]
        %v1739 = vld [vmem:[#allocation21 + $0xc] sm:$0xf]
        %v1740 = vld [vmem:[#allocation21 + $0x10] sm:$0xf]
        %v1741 = vld [vmem:[#allocation21 + $0x14] sm:$0xf]
        %v1742 = vld [vmem:[#allocation21 + $0x18] sm:$0xf]
        %v1743 = vld [vmem:[#allocation21 + $0x1c] sm:$0xf]
        %v1744 = vld [vmem:[#allocation21 + $0x20] sm:$0xf]
        %v1745 = vld [vmem:[#allocation21 + $0x24] sm:$0xf]
        %v1746 = vld [vmem:[#allocation21 + $0x28] sm:$0xf]
        %v1747 = vld [vmem:[#allocation21 + $0x2c] sm:$0xf]
        %v1748 = vld [vmem:[#allocation21 + $0x30] sm:$0xf]
        %v1749 = vld [vmem:[#allocation21 + $0x34] sm:$0xf]
        %v1750 = vld [vmem:[#allocation21 + $0x38] sm:$0xf]
        %v1751 = vld [vmem:[#allocation21 + $0x3c] sm:$0xf]
        %v1752 = vpack.c.bf16 %v1716, %v1713
        %s1753 = scalar_lea.vmem [#allocation21], 64
        %v1754 = vld [vmem:[%s1753] sm:$0xf]
        %v1755 = vld [vmem:[%s1753 + $0x4] sm:$0xf]
        %v1756 = vld [vmem:[%s1753 + $0x8] sm:$0xf]
        %v1757 = vld [vmem:[%s1753 + $0xc] sm:$0xf]
        %v1758 = vld [vmem:[%s1753 + $0x10] sm:$0xf]
        %v1759 = vld [vmem:[%s1753 + $0x14] sm:$0xf]
        %v1760 = vld [vmem:[%s1753 + $0x18] sm:$0xf]
        %v1761 = vld [vmem:[%s1753 + $0x1c] sm:$0xf]
        %v1762 = vld [vmem:[%s1753 + $0x20] sm:$0xf]
        %v1763 = vld [vmem:[%s1753 + $0x24] sm:$0xf]
        %v1764 = vld [vmem:[%s1753 + $0x28] sm:$0xf]
        %v1765 = vld [vmem:[%s1753 + $0x2c] sm:$0xf]
        %v1766 = vld [vmem:[%s1753 + $0x30] sm:$0xf]
        %v1767 = vld [vmem:[%s1753 + $0x34] sm:$0xf]
        %v1768 = vld [vmem:[%s1753 + $0x38] sm:$0xf]
        %v1769 = vld [vmem:[%s1753 + $0x3c] sm:$0xf]
        %v1786 = vunpack.c.l.b16 %v1754
        %v1787 = vunpack.c.l.b16 %v1755
        %v1788 = vunpack.c.l.b16 %v1756
        %v1789 = vunpack.c.l.b16 %v1757
        %v1790 = vunpack.c.l.b16 %v1758
        %v1791 = vunpack.c.l.b16 %v1759
        %v1792 = vunpack.c.l.b16 %v1760
        %v1793 = vunpack.c.l.b16 %v1761
        %v1794 = vunpack.c.l.b16 %v1762
        %v1795 = vunpack.c.l.b16 %v1763
        %v1796 = vunpack.c.l.b16 %v1764
        %v1797 = vunpack.c.l.b16 %v1765
        %v1798 = vunpack.c.l.b16 %v1766
        %v1799 = vunpack.c.l.b16 %v1767
        %v1800 = vunpack.c.l.b16 %v1768
        %v1801 = vunpack.c.l.b16 %v1769
        %v1802 = vpack.c.b16 %v1787, %v1786
        %v1803 = vpack.c.b16 %v1789, %v1788
        %v1804 = vpack.c.b16 %v1791, %v1790
        %v1805 = vpack.c.b16 %v1793, %v1792
        %v1806 = vpack.c.b16 %v1795, %v1794
        %v1807 = vpack.c.b16 %v1797, %v1796
        %v1808 = vpack.c.b16 %v1799, %v1798
        %v1809 = vpack.c.b16 %v1801, %v1800
        %1818 = vmatprep.subr.bf16.mxu0 0
        %1819 = vmatpush1.bf16.msra.mxu0 %v1802
        %1820 = vmatprep.subr.bf16.mxu0 0
        %1821 = vmatpush1.bf16.msra.mxu0 %v1803
        %1822 = vmatprep.subr.bf16.mxu0 0
        %1823 = vmatpush1.bf16.msra.mxu0 %v1804
        %1824 = vmatprep.subr.bf16.mxu0 0
        %1825 = vmatpush1.bf16.msra.mxu0 %v1805
        %1826 = vmatprep.subr.bf16.mxu0 0
        %1827 = vmatpush1.bf16.msra.mxu0 %v1806
        %1828 = vmatprep.subr.bf16.mxu0 0
        %1829 = vmatpush1.bf16.msra.mxu0 %v1807
        %1830 = vmatprep.subr.bf16.mxu0 0
        %1831 = vmatpush1.bf16.msra.mxu0 %v1808
        %1832 = vmatprep.subr.bf16.mxu0 0
        %1833 = vmatpush1.bf16.msra.mxu0 %v1809
        %1834 = vmatprep.subr.bf16.mxu0 0
        %1835 = vmatpush1.bf16.msra.mxu0 0
        %1836 = vmatprep.subr.bf16.mxu0 0
        %1837 = vmatpush1.bf16.msra.mxu0 0
        %1838 = vmatprep.subr.bf16.mxu0 0
        %1839 = vmatpush1.bf16.msra.mxu0 0
        %1840 = vmatprep.subr.bf16.mxu0 0
        %1841 = vmatpush1.bf16.msra.mxu0 0
        %1842 = vmatprep.subr.bf16.mxu0 0
        %1843 = vmatpush1.bf16.msra.mxu0 0
        %1844 = vmatprep.subr.bf16.mxu0 0
        %1845 = vmatpush1.bf16.msra.mxu0 0
        %1846 = vmatprep.subr.bf16.mxu0 0
        %1847 = vmatpush1.bf16.msra.mxu0 0
        %1848 = vmatprep.subr.bf16.mxu0 0
        %1849 = vmatpush1.bf16.msra.mxu0 0
        %1850 = vmatprep.mubr.bf16.mxu0 0
        %1851 = vmatmul.mubr.bf16.gmra.mrb[0].mxu0 %v1752
        %v1852 = vpop.f32.mrb[0].mxu0
        %v1853 = vadd.f32 0.0, %v1852
        %v1854 = vpop.f32.mrb[0].mxu0
        %v1855 = vpop.f32.mrb[0].mxu0
        %v1856 = vadd.f32 0.0, %v1855
        %v1857 = vpop.f32.mrb[0].mxu0
        %1858 = vdwg.mxu0
        %v1875 = vunpack.c.l.b16 %v1736
        %v1876 = vunpack.c.l.b16 %v1737
        %v1877 = vunpack.c.l.b16 %v1738
        %v1878 = vunpack.c.l.b16 %v1739
        %v1879 = vunpack.c.l.b16 %v1740
        %v1880 = vunpack.c.l.b16 %v1741
        %v1881 = vunpack.c.l.b16 %v1742
        %v1882 = vunpack.c.l.b16 %v1743
        %v1883 = vunpack.c.l.b16 %v1744
        %v1884 = vunpack.c.l.b16 %v1745
        %v1885 = vunpack.c.l.b16 %v1746
        %v1886 = vunpack.c.l.b16 %v1747
        %v1887 = vunpack.c.l.b16 %v1748
        %v1888 = vunpack.c.l.b16 %v1749
        %v1889 = vunpack.c.l.b16 %v1750
        %v1890 = vunpack.c.l.b16 %v1751
        %v1891 = vpack.c.b16 %v1876, %v1875
        %v1892 = vpack.c.b16 %v1878, %v1877
        %v1893 = vpack.c.b16 %v1880, %v1879
        %v1894 = vpack.c.b16 %v1882, %v1881
        %v1895 = vpack.c.b16 %v1884, %v1883
        %v1896 = vpack.c.b16 %v1886, %v1885
        %v1897 = vpack.c.b16 %v1888, %v1887
        %v1898 = vpack.c.b16 %v1890, %v1889
        %1907 = vmatprep.subr.bf16.mxu0 0
        %1908 = vmatpush1.bf16.msra.mxu0 %v1891
        %1909 = vmatprep.subr.bf16.mxu0 0
        %1910 = vmatpush1.bf16.msra.mxu0 %v1892
        %1911 = vmatprep.subr.bf16.mxu0 0
        %1912 = vmatpush1.bf16.msra.mxu0 %v1893
        %1913 = vmatprep.subr.bf16.mxu0 0
        %1914 = vmatpush1.bf16.msra.mxu0 %v1894
        %1915 = vmatprep.subr.bf16.mxu0 0
        %1916 = vmatpush1.bf16.msra.mxu0 %v1895
        %1917 = vmatprep.subr.bf16.mxu0 0
        %1918 = vmatpush1.bf16.msra.mxu0 %v1896
        %1919 = vmatprep.subr.bf16.mxu0 0
        %1920 = vmatpush1.bf16.msra.mxu0 %v1897
        %1921 = vmatprep.subr.bf16.mxu0 0
        %1922 = vmatpush1.bf16.msra.mxu0 %v1898
        %1923 = vmatprep.subr.bf16.mxu0 0
        %1924 = vmatpush1.bf16.msra.mxu0 0
        %1925 = vmatprep.subr.bf16.mxu0 0
        %1926 = vmatpush1.bf16.msra.mxu0 0
        %1927 = vmatprep.subr.bf16.mxu0 0
        %1928 = vmatpush1.bf16.msra.mxu0 0
        %1929 = vmatprep.subr.bf16.mxu0 0
        %1930 = vmatpush1.bf16.msra.mxu0 0
        %1931 = vmatprep.subr.bf16.mxu0 0
        %1932 = vmatpush1.bf16.msra.mxu0 0
        %1933 = vmatprep.subr.bf16.mxu0 0
        %1934 = vmatpush1.bf16.msra.mxu0 0
        %1935 = vmatprep.subr.bf16.mxu0 0
        %1936 = vmatpush1.bf16.msra.mxu0 0
        %1937 = vmatprep.subr.bf16.mxu0 0
        %1938 = vmatpush1.bf16.msra.mxu0 0
        %1939 = vmatprep.mubr.bf16.mxu0 0
        %1940 = vmatmul.mubr.bf16.gmra.mrb[0].mxu0 %v1728
        %v1941 = vpop.f32.mrb[0].mxu0
        %v1942 = vadd.f32 %v1853, %v1941
        %v1943 = vpop.f32.mrb[0].mxu0
        %v1944 = vpop.f32.mrb[0].mxu0
        %v1945 = vadd.f32 %v1856, %v1944
        %v1946 = vpop.f32.mrb[0].mxu0
        %1947 = vdwg.mxu0
        %s1948 = scalar_lea.vmem [#allocation21], 128
        %v1949 = vld [vmem:[%s1948] sm:$0xf]
        %v1950 = vld [vmem:[%s1948 + $0x4] sm:$0xf]
        %v1951 = vld [vmem:[%s1948 + $0x8] sm:$0xf]
        %v1952 = vld [vmem:[%s1948 + $0xc] sm:$0xf]
        %v1953 = vld [vmem:[%s1948 + $0x10] sm:$0xf]
        %v1954 = vld [vmem:[%s1948 + $0x14] sm:$0xf]
        %v1955 = vld [vmem:[%s1948 + $0x18] sm:$0xf]
        %v1956 = vld [vmem:[%s1948 + $0x1c] sm:$0xf]
        %v1957 = vld [vmem:[%s1948 + $0x20] sm:$0xf]
        %v1958 = vld [vmem:[%s1948 + $0x24] sm:$0xf]
        %v1959 = vld [vmem:[%s1948 + $0x28] sm:$0xf]
        %v1960 = vld [vmem:[%s1948 + $0x2c] sm:$0xf]
        %v1961 = vld [vmem:[%s1948 + $0x30] sm:$0xf]
        %v1962 = vld [vmem:[%s1948 + $0x34] sm:$0xf]
        %v1963 = vld [vmem:[%s1948 + $0x38] sm:$0xf]
        %v1964 = vld [vmem:[%s1948 + $0x3c] sm:$0xf]
        %v1981 = vunpack.c.l.b16 %v1949
        %v1982 = vunpack.c.l.b16 %v1950
        %v1983 = vunpack.c.l.b16 %v1951
        %v1984 = vunpack.c.l.b16 %v1952
        %v1985 = vunpack.c.l.b16 %v1953
        %v1986 = vunpack.c.l.b16 %v1954
        %v1987 = vunpack.c.l.b16 %v1955
        %v1988 = vunpack.c.l.b16 %v1956
        %v1989 = vunpack.c.l.b16 %v1957
        %v1990 = vunpack.c.l.b16 %v1958
        %v1991 = vunpack.c.l.b16 %v1959
        %v1992 = vunpack.c.l.b16 %v1960
        %v1993 = vunpack.c.l.b16 %v1961
        %v1994 = vunpack.c.l.b16 %v1962
        %v1995 = vunpack.c.l.b16 %v1963
        %v1996 = vunpack.c.l.b16 %v1964
        %v1997 = vpack.c.b16 %v1982, %v1981
        %v1998 = vpack.c.b16 %v1984, %v1983
        %v1999 = vpack.c.b16 %v1986, %v1985
        %v2000 = vpack.c.b16 %v1988, %v1987
        %v2001 = vpack.c.b16 %v1990, %v1989
        %v2002 = vpack.c.b16 %v1992, %v1991
        %v2003 = vpack.c.b16 %v1994, %v1993
        %v2004 = vpack.c.b16 %v1996, %v1995
        %2013 = vmatprep.subr.bf16.mxu0 0
        %2014 = vmatpush1.bf16.msra.mxu0 %v1997
        %2015 = vmatprep.subr.bf16.mxu0 0
        %2016 = vmatpush1.bf16.msra.mxu0 %v1998
        %2017 = vmatprep.subr.bf16.mxu0 0
        %2018 = vmatpush1.bf16.msra.mxu0 %v1999
        %2019 = vmatprep.subr.bf16.mxu0 0
        %2020 = vmatpush1.bf16.msra.mxu0 %v2000
        %2021 = vmatprep.subr.bf16.mxu0 0
        %2022 = vmatpush1.bf16.msra.mxu0 %v2001
        %2023 = vmatprep.subr.bf16.mxu0 0
        %2024 = vmatpush1.bf16.msra.mxu0 %v2002
        %2025 = vmatprep.subr.bf16.mxu0 0
        %2026 = vmatpush1.bf16.msra.mxu0 %v2003
        %2027 = vmatprep.subr.bf16.mxu0 0
        %2028 = vmatpush1.bf16.msra.mxu0 %v2004
        %2029 = vmatprep.subr.bf16.mxu0 0
        %2030 = vmatpush1.bf16.msra.mxu0 0
        %2031 = vmatprep.subr.bf16.mxu0 0
        %2032 = vmatpush1.bf16.msra.mxu0 0
        %2033 = vmatprep.subr.bf16.mxu0 0
        %2034 = vmatpush1.bf16.msra.mxu0 0
        %2035 = vmatprep.subr.bf16.mxu0 0
        %2036 = vmatpush1.bf16.msra.mxu0 0
        %2037 = vmatprep.subr.bf16.mxu0 0
        %2038 = vmatpush1.bf16.msra.mxu0 0
        %2039 = vmatprep.subr.bf16.mxu0 0
        %2040 = vmatpush1.bf16.msra.mxu0 0
        %2041 = vmatprep.subr.bf16.mxu0 0
        %2042 = vmatpush1.bf16.msra.mxu0 0
        %2043 = vmatprep.subr.bf16.mxu0 0
        %2044 = vmatpush1.bf16.msra.mxu0 0
        %2045 = vmatprep.mubr.bf16.mxu0 0
        %2046 = vmatmul.mubr.bf16.gmra.mrb[0].mxu0 %v1735
        %v2047 = vpop.f32.mrb[0].mxu0
        %v2048 = vadd.f32 0.0, %v2047
        %v2049 = vpop.f32.mrb[0].mxu0
        %v2050 = vpop.f32.mrb[0].mxu0
        %v2051 = vadd.f32 0.0, %v2050
        %v2052 = vpop.f32.mrb[0].mxu0
        %2053 = vdwg.mxu0
        %v2054 = vadd.f32 %v1942, %v2048
        %v2055 = vadd.f32 %v1945, %v2051
        %v2056 = vld [vmem:[#allocation23] sm:$0x1]
        %v2058 = vlaneseq
        %v2059 = vshrl.u32 %v2058, 7
        %v2060 = vsub.s32 0, %v2059
        %v2061 = vrot.slane %v2056, %v2060
        %v2063 = vadd.f32 %v2054, %v2061
        %v2064 = vadd.f32 %v2055, %v2061
        %v2065 = vmul.f32 %v2063, %v2063
        %v2066 = vmul.f32 %v2064, %v2064
        %v2067 = vmul.f32 %v2063, %v2065
        %v2068 = vmul.f32 %v2064, %v2066
        %v2069 = vmul.f32 %v2067, 0.044715
        %v2070 = vmul.f32 %v2068, 0.044715
        %v2071 = vadd.f32 %v2063, %v2069
        %v2072 = vadd.f32 %v2064, %v2070
        %v2073 = vmul.f32 %v2071, 0.7978846
        %v2074 = vmul.f32 %v2072, 0.7978846
        %v2075 = vtanh.pop %v2073
        %v2076 = vtanh.pop %v2074
        %v2077 = vadd.f32 %v2075, 1.0
        %v2078 = vadd.f32 %v2076, 1.0
        %v2079 = vmul.f32 %v2077, 0.5
        %v2080 = vmul.f32 %v2078, 0.5
        %v2081 = vmul.f32 %v2063, %v2079
        %v2082 = vmul.f32 %v2064, %v2080
        %v2083 = vadd.f32 %v1713, %v2081
        %v2084 = vadd.f32 %v1716, %v2082
        %2085 = vst [vmem:[%s690] sm:$0xff] %v2083
        %2086 = vst [vmem:[%s690 + $0x8] sm:$0xff] %v2084
        %p2087 = scmp.lt.s32.totalorder %s34, 1
        %s2088 = scalar_select %p2087, %s34, 1
        %s2089 = smul.addr %s2088, 2
        %s2090 = smul.addr %s2089, 8
        %s2091 = scalar_lea.vmem %s16, %s2090
        // Predicated region
        $region137: #{asr_forward.2} parent=83 // pred_check
          %p2092 = pneg %p393
        $region138: #{asr_forward.2} parent=83 // pred_check_branch
          %2094 = sbr.rel (%p2092) target = $region140
        $region139: #{asr_forward.2} parent=83 // pred_region
          _
        $region140: #{asr_forward.2} parent=83 // pred_fallthru
          _
      $region84: #{asr_forward.2} parent=5 // pred_fallthru
        _
      %p2095 = scmp.le.s32.totalorder 2, %s29
      // Predicated region
      $region141: #{asr_forward.2} parent=5 // pred_check
        %p2096 = pneg %p2095
      $region142: #{asr_forward.2} parent=5 // pred_check_branch
        %2098 = sbr.rel (%p2096) target = $region144
      $region143: #{asr_forward.2} parent=5 // pred_region
        %s2099 = ssub.s32 %s29, 2
        // Predicated region
        $region145: #{asr_forward.2} parent=143 // pred_check
          %p2100 = pneg %p399
        $region146: #{asr_forward.2} parent=143 // pred_check_branch
          %2102 = sbr.rel (%p2100) target = $region148
        $region147: #{asr_forward.2} parent=143 // pred_region
          %p2103 = scmp.lt.s32.totalorder %s35, 1
          %s2104 = scalar_select %p2103, %s35, 1
          %s2105 = smul.addr %s2104, 2
          %s2106 = smul.addr %s2105, 8
          %s2107 = scalar_lea.vmem %s16, %s2106
        $region148: #{asr_forward.2} parent=143 // pred_fallthru
          _
      $region144: #{asr_forward.2} parent=5 // pred_fallthru
        _
    $region6: #{asr_forward.2} parent=1 // loop_footer
      %s33 = sadd.s32 1, %s29
    $region7: #{asr_forward.2} parent=1 // loop_footer_branch
      %28 = sbr.rel target = $region3
    $region8: #{asr_forward.2} parent=1 // loop_exit
      _
    %2108 = vsyncpa [#allocation5], 1
    %s2109 = scalar_lea.sflag [#allocation5], 1
    %2110 = vsyncpa %s2109, 1
    %2111 = vsyncpa [#allocation7], 1
    %2112 = vsyncpa [#allocation10], 1
    %2113 = vsyncpa [#allocation13], 1
    %2114 = vsyncpa [#allocation16], 1
    %2115 = vsyncpa [#allocation19], 1
    %2116 = vsyncpa [#allocation22], 1

// kernel: asr_forward.3
$region0: #{asr_forward.3}
  #allocation0 [shape = 'u32[]', space=smem, size = 0x4, offset = 0x4, fixed_abs, tag = 'smem constant byte address 0x4 - core index']
  #allocation1 [shape = 'u32[144,128]{1,0:T(1,128)}', space=vmem, size = 0x12000, scoped, tag = 'internal scratch']
  #allocation2 [shape = 'f32[16,128]{1,0:T(8,128)}', space=vmem, size = 0x2000, scoped, tag = 'scratch operand']
  #allocation3 [shape = 'f32[16,128]{1,0:T(8,128)}', space=vmem, size = 0x2000, scoped, tag = 'scratch operand']
  %s0 = inlined_call_operand.vmem [shape: f32[2,16,128], index: 0, kind: input, shape index: {}]
  %s1 = inlined_call_operand.vmem [shape: f32[2,1,128], index: 1, kind: input, shape index: {}]
  %s2 = inlined_call_operand.hbm [shape: f32[2,1,128], index: 2, kind: input, shape index: {}]
  %s3 = inlined_call_operand.vmem [shape: bf16[2,128,384], index: 3, kind: input, shape index: {}]
  %s4 = inlined_call_operand.vmem [shape: f32[2,1,384], index: 4, kind: input, shape index: {}]
  %s5 = inlined_call_operand.vmem [shape: bf16[2,128,128], index: 5, kind: input, shape index: {}]
  %s6 = inlined_call_operand.hbm [shape: f32[2,1,128], index: 6, kind: input, shape index: {}]
  %s7 = inlined_call_operand.hbm [shape: f32[2,1,128], index: 7, kind: input, shape index: {}]
  %s8 = inlined_call_operand.hbm [shape: f32[2,1,128], index: 8, kind: input, shape index: {}]
  %s9 = inlined_call_operand.vmem [shape: bf16[2,128,256], index: 9, kind: input, shape index: {}]
  %s10 = inlined_call_operand.hbm [shape: f32[2,1,256], index: 10, kind: input, shape index: {}]
  %s11 = inlined_call_operand.vmem [shape: bf16[2,256,128], index: 11, kind: input, shape index: {}]
  %s12 = inlined_call_operand.hbm [shape: f32[2,1,128], index: 12, kind: input, shape index: {}]
  %s13 = inlined_call_operand.hbm [shape: f32[1,128], index: 13, kind: input, shape index: {}]
  %s14 = inlined_call_operand.hbm [shape: f32[1,128], index: 14, kind: input, shape index: {}]
  %s15 = inlined_call_operand.hbm [shape: f32[2,16,128], index: 15, kind: output, shape index: {}]
  %s16 = sld [smem:[#allocation0]]
  $region133: #{asr_forward.3} parent=0
    _
  %s18 = ssub.s32 1, %s16
  %s19 = scalar_select 0, %s18, %s16
  $region1: #{asr_forward.3} parent=0
    #allocation4 [shape = 'u8[1024]{0}', space=vmem, size = 0x400, scoped, tag = 'input window, operand 2']
    #allocation5 [shape = 's32[2]{0}', space=sflag, size = 0x8, scoped, tag = 'scoped memory for asr_forward.3']
    #allocation6 [shape = 's32[2]{0}', space=sflag, size = 0x8, scoped, tag = 'scoped memory for asr_forward.3']
    #allocation7 [shape = 'u8[1024]{0}', space=vmem, size = 0x400, scoped, tag = 'input window, operand 6']
    #allocation8 [shape = 's32[2]{0}', space=sflag, size = 0x8, scoped, tag = 'scoped memory for asr_forward.3']
    #allocation9 [shape = 'u8[1024]{0}', space=vmem, size = 0x400, scoped, tag = 'input window, operand 7']
    #allocation10 [shape = 'u8[1024]{0}', space=vmem, size = 0x400, scoped, tag = 'input window, operand 8']
    #allocation11 [shape = 's32[2]{0}', space=sflag, size = 0x8, scoped, tag = 'scoped memory for asr_forward.3']
    #allocation12 [shape = 'u8[2048]{0}', space=vmem, size = 0x800, scoped, tag = 'input window, operand 10']
    #allocation13 [shape = 'u8[1024]{0}', space=vmem, size = 0x400, scoped, tag = 'input window, operand 12']
    #allocation14 [shape = 's32[2]{0}', space=sflag, size = 0x8, scoped, tag = 'scoped memory for asr_forward.3']
    #allocation15 [shape = 'u8[512]{0}', space=vmem, size = 0x400, scoped, tag = 'input window, operand 13, single buffered']
    #allocation16 [shape = 'u8[512]{0}', space=vmem, size = 0x400, scoped, tag = 'input window, operand 14, single buffered']
    #allocation17 [shape = 's32[1]{0}', space=sflag, size = 0x4, scoped, tag = 'scoped memory for asr_forward.3']
    #allocation18 [shape = 'u8[16384]{0}', space=vmem, size = 0x4000, scoped, tag = 'output window, operand 0']
    %20 = vsyncpa [#allocation5], 0
    %s21 = scalar_lea.sflag [#allocation5], 1
    %22 = vsyncpa %s21, 0
    %23 = vsyncpa [#allocation8], 0
    %s24 = scalar_lea.sflag [#allocation8], 1
    %25 = vsyncpa %s24, 0
    %26 = vsyncpa [#allocation11], 0
    %s27 = scalar_lea.sflag [#allocation11], 1
    %28 = vsyncpa %s27, 0
    %29 = vsyncpa [#allocation14], 0
    %s30 = scalar_lea.sflag [#allocation14], 1
    %31 = vsyncpa %s30, 0
    %32 = vsyncpa [#allocation17], 0
    %33 = vsyncpa [#allocation6], 0
    %s34 = scalar_lea.sflag [#allocation6], 1
    %35 = vsyncpa %s34, 0
    loop: start=0, step=1, limit=6
    $region2: #{asr_forward.3} parent=1 // loop_pre_header
      _
    $region3: #{asr_forward.3} parent=1 // loop_header
      %s37 = sphi 0, %s41
      %p38 = scmp.ge.s32.totalorder %s37, 6
      %s44 = sphi 0, %s56
      %s45 = sphi 0, %s52
      %s46 = sphi 0, %s44
      %s47 = sphi 0, %s45
      %s48 = sphi 0, %s46
      %s49 = sphi 0, %s47
      %s59 = sphi 0, %s61
      %s62 = sphi 0, %s59
      %s63 = sphi 0, %s62
      %s79 = sphi 0, %s63
      %s85 = sphi 0, %s87
      %s88 = sphi 0, %s85
      %s89 = sphi 0, %s88
      %s105 = sphi 0, %s89
      %s111 = sphi 0, %s113
      %s114 = sphi 0, %s111
      %s115 = sphi 0, %s114
      %s131 = sphi 0, %s115
      %s137 = sphi 0, %s139
      %s140 = sphi 0, %s137
      %s141 = sphi 0, %s140
      %s157 = sphi 0, %s141
      %s163 = sphi 0, %s165
      %s166 = sphi 0, %s163
      %s167 = sphi 0, %s166
      %s183 = sphi 0, %s167
      %s189 = sphi 0, %s191
      %s192 = sphi 0, %s189
      %s193 = sphi 0, %s192
      %s209 = sphi 0, %s193
      %s215 = sphi 0, %s217
      %s218 = sphi 0, %s215
      %s219 = sphi 0, %s218
      %s235 = sphi 0, %s219
      %s241 = sphi 0, %s243
      %s244 = sphi 0, %s241
      %s245 = sphi 0, %s244
      %s261 = sphi 0, %s245
      %s267 = sphi 0, %s269
      %s270 = sphi 0, %s267
      %s271 = sphi 0, %s270
      %s287 = sphi 0, %s271
      %s293 = sphi 0, %s295
      %s296 = sphi 0, %s293
      %s297 = sphi 0, %s296
      %s313 = sphi 0, %s297
      %s319 = sphi 0, %s321
      %s322 = sphi 0, %s319
      %s323 = sphi 0, %s322
      %s339 = sphi 0, %s323
      %s345 = sphi 0, %s347
      %s348 = sphi 0, %s345
      %s349 = sphi 0, %s348
      %s365 = sphi 0, %s349
      %s371 = sphi 0, %s373
      %s374 = sphi 0, %s371
      %s375 = sphi 0, %s374
      %s391 = sphi 0, %s375
      %s395 = sphi 0, %s395
      %s397 = sphi 0, %s395
      %s398 = sphi 0, %s397
      %s412 = sphi 0, %s398
      %s416 = sphi 0, %s416
      %s418 = sphi 0, %s416
      %s419 = sphi 0, %s418
      %s433 = sphi 0, %s419
      %s439 = sphi 0, %s441
      %s442 = sphi 0, %s439
      %s443 = sphi 0, %s442
      %s459 = sphi 0, %s443
    $region4: #{asr_forward.3} parent=1 // loop_header_branch
      %40 = sbr.rel (%p38) target = $region8
    $region5: #{asr_forward.3} parent=1 // loop_body
      %s42 = ssub.s32 %s37, 1
      %s43 = ssub.s32 %s37, 2
      %s50 = sadd.s32 1, %s45
      %p51 = scmp.ge.s32.totalorder %s50, 2
      %s52 = scalar_select %p51, 0, %s50
      %s53 = sadd.s32 1, %s44
      %s54 = scalar_select %p51, %s53, %s44
      %p55 = scmp.ge.s32.totalorder %s54, 2
      %s56 = scalar_select %p55, 0, %s54
      %s57 = ssub.s32 %s44, %s56
      %p58 = scmp.eq.s32.totalorder %s57, 0
      %s60 = sadd.s32 %s59, 1
      %s61 = scalar_select %p58, %s59, %s60
      %p64 = pneg %p58
      %p65 = scmp.eq.s32.totalorder %s37, 3
      %p66 = por %p64, %p65
      %p67 = scmp.ne.s32.totalorder %s59, %s62
      %p68 = scmp.eq.s32.totalorder %s37, 0
      %p69 = por %p67, %p68
      %p70 = scmp.ne.s32.totalorder %s59, %s62
      %p71 = scmp.eq.s32.totalorder %s42, 3
      %p72 = por %p70, %p71
      %p73 = scmp.ne.s32.totalorder %s62, %s63
      %p74 = scmp.eq.s32.totalorder %s42, 0
      %p75 = por %p73, %p74
      %p76 = scmp.ne.s32.totalorder %s62, %s63
      %p77 = scmp.eq.s32.totalorder %s43, 3
      %p78 = por %p76, %p77
      %p80 = scmp.ne.s32.totalorder %s63, %s79
      %p81 = scmp.eq.s32.totalorder %s43, 0
      %p82 = por %p80, %p81
      %s83 = ssub.s32 %s45, %s52
      %p84 = scmp.eq.s32.totalorder %s83, 0
      %s86 = sadd.s32 %s85, 1
      %s87 = scalar_select %p84, %s85, %s86
      %p90 = pneg %p84
      %p91 = scmp.eq.s32.totalorder %s37, 3
      %p92 = por %p90, %p91
      %p93 = scmp.ne.s32.totalorder %s85, %s88
      %p94 = scmp.eq.s32.totalorder %s37, 0
      %p95 = por %p93, %p94
      %p96 = scmp.ne.s32.totalorder %s85, %s88
      %p97 = scmp.eq.s32.totalorder %s42, 3
      %p98 = por %p96, %p97
      %p99 = scmp.ne.s32.totalorder %s88, %s89
      %p100 = scmp.eq.s32.totalorder %s42, 0
      %p101 = por %p99, %p100
      %p102 = scmp.ne.s32.totalorder %s88, %s89
      %p103 = scmp.eq.s32.totalorder %s43, 3
      %p104 = por %p102, %p103
      %p106 = scmp.ne.s32.totalorder %s89, %s105
      %p107 = scmp.eq.s32.totalorder %s43, 0
      %p108 = por %p106, %p107
      %s109 = ssub.s32 %s45, %s52
      %p110 = scmp.eq.s32.totalorder %s109, 0
      %s112 = sadd.s32 %s111, 1
      %s113 = scalar_select %p110, %s111, %s112
      %p116 = pneg %p110
      %p117 = scmp.eq.s32.totalorder %s37, 3
      %p118 = por %p116, %p117
      %p119 = scmp.ne.s32.totalorder %s111, %s114
      %p120 = scmp.eq.s32.totalorder %s37, 0
      %p121 = por %p119, %p120
      %p122 = scmp.ne.s32.totalorder %s111, %s114
      %p123 = scmp.eq.s32.totalorder %s42, 3
      %p124 = por %p122, %p123
      %p125 = scmp.ne.s32.totalorder %s114, %s115
      %p126 = scmp.eq.s32.totalorder %s42, 0
      %p127 = por %p125, %p126
      %p128 = scmp.ne.s32.totalorder %s114, %s115
      %p129 = scmp.eq.s32.totalorder %s43, 3
      %p130 = por %p128, %p129
      %p132 = scmp.ne.s32.totalorder %s115, %s131
      %p133 = scmp.eq.s32.totalorder %s43, 0
      %p134 = por %p132, %p133
      %s135 = ssub.s32 %s45, %s52
      %p136 = scmp.eq.s32.totalorder %s135, 0
      %s138 = sadd.s32 %s137, 1
      %s139 = scalar_select %p136, %s137, %s138
      %p142 = pneg %p136
      %p143 = scmp.eq.s32.totalorder %s37, 3
      %p144 = por %p142, %p143
      %p145 = scmp.ne.s32.totalorder %s137, %s140
      %p146 = scmp.eq.s32.totalorder %s37, 0
      %p147 = por %p145, %p146
      %p148 = scmp.ne.s32.totalorder %s137, %s140
      %p149 = scmp.eq.s32.totalorder %s42, 3
      %p150 = por %p148, %p149
      %p151 = scmp.ne.s32.totalorder %s140, %s141
      %p152 = scmp.eq.s32.totalorder %s42, 0
      %p153 = por %p151, %p152
      %p154 = scmp.ne.s32.totalorder %s140, %s141
      %p155 = scmp.eq.s32.totalorder %s43, 3
      %p156 = por %p154, %p155
      %p158 = scmp.ne.s32.totalorder %s141, %s157
      %p159 = scmp.eq.s32.totalorder %s43, 0
      %p160 = por %p158, %p159
      %s161 = ssub.s32 %s45, %s52
      %p162 = scmp.eq.s32.totalorder %s161, 0
      %s164 = sadd.s32 %s163, 1
      %s165 = scalar_select %p162, %s163, %s164
      %p168 = pneg %p162
      %p169 = scmp.eq.s32.totalorder %s37, 3
      %p170 = por %p168, %p169
      %p171 = scmp.ne.s32.totalorder %s163, %s166
      %p172 = scmp.eq.s32.totalorder %s37, 0
      %p173 = por %p171, %p172
      %p174 = scmp.ne.s32.totalorder %s163, %s166
      %p175 = scmp.eq.s32.totalorder %s42, 3
      %p176 = por %p174, %p175
      %p177 = scmp.ne.s32.totalorder %s166, %s167
      %p178 = scmp.eq.s32.totalorder %s42, 0
      %p179 = por %p177, %p178
      %p180 = scmp.ne.s32.totalorder %s166, %s167
      %p181 = scmp.eq.s32.totalorder %s43, 3
      %p182 = por %p180, %p181
      %p184 = scmp.ne.s32.totalorder %s167, %s183
      %p185 = scmp.eq.s32.totalorder %s43, 0
      %p186 = por %p184, %p185
      %s187 = ssub.s32 %s45, %s52
      %p188 = scmp.eq.s32.totalorder %s187, 0
      %s190 = sadd.s32 %s189, 1
      %s191 = scalar_select %p188, %s189, %s190
      %p194 = pneg %p188
      %p195 = scmp.eq.s32.totalorder %s37, 3
      %p196 = por %p194, %p195
      %p197 = scmp.ne.s32.totalorder %s189, %s192
      %p198 = scmp.eq.s32.totalorder %s37, 0
      %p199 = por %p197, %p198
      %p200 = scmp.ne.s32.totalorder %s189, %s192
      %p201 = scmp.eq.s32.totalorder %s42, 3
      %p202 = por %p200, %p201
      %p203 = scmp.ne.s32.totalorder %s192, %s193
      %p204 = scmp.eq.s32.totalorder %s42, 0
      %p205 = por %p203, %p204
      %p206 = scmp.ne.s32.totalorder %s192, %s193
      %p207 = scmp.eq.s32.totalorder %s43, 3
      %p208 = por %p206, %p207
      %p210 = scmp.ne.s32.totalorder %s193, %s209
      %p211 = scmp.eq.s32.totalorder %s43, 0
      %p212 = por %p210, %p211
      %s213 = ssub.s32 %s45, %s52
      %p214 = scmp.eq.s32.totalorder %s213, 0
      %s216 = sadd.s32 %s215, 1
      %s217 = scalar_select %p214, %s215, %s216
      %p220 = pneg %p214
      %p221 = scmp.eq.s32.totalorder %s37, 3
      %p222 = por %p220, %p221
      %p223 = scmp.ne.s32.totalorder %s215, %s218
      %p224 = scmp.eq.s32.totalorder %s37, 0
      %p225 = por %p223, %p224
      %p226 = scmp.ne.s32.totalorder %s215, %s218
      %p227 = scmp.eq.s32.totalorder %s42, 3
      %p228 = por %p226, %p227
      %p229 = scmp.ne.s32.totalorder %s218, %s219
      %p230 = scmp.eq.s32.totalorder %s42, 0
      %p231 = por %p229, %p230
      %p232 = scmp.ne.s32.totalorder %s218, %s219
      %p233 = scmp.eq.s32.totalorder %s43, 3
      %p234 = por %p232, %p233
      %p236 = scmp.ne.s32.totalorder %s219, %s235
      %p237 = scmp.eq.s32.totalorder %s43, 0
      %p238 = por %p236, %p237
      %s239 = ssub.s32 %s45, %s52
      %p240 = scmp.eq.s32.totalorder %s239, 0
      %s242 = sadd.s32 %s241, 1
      %s243 = scalar_select %p240, %s241, %s242
      %p246 = pneg %p240
      %p247 = scmp.eq.s32.totalorder %s37, 3
      %p248 = por %p246, %p247
      %p249 = scmp.ne.s32.totalorder %s241, %s244
      %p250 = scmp.eq.s32.totalorder %s37, 0
      %p251 = por %p249, %p250
      %p252 = scmp.ne.s32.totalorder %s241, %s244
      %p253 = scmp.eq.s32.totalorder %s42, 3
      %p254 = por %p252, %p253
      %p255 = scmp.ne.s32.totalorder %s244, %s245
      %p256 = scmp.eq.s32.totalorder %s42, 0
      %p257 = por %p255, %p256
      %p258 = scmp.ne.s32.totalorder %s244, %s245
      %p259 = scmp.eq.s32.totalorder %s43, 3
      %p260 = por %p258, %p259
      %p262 = scmp.ne.s32.totalorder %s245, %s261
      %p263 = scmp.eq.s32.totalorder %s43, 0
      %p264 = por %p262, %p263
      %s265 = ssub.s32 %s45, %s52
      %p266 = scmp.eq.s32.totalorder %s265, 0
      %s268 = sadd.s32 %s267, 1
      %s269 = scalar_select %p266, %s267, %s268
      %p272 = pneg %p266
      %p273 = scmp.eq.s32.totalorder %s37, 3
      %p274 = por %p272, %p273
      %p275 = scmp.ne.s32.totalorder %s267, %s270
      %p276 = scmp.eq.s32.totalorder %s37, 0
      %p277 = por %p275, %p276
      %p278 = scmp.ne.s32.totalorder %s267, %s270
      %p279 = scmp.eq.s32.totalorder %s42, 3
      %p280 = por %p278, %p279
      %p281 = scmp.ne.s32.totalorder %s270, %s271
      %p282 = scmp.eq.s32.totalorder %s42, 0
      %p283 = por %p281, %p282
      %p284 = scmp.ne.s32.totalorder %s270, %s271
      %p285 = scmp.eq.s32.totalorder %s43, 3
      %p286 = por %p284, %p285
      %p288 = scmp.ne.s32.totalorder %s271, %s287
      %p289 = scmp.eq.s32.totalorder %s43, 0
      %p290 = por %p288, %p289
      %s291 = ssub.s32 %s45, %s52
      %p292 = scmp.eq.s32.totalorder %s291, 0
      %s294 = sadd.s32 %s293, 1
      %s295 = scalar_select %p292, %s293, %s294
      %p298 = pneg %p292
      %p299 = scmp.eq.s32.totalorder %s37, 3
      %p300 = por %p298, %p299
      %p301 = scmp.ne.s32.totalorder %s293, %s296
      %p302 = scmp.eq.s32.totalorder %s37, 0
      %p303 = por %p301, %p302
      %p304 = scmp.ne.s32.totalorder %s293, %s296
      %p305 = scmp.eq.s32.totalorder %s42, 3
      %p306 = por %p304, %p305
      %p307 = scmp.ne.s32.totalorder %s296, %s297
      %p308 = scmp.eq.s32.totalorder %s42, 0
      %p309 = por %p307, %p308
      %p310 = scmp.ne.s32.totalorder %s296, %s297
      %p311 = scmp.eq.s32.totalorder %s43, 3
      %p312 = por %p310, %p311
      %p314 = scmp.ne.s32.totalorder %s297, %s313
      %p315 = scmp.eq.s32.totalorder %s43, 0
      %p316 = por %p314, %p315
      %s317 = ssub.s32 %s45, %s52
      %p318 = scmp.eq.s32.totalorder %s317, 0
      %s320 = sadd.s32 %s319, 1
      %s321 = scalar_select %p318, %s319, %s320
      %p324 = pneg %p318
      %p325 = scmp.eq.s32.totalorder %s37, 3
      %p326 = por %p324, %p325
      %p327 = scmp.ne.s32.totalorder %s319, %s322
      %p328 = scmp.eq.s32.totalorder %s37, 0
      %p329 = por %p327, %p328
      %p330 = scmp.ne.s32.totalorder %s319, %s322
      %p331 = scmp.eq.s32.totalorder %s42, 3
      %p332 = por %p330, %p331
      %p333 = scmp.ne.s32.totalorder %s322, %s323
      %p334 = scmp.eq.s32.totalorder %s42, 0
      %p335 = por %p333, %p334
      %p336 = scmp.ne.s32.totalorder %s322, %s323
      %p337 = scmp.eq.s32.totalorder %s43, 3
      %p338 = por %p336, %p337
      %p340 = scmp.ne.s32.totalorder %s323, %s339
      %p341 = scmp.eq.s32.totalorder %s43, 0
      %p342 = por %p340, %p341
      %s343 = ssub.s32 %s45, %s52
      %p344 = scmp.eq.s32.totalorder %s343, 0
      %s346 = sadd.s32 %s345, 1
      %s347 = scalar_select %p344, %s345, %s346
      %p350 = pneg %p344
      %p351 = scmp.eq.s32.totalorder %s37, 3
      %p352 = por %p350, %p351
      %p353 = scmp.ne.s32.totalorder %s345, %s348
      %p354 = scmp.eq.s32.totalorder %s37, 0
      %p355 = por %p353, %p354
      %p356 = scmp.ne.s32.totalorder %s345, %s348
      %p357 = scmp.eq.s32.totalorder %s42, 3
      %p358 = por %p356, %p357
      %p359 = scmp.ne.s32.totalorder %s348, %s349
      %p360 = scmp.eq.s32.totalorder %s42, 0
      %p361 = por %p359, %p360
      %p362 = scmp.ne.s32.totalorder %s348, %s349
      %p363 = scmp.eq.s32.totalorder %s43, 3
      %p364 = por %p362, %p363
      %p366 = scmp.ne.s32.totalorder %s349, %s365
      %p367 = scmp.eq.s32.totalorder %s43, 0
      %p368 = por %p366, %p367
      %s369 = ssub.s32 %s45, %s52
      %p370 = scmp.eq.s32.totalorder %s369, 0
      %s372 = sadd.s32 %s371, 1
      %s373 = scalar_select %p370, %s371, %s372
      %p376 = pneg %p370
      %p377 = scmp.eq.s32.totalorder %s37, 3
      %p378 = por %p376, %p377
      %p379 = scmp.ne.s32.totalorder %s371, %s374
      %p380 = scmp.eq.s32.totalorder %s37, 0
      %p381 = por %p379, %p380
      %p382 = scmp.ne.s32.totalorder %s371, %s374
      %p383 = scmp.eq.s32.totalorder %s42, 3
      %p384 = por %p382, %p383
      %p385 = scmp.ne.s32.totalorder %s374, %s375
      %p386 = scmp.eq.s32.totalorder %s42, 0
      %p387 = por %p385, %p386
      %p388 = scmp.ne.s32.totalorder %s374, %s375
      %p389 = scmp.eq.s32.totalorder %s43, 3
      %p390 = por %p388, %p389
      %p392 = scmp.ne.s32.totalorder %s375, %s391
      %p393 = scmp.eq.s32.totalorder %s43, 0
      %p394 = por %p392, %p393
      %s396 = sadd.s32 %s395, 1
      %p399 = scmp.eq.s32.totalorder %s37, 3
      %p400 = scmp.ne.s32.totalorder %s395, %s397
      %p401 = scmp.eq.s32.totalorder %s37, 0
      %p402 = por %p400, %p401
      %p403 = scmp.ne.s32.totalorder %s395, %s397
      %p404 = scmp.eq.s32.totalorder %s42, 3
      %p405 = por %p403, %p404
      %p406 = scmp.ne.s32.totalorder %s397, %s398
      %p407 = scmp.eq.s32.totalorder %s42, 0
      %p408 = por %p406, %p407
      %p409 = scmp.ne.s32.totalorder %s397, %s398
      %p410 = scmp.eq.s32.totalorder %s43, 3
      %p411 = por %p409, %p410
      %p413 = scmp.ne.s32.totalorder %s398, %s412
      %p414 = scmp.eq.s32.totalorder %s43, 0
      %p415 = por %p413, %p414
      %s417 = sadd.s32 %s416, 1
      %p420 = scmp.eq.s32.totalorder %s37, 3
      %p421 = scmp.ne.s32.totalorder %s416, %s418
      %p422 = scmp.eq.s32.totalorder %s37, 0
      %p423 = por %p421, %p422
      %p424 = scmp.ne.s32.totalorder %s416, %s418
      %p425 = scmp.eq.s32.totalorder %s42, 3
      %p426 = por %p424, %p425
      %p427 = scmp.ne.s32.totalorder %s418, %s419
      %p428 = scmp.eq.s32.totalorder %s42, 0
      %p429 = por %p427, %p428
      %p430 = scmp.ne.s32.totalorder %s418, %s419
      %p431 = scmp.eq.s32.totalorder %s43, 3
      %p432 = por %p430, %p431
      %p434 = scmp.ne.s32.totalorder %s419, %s433
      %p435 = scmp.eq.s32.totalorder %s43, 0
      %p436 = por %p434, %p435
      %s437 = ssub.s32 %s44, %s56
      %p438 = scmp.eq.s32.totalorder %s437, 0
      %s440 = sadd.s32 %s439, 1
      %s441 = scalar_select %p438, %s439, %s440
      %p444 = pneg %p438
      %p445 = scmp.eq.s32.totalorder %s37, 3
      %p446 = por %p444, %p445
      %p447 = scmp.ne.s32.totalorder %s439, %s442
      %p448 = scmp.eq.s32.totalorder %s37, 0
      %p449 = por %p447, %p448
      %p450 = scmp.ne.s32.totalorder %s439, %s442
      %p451 = scmp.eq.s32.totalorder %s42, 3
      %p452 = por %p450, %p451
      %p453 = scmp.ne.s32.totalorder %s442, %s443
      %p454 = scmp.eq.s32.totalorder %s42, 0
      %p455 = por %p453, %p454
      %p456 = scmp.ne.s32.totalorder %s442, %s443
      %p457 = scmp.eq.s32.totalorder %s43, 3
      %p458 = por %p456, %p457
      %p460 = scmp.ne.s32.totalorder %s443, %s459
      %p461 = scmp.eq.s32.totalorder %s43, 0
      %p462 = por %p460, %p461
      %p463 = scmp.le.s32.totalorder 1, %s37
      %p464 = scmp.lt.s32.totalorder %s37, 5
      %p465 = pnand %p463, %p464
      %p466 = pneg %p465
      // Predicated region
      $region9: #{asr_forward.3} parent=5 // pred_check
        _
      $region10: #{asr_forward.3} parent=5 // pred_check_branch
        %468 = sbr.rel (%p465) target = $region12
      $region11: #{asr_forward.3} parent=5 // pred_region
        %s469 = ssub.s32 %s37, 1
        // Predicated region
        $region13: #{asr_forward.3} parent=11 // pred_check
          %p470 = pneg %p408
        $region14: #{asr_forward.3} parent=11 // pred_check_branch
          %472 = sbr.rel (%p470) target = $region16
        $region15: #{asr_forward.3} parent=11 // pred_region
          %s474 = ssub.s32 16, 16
          %475 = vsyncadd [#allocation14], %s474
          %s477 = sshll.u32 [#allocation15], 4
          %s478 = int_to_ptr.vmem [resolvable:$true] %s477
          %480 = dma.hbm_to_vmem [thread:$0]  %s13, 16, %s478, [#allocation14]
        $region16: #{asr_forward.3} parent=11 // pred_fallthru
          _
        // Predicated region
        $region17: #{asr_forward.3} parent=11 // pred_check
          %p481 = pneg %p429
        $region18: #{asr_forward.3} parent=11 // pred_check_branch
          %483 = sbr.rel (%p481) target = $region20
        $region19: #{asr_forward.3} parent=11 // pred_region
          %s485 = ssub.s32 16, 16
          %486 = vsyncadd [#allocation17], %s485
          %s488 = sshll.u32 [#allocation16], 4
          %s489 = int_to_ptr.vmem [resolvable:$true] %s488
          %491 = dma.hbm_to_vmem [thread:$0]  %s14, 16, %s489, [#allocation17]
        $region20: #{asr_forward.3} parent=11 // pred_fallthru
          _
      $region12: #{asr_forward.3} parent=5 // pred_fallthru
        _
      %p492 = scmp.lt.s32.totalorder %s37, 4
      // Predicated region
      $region21: #{asr_forward.3} parent=5 // pred_check
        %p493 = pneg %p492
      $region22: #{asr_forward.3} parent=5 // pred_check_branch
        %495 = sbr.rel (%p493) target = $region24
      $region23: #{asr_forward.3} parent=5 // pred_region
        // Predicated region
        $region25: #{asr_forward.3} parent=23 // pred_check
          %p496 = pneg %p69
        $region26: #{asr_forward.3} parent=23 // pred_check_branch
          %498 = sbr.rel (%p496) target = $region28
        $region27: #{asr_forward.3} parent=23 // pred_region
          %p499 = scmp.lt.s32.totalorder %s44, 1
          %s500 = scalar_select %p499, %s44, 1
          %s501 = smul.addr %s500, 2
          %s502 = smul.addr %s501, 8
          %s503 = scalar_lea.vmem %s0, %s502
        $region28: #{asr_forward.3} parent=23 // pred_fallthru
          _
        // Predicated region
        $region29: #{asr_forward.3} parent=23 // pred_check
          %p504 = pneg %p95
        $region30: #{asr_forward.3} parent=23 // pred_check_branch
          %506 = sbr.rel (%p504) target = $region32
        $region31: #{asr_forward.3} parent=23 // pred_region
          %p507 = scmp.lt.s32.totalorder %s45, 1
          %s508 = scalar_select %p507, %s45, 1
          %s509 = scalar_lea.vmem %s1, %s508
        $region32: #{asr_forward.3} parent=23 // pred_fallthru
          _
        // Predicated region
        $region33: #{asr_forward.3} parent=23 // pred_check
          %p510 = pneg %p121
        $region34: #{asr_forward.3} parent=23 // pred_check_branch
          %512 = sbr.rel (%p510) target = $region36
        $region35: #{asr_forward.3} parent=23 // pred_region
          %s513 = sand.u32 %s111, 1
          %s514 = scalar_lea.sflag [#allocation5], %s513
          %s515 = sand.u32 %s111, 1
          %s516 = scalar_lea.vmem [#allocation4], %s515
          %s518 = ssub.s32 16, 16
          %519 = vsyncadd %s514, %s518
          %s520 = smul.addr %s45, 16
          %s521 = scalar_lea.hbm %s2, %s520
          %s523 = sshll.u32 %s516, 4
          %s524 = int_to_ptr.vmem [resolvable:$true] %s523
          %526 = dma.hbm_to_vmem [thread:$0]  %s521, 16, %s524, %s514
        $region36: #{asr_forward.3} parent=23 // pred_fallthru
          _
        // Predicated region
        $region37: #{asr_forward.3} parent=23 // pred_check
          %p527 = pneg %p147
        $region38: #{asr_forward.3} parent=23 // pred_check_branch
          %529 = sbr.rel (%p527) target = $region40
        $region39: #{asr_forward.3} parent=23 // pred_region
          %p530 = scmp.lt.s32.totalorder %s45, 1
          %s531 = scalar_select %p530, %s45, 1
          %s532 = smul.addr %s531, 48
          %s533 = smul.addr %s532, 4
          %s534 = scalar_lea.vmem %s3, %s533
        $region40: #{asr_forward.3} parent=23 // pred_fallthru
          _
        // Predicated region
        $region41: #{asr_forward.3} parent=23 // pred_check
          %p535 = pneg %p173
        $region42: #{asr_forward.3} parent=23 // pred_check_branch
          %537 = sbr.rel (%p535) target = $region44
        $region43: #{asr_forward.3} parent=23 // pred_region
          %p538 = scmp.lt.s32.totalorder %s45, 1
          %s539 = scalar_select %p538, %s45, 1
          %s540 = smul.addr %s539, 3
          %s541 = scalar_lea.vmem %s4, %s540
        $region44: #{asr_forward.3} parent=23 // pred_fallthru
          _
        // Predicated region
        $region45: #{asr_forward.3} parent=23 // pred_check
          %p542 = pneg %p199
        $region46: #{asr_forward.3} parent=23 // pred_check_branch
          %544 = sbr.rel (%p542) target = $region48
        $region47: #{asr_forward.3} parent=23 // pred_region
          %p545 = scmp.lt.s32.totalorder %s45, 1
          %s546 = scalar_select %p545, %s45, 1
          %s547 = smul.addr %s546, 16
          %s548 = smul.addr %s547, 4
          %s549 = scalar_lea.vmem %s5, %s548
        $region48: #{asr_forward.3} parent=23 // pred_fallthru
          _
        // Predicated region
        $region49: #{asr_forward.3} parent=23 // pred_check
          %p550 = pneg %p225
        $region50: #{asr_forward.3} parent=23 // pred_check_branch
          %552 = sbr.rel (%p550) target = $region52
        $region51: #{asr_forward.3} parent=23 // pred_region
          %s553 = sand.u32 %s37, 1
          %s554 = scalar_lea.sflag [#allocation8], %s553
          %s555 = sand.u32 %s215, 1
          %s556 = scalar_lea.vmem [#allocation7], %s555
          %s558 = ssub.s32 16, 16
          %559 = vsyncadd %s554, %s558
          %s560 = smul.addr %s45, 16
          %s561 = scalar_lea.hbm %s6, %s560
          %s563 = sshll.u32 %s556, 4
          %s564 = int_to_ptr.vmem [resolvable:$true] %s563
          %566 = dma.hbm_to_vmem [thread:$0]  %s561, 16, %s564, %s554
        $region52: #{asr_forward.3} parent=23 // pred_fallthru
          _
        // Predicated region
        $region53: #{asr_forward.3} parent=23 // pred_check
          %p567 = pneg %p251
        $region54: #{asr_forward.3} parent=23 // pred_check_branch
          %569 = sbr.rel (%p567) target = $region56
        $region55: #{asr_forward.3} parent=23 // pred_region
          %s570 = sand.u32 %s37, 1
          %s571 = scalar_lea.sflag [#allocation8], %s570
          %s572 = sand.u32 %s241, 1
          %s573 = scalar_lea.vmem [#allocation9], %s572
          %s575 = ssub.s32 16, 16
          %576 = vsyncadd %s571, %s575
          %s577 = smul.addr %s45, 16
          %s578 = scalar_lea.hbm %s7, %s577
          %s580 = sshll.u32 %s573, 4
          %s581 = int_to_ptr.vmem [resolvable:$true] %s580
          %583 = dma.hbm_to_vmem [thread:$0]  %s578, 16, %s581, %s571
        $region56: #{asr_forward.3} parent=23 // pred_fallthru
          _
        // Predicated region
        $region57: #{asr_forward.3} parent=23 // pred_check
          %p584 = pneg %p277
        $region58: #{asr_forward.3} parent=23 // pred_check_branch
          %586 = sbr.rel (%p584) target = $region60
        $region59: #{asr_forward.3} parent=23 // pred_region
          %s587 = sand.u32 %s37, 1
          %s588 = scalar_lea.sflag [#allocation11], %s587
          %s589 = sand.u32 %s267, 1
          %s590 = scalar_lea.vmem [#allocation10], %s589
          %s592 = ssub.s32 16, 16
          %593 = vsyncadd %s588, %s592
          %s594 = smul.addr %s45, 16
          %s595 = scalar_lea.hbm %s8, %s594
          %s597 = sshll.u32 %s590, 4
          %s598 = int_to_ptr.vmem [resolvable:$true] %s597
          %600 = dma.hbm_to_vmem [thread:$0]  %s595, 16, %s598, %s588
        $region60: #{asr_forward.3} parent=23 // pred_fallthru
          _
        // Predicated region
        $region61: #{asr_forward.3} parent=23 // pred_check
          %p601 = pneg %p303
        $region62: #{asr_forward.3} parent=23 // pred_check_branch
          %603 = sbr.rel (%p601) target = $region64
        $region63: #{asr_forward.3} parent=23 // pred_region
          %p604 = scmp.lt.s32.totalorder %s45, 1
          %s605 = scalar_select %p604, %s45, 1
          %s606 = smul.addr %s605, 32
          %s607 = smul.addr %s606, 4
          %s608 = scalar_lea.vmem %s9, %s607
        $region64: #{asr_forward.3} parent=23 // pred_fallthru
          _
        // Predicated region
        $region65: #{asr_forward.3} parent=23 // pred_check
          %p609 = pneg %p329
        $region66: #{asr_forward.3} parent=23 // pred_check_branch
          %611 = sbr.rel (%p609) target = $region68
        $region67: #{asr_forward.3} parent=23 // pred_region
          %s612 = sand.u32 %s37, 1
          %s613 = scalar_lea.sflag [#allocation11], %s612
          %s614 = sand.u32 %s319, 1
          %s615 = smul.addr %s614, 2
          %s616 = scalar_lea.vmem [#allocation12], %s615
          %s618 = ssub.s32 32, 32
          %619 = vsyncadd %s613, %s618
          %s620 = smul.addr %s45, 2
          %s621 = smul.addr %s620, 16
          %s622 = scalar_lea.hbm %s10, %s621
          %s624 = sshll.u32 %s616, 4
          %s625 = int_to_ptr.vmem [resolvable:$true] %s624
          %627 = dma.hbm_to_vmem [thread:$0]  %s622, 32, %s625, %s613
        $region68: #{asr_forward.3} parent=23 // pred_fallthru
          _
        // Predicated region
        $region69: #{asr_forward.3} parent=23 // pred_check
          %p628 = pneg %p355
        $region70: #{asr_forward.3} parent=23 // pred_check_branch
          %630 = sbr.rel (%p628) target = $region72
        $region71: #{asr_forward.3} parent=23 // pred_region
          %p631 = scmp.lt.s32.totalorder %s45, 1
          %s632 = scalar_select %p631, %s45, 1
          %s633 = smul.addr %s632, 32
          %s634 = smul.addr %s633, 4
          %s635 = scalar_lea.vmem %s11, %s634
        $region72: #{asr_forward.3} parent=23 // pred_fallthru
          _
        // Predicated region
        $region73: #{asr_forward.3} parent=23 // pred_check
          %p636 = pneg %p381
        $region74: #{asr_forward.3} parent=23 // pred_check_branch
          %638 = sbr.rel (%p636) target = $region76
        $region75: #{asr_forward.3} parent=23 // pred_region
          %s639 = sand.u32 %s37, 1
          %s640 = scalar_lea.sflag [#allocation14], %s639
          %s641 = sand.u32 %s371, 1
          %s642 = scalar_lea.vmem [#allocation13], %s641
          %s644 = ssub.s32 16, 16
          %645 = vsyncadd %s640, %s644
          %s646 = smul.addr %s45, 16
          %s647 = scalar_lea.hbm %s12, %s646
          %s649 = sshll.u32 %s642, 4
          %s650 = int_to_ptr.vmem [resolvable:$true] %s649
          %652 = dma.hbm_to_vmem [thread:$0]  %s647, 16, %s650, %s640
        $region76: #{asr_forward.3} parent=23 // pred_fallthru
          _
      $region24: #{asr_forward.3} parent=5 // pred_fallthru
        _
      %p653 = scmp.le.s32.totalorder 1, %s37
      %p654 = scmp.lt.s32.totalorder %s37, 5
      %p655 = pnand %p653, %p654
      %p656 = pneg %p655
      // Predicated region
      $region77: #{asr_forward.3} parent=5 // pred_check
        _
      $region78: #{asr_forward.3} parent=5 // pred_check_branch
        %658 = sbr.rel (%p655) target = $region80
      $region79: #{asr_forward.3} parent=5 // pred_region
        %s659 = ssub.s32 %s37, 1
        %s660 = sand.u32 %s114, 1
        %s661 = scalar_lea.sflag [#allocation5], %s660
        %s662 = sand.u32 %s114, 1
        %s663 = scalar_lea.vmem [#allocation4], %s662
        // Predicated region
        $region81: #{asr_forward.3} parent=79 // pred_check
          %p664 = pneg %p127
        $region82: #{asr_forward.3} parent=79 // pred_check_branch
          %666 = sbr.rel (%p664) target = $region84
        $region83: #{asr_forward.3} parent=79 // pred_region
          %667 = dma.done %s661, 16
        $region84: #{asr_forward.3} parent=79 // pred_fallthru
          _
        %s668 = sand.u32 %s42, 1
        %s669 = scalar_lea.sflag [#allocation8], %s668
        %s670 = sand.u32 %s218, 1
        %s671 = scalar_lea.vmem [#allocation7], %s670
        // Predicated region
        $region85: #{asr_forward.3} parent=79 // pred_check
          %p672 = pneg %p231
        $region86: #{asr_forward.3} parent=79 // pred_check_branch
          %674 = sbr.rel (%p672) target = $region88
        $region87: #{asr_forward.3} parent=79 // pred_region
          %675 = dma.done %s669, 16
        $region88: #{asr_forward.3} parent=79 // pred_fallthru
          _
        %s676 = sand.u32 %s42, 1
        %s677 = scalar_lea.sflag [#allocation8], %s676
        %s678 = sand.u32 %s244, 1
        %s679 = scalar_lea.vmem [#allocation9], %s678
        // Predicated region
        $region89: #{asr_forward.3} parent=79 // pred_check
          %p680 = pneg %p257
        $region90: #{asr_forward.3} parent=79 // pred_check_branch
          %682 = sbr.rel (%p680) target = $region92
        $region91: #{asr_forward.3} parent=79 // pred_region
          %683 = dma.done %s677, 16
        $region92: #{asr_forward.3} parent=79 // pred_fallthru
          _
        %s684 = sand.u32 %s42, 1
        %s685 = scalar_lea.sflag [#allocation11], %s684
        %s686 = sand.u32 %s270, 1
        %s687 = scalar_lea.vmem [#allocation10], %s686
        // Predicated region
        $region93: #{asr_forward.3} parent=79 // pred_check
          %p688 = pneg %p283
        $region94: #{asr_forward.3} parent=79 // pred_check_branch
          %690 = sbr.rel (%p688) target = $region96
        $region95: #{asr_forward.3} parent=79 // pred_region
          %691 = dma.done %s685, 16
        $region96: #{asr_forward.3} parent=79 // pred_fallthru
          _
        %s692 = sand.u32 %s42, 1
        %s693 = scalar_lea.sflag [#allocation11], %s692
        %s694 = sand.u32 %s322, 1
        %s695 = smul.addr %s694, 2
        %s696 = scalar_lea.vmem [#allocation12], %s695
        // Predicated region
        $region97: #{asr_forward.3} parent=79 // pred_check
          %p697 = pneg %p335
        $region98: #{asr_forward.3} parent=79 // pred_check_branch
          %699 = sbr.rel (%p697) target = $region100
        $region99: #{asr_forward.3} parent=79 // pred_region
          %700 = dma.done %s693, 32
        $region100: #{asr_forward.3} parent=79 // pred_fallthru
          _
        %s701 = sand.u32 %s42, 1
        %s702 = scalar_lea.sflag [#allocation14], %s701
        %s703 = sand.u32 %s374, 1
        %s704 = scalar_lea.vmem [#allocation13], %s703
        // Predicated region
        $region101: #{asr_forward.3} parent=79 // pred_check
          %p705 = pneg %p387
        $region102: #{asr_forward.3} parent=79 // pred_check_branch
          %707 = sbr.rel (%p705) target = $region104
        $region103: #{asr_forward.3} parent=79 // pred_region
          %708 = dma.done %s702, 16
        $region104: #{asr_forward.3} parent=79 // pred_fallthru
          _
        // Predicated region
        $region105: #{asr_forward.3} parent=79 // pred_check
          %p709 = pneg %p408
        $region106: #{asr_forward.3} parent=79 // pred_check_branch
          %711 = sbr.rel (%p709) target = $region108
        $region107: #{asr_forward.3} parent=79 // pred_region
          %712 = dma.done [#allocation14], 16
        $region108: #{asr_forward.3} parent=79 // pred_fallthru
          _
        // Predicated region
        $region109: #{asr_forward.3} parent=79 // pred_check
          %p713 = pneg %p429
        $region110: #{asr_forward.3} parent=79 // pred_check_branch
          %715 = sbr.rel (%p713) target = $region112
        $region111: #{asr_forward.3} parent=79 // pred_region
          %716 = dma.done [#allocation17], 16
        $region112: #{asr_forward.3} parent=79 // pred_fallthru
          _
        %p717 = scmp.lt.s32.totalorder %s46, 1
        %s718 = scalar_select %p717, %s46, 1
        %s719 = smul.addr %s718, 2
        %s720 = smul.addr %s719, 8
        %s721 = scalar_lea.vmem %s0, %s720
        %p722 = pneg %p75
        %p723 = pneg %p72
        %p724 = scmp.lt.s32.totalorder %s47, 1
        %s725 = scalar_select %p724, %s47, 1
        %s726 = scalar_lea.vmem %s1, %s725
        %p727 = pneg %p101
        %p728 = pneg %p98
        %s729 = sand.u32 %s114, 1
        %s730 = scalar_lea.sflag [#allocation5], %s729
        %s731 = sand.u32 %s114, 1
        %s732 = scalar_lea.vmem [#allocation4], %s731
        %p733 = pneg %p127
        %p734 = pneg %p124
        %p735 = scmp.lt.s32.totalorder %s47, 1
        %s736 = scalar_select %p735, %s47, 1
        %s737 = smul.addr %s736, 48
        %s738 = smul.addr %s737, 4
        %s739 = scalar_lea.vmem %s3, %s738
        %p740 = pneg %p153
        %p741 = pneg %p150
        %p742 = scmp.lt.s32.totalorder %s47, 1
        %s743 = scalar_select %p742, %s47, 1
        %s744 = smul.addr %s743, 3
        %s745 = scalar_lea.vmem %s4, %s744
        %p746 = pneg %p179
        %p747 = pneg %p176
        %p748 = scmp.lt.s32.totalorder %s47, 1
        %s749 = scalar_select %p748, %s47, 1
        %s750 = smul.addr %s749, 16
        %s751 = smul.addr %s750, 4
        %s752 = scalar_lea.vmem %s5, %s751
        %p753 = pneg %p205
        %p754 = pneg %p202
        %s755 = sand.u32 %s42, 1
        %s756 = scalar_lea.sflag [#allocation8], %s755
        %s757 = sand.u32 %s218, 1
        %s758 = scalar_lea.vmem [#allocation7], %s757
        %p759 = pneg %p231
        %p760 = pneg %p228
        %s761 = sand.u32 %s42, 1
        %s762 = scalar_lea.sflag [#allocation8], %s761
        %s763 = sand.u32 %s244, 1
        %s764 = scalar_lea.vmem [#allocation9], %s763
        %p765 = pneg %p257
        %p766 = pneg %p254
        %s767 = sand.u32 %s42, 1
        %s768 = scalar_lea.sflag [#allocation11], %s767
        %s769 = sand.u32 %s270, 1
        %s770 = scalar_lea.vmem [#allocation10], %s769
        %p771 = pneg %p283
        %p772 = pneg %p280
        %p773 = scmp.lt.s32.totalorder %s47, 1
        %s774 = scalar_select %p773, %s47, 1
        %s775 = smul.addr %s774, 32
        %s776 = smul.addr %s775, 4
        %s777 = scalar_lea.vmem %s9, %s776
        %p778 = pneg %p309
        %p779 = pneg %p306
        %s780 = sand.u32 %s42, 1
        %s781 = scalar_lea.sflag [#allocation11], %s780
        %s782 = sand.u32 %s322, 1
        %s783 = smul.addr %s782, 2
        %s784 = scalar_lea.vmem [#allocation12], %s783
        %p785 = pneg %p335
        %p786 = pneg %p332
        %p787 = scmp.lt.s32.totalorder %s47, 1
        %s788 = scalar_select %p787, %s47, 1
        %s789 = smul.addr %s788, 32
        %s790 = smul.addr %s789, 4
        %s791 = scalar_lea.vmem %s11, %s790
        %p792 = pneg %p361
        %p793 = pneg %p358
        %s794 = sand.u32 %s42, 1
        %s795 = scalar_lea.sflag [#allocation14], %s794
        %s796 = sand.u32 %s374, 1
        %s797 = scalar_lea.vmem [#allocation13], %s796
        %p798 = pneg %p387
        %p799 = pneg %p384
        %p800 = pneg %p408
        %p801 = pneg %p405
        %p802 = pneg %p429
        %p803 = pneg %p426
        %p804 = pneg %p455
        %p805 = pneg %p452
        %s806 = sand.u32 %s442, 1
        %s807 = scalar_lea.sflag [#allocation6], %s806
        %s808 = sand.u32 %s442, 1
        %s809 = smul.addr %s808, 16
        %s810 = scalar_lea.vmem [#allocation18], %s809
        %p811 = scmp.lt.s32.totalorder %s46, 1
        %s812 = scalar_select %p811, %s46, 1
        %s813 = smul.addr %s812, 2
        %s814 = smul.addr %s813, 8
        %s815 = scalar_lea.vmem %s0, %s814
        %p816 = scmp.lt.s32.totalorder %s47, 1
        %s817 = scalar_select %p816, %s47, 1
        %s818 = scalar_lea.vmem %s1, %s817
        %p819 = scmp.lt.s32.totalorder %s47, 1
        %s820 = scalar_select %p819, %s47, 1
        %s821 = smul.addr %s820, 48
        %s822 = smul.addr %s821, 4
        %s823 = scalar_lea.vmem %s3, %s822
        %p824 = scmp.lt.s32.totalorder %s47, 1
        %s825 = scalar_select %p824, %s47, 1
        %s826 = smul.addr %s825, 3
        %s827 = scalar_lea.vmem %s4, %s826
        %p828 = scmp.lt.s32.totalorder %s47, 1
        %s829 = scalar_select %p828, %s47, 1
        %s830 = smul.addr %s829, 16
        %s831 = smul.addr %s830, 4
        %s832 = scalar_lea.vmem %s5, %s831
        %p833 = scmp.lt.s32.totalorder %s47, 1
        %s834 = scalar_select %p833, %s47, 1
        %s835 = smul.addr %s834, 32
        %s836 = smul.addr %s835, 4
        %s837 = scalar_lea.vmem %s9, %s836
        %p838 = scmp.lt.s32.totalorder %s47, 1
        %s839 = scalar_select %p838, %s47, 1
        %s840 = smul.addr %s839, 32
        %s841 = smul.addr %s840, 4
        %s842 = scalar_lea.vmem %s11, %s841
        %p844 = scmp.eq.s32.totalorder %s47, 0
        // Predicated region
        $region113: #{asr_forward.3} parent=79 // pred_check
          %p845 = pneg %p844
        $region114: #{asr_forward.3} parent=79 // pred_check_branch
          %847 = sbr.rel (%p845) target = $region116
        $region115: #{asr_forward.3} parent=79 // pred_region
          %v848 = vld [vmem:[%s815] sm:$0xff]
          %v849 = vld [vmem:[%s815 + $0x8] sm:$0xff]
          %850 = vst [vmem:[#allocation2] sm:$0xff] %v848
          %851 = vst [vmem:[#allocation2 + $0x8] sm:$0xff] %v849
        $region116: #{asr_forward.3} parent=79 // pred_fallthru
          _
        %v852 = vld [vmem:[#allocation2] sm:$0xff]
        %v853 = vld [vmem:[#allocation2 + $0x8] sm:$0xff]
        %v854 = vld [vmem:[%s818] sm:$0x1]
        %v855 = vld [vmem:[%s663] sm:$0x1]
        %856 = vadd.xlane.f32.xlu0 %v852
        %v857 = vpop.xlane.xlu0 %856
        %858 = vadd.xlane.f32.xlu0 %v853
        %v859 = vpop.xlane.xlu0 %858
        %v860 = vrcp.pop 128.0
        %v861 = vmul.f32 %v857, %v860
        %v862 = vmul.f32 %v859, %v860
        %v863 = vsub.f32 %v852, %v861
        %v864 = vsub.f32 %v853, %v862
        %v865 = vmul.f32 %v863, %v863
        %v866 = vmul.f32 %v864, %v864
        %867 = vadd.xlane.f32.xlu0 %v865
        %v868 = vpop.xlane.xlu0 %867
        %869 = vadd.xlane.f32.xlu0 %v866
        %v870 = vpop.xlane.xlu0 %869
        %v871 = vmul.f32 %v868, %v860
        %v872 = vmul.f32 %v870, %v860
        %v873 = vadd.f32 %v871, 1e-05
        %v874 = vadd.f32 %v872, 1e-05
        %v875 = vrsqrt.pop %v873
        %v876 = vrsqrt.pop %v874
        %v877 = vmul.f32 %v863, %v875
        %v878 = vmul.f32 %v864, %v876
        %v880 = vlaneseq
        %v881 = vshrl.u32 %v880, 7
        %v882 = vsub.s32 0, %v881
        %v883 = vrot.slane %v854, %v882
        %v885 = vmul.f32 %v877, %v883
        %v886 = vmul.f32 %v878, %v883
        %v888 = vlaneseq
        %v889 = vshrl.u32 %v888, 7
        %v890 = vsub.s32 0, %v889
        %v891 = vrot.slane %v855, %v890
        %v893 = vadd.f32 %v885, %v891
        %v894 = vadd.f32 %v886, %v891
        %v895 = vpack.c.bf16 %v894, %v893
        %v896 = vld [vmem:[%s823] sm:$0xff]
        %v897 = vld [vmem:[%s823 + $0x8] sm:$0xf]
        %v898 = vld [vmem:[%s823 + $0xc] sm:$0xff]
        %v899 = vld [vmem:[%s823 + $0x14] sm:$0xf]
        %v900 = vld [vmem:[%s823 + $0x18] sm:$0xff]
        %v901 = vld [vmem:[%s823 + $0x20] sm:$0xf]
        %v902 = vld [vmem:[%s823 + $0x24] sm:$0xff]
        %v903 = vld [vmem:[%s823 + $0x2c] sm:$0xf]
        %v904 = vld [vmem:[%s823 + $0x30] sm:$0xff]
        %v905 = vld [vmem:[%s823 + $0x38] sm:$0xf]
        %v906 = vld [vmem:[%s823 + $0x3c] sm:$0xff]
        %v907 = vld [vmem:[%s823 + $0x44] sm:$0xf]
        %v908 = vld [vmem:[%s823 + $0x48] sm:$0xff]
        %v909 = vld [vmem:[%s823 + $0x50] sm:$0xf]
        %v910 = vld [vmem:[%s823 + $0x54] sm:$0xff]
        %v911 = vld [vmem:[%s823 + $0x5c] sm:$0xf]
        %v912 = vld [vmem:[%s823 + $0x60] sm:$0xff]
        %v913 = vld [vmem:[%s823 + $0x68] sm:$0xf]
        %v914 = vld [vmem:[%s823 + $0x6c] sm:$0xff]
        %v915 = vld [vmem:[%s823 + $0x74] sm:$0xf]
        %v916 = vld [vmem:[%s823 + $0x78] sm:$0xff]
        %v917 = vld [vmem:[%s823 + $0x80] sm:$0xf]
        %v918 = vld [vmem:[%s823 + $0x84] sm:$0xff]
        %v919 = vld [vmem:[%s823 + $0x8c] sm:$0xf]
        %v920 = vld [vmem:[%s823 + $0x90] sm:$0xff]
        %v921 = vld [vmem:[%s823 + $0x98] sm:$0xf]
        %v922 = vld [vmem:[%s823 + $0x9c] sm:$0xff]
        %v923 = vld [vmem:[%s823 + $0xa4] sm:$0xf]
        %v924 = vld [vmem:[%s823 + $0xa8] sm:$0xff]
        %v925 = vld [vmem:[%s823 + $0xb0] sm:$0xf]
        %v926 = vld [vmem:[%s823 + $0xb4] sm:$0xff]
        %v927 = vld [vmem:[%s823 + $0xbc] sm:$0xf]
        %v928 = vld [vmem:[%s827] sm:$0x7]
        %v930 = vlaneseq
        %v931 = vshrl.u32 %v930, 7
        %v932 = vsub.s32 0, %v931
        %v933 = vrot.slane %v928, %v932
        %v934 = vlaneseq
        %v935 = vshrl.u32 %v934, 7
        %v936 = vsub.s32 1, %v935
        %v937 = vrot.slane %v928, %v936
        %v938 = vlaneseq
        %v939 = vshrl.u32 %v938, 7
        %v940 = vsub.s32 2, %v939
        %v941 = vrot.slane %v928, %v940
        %v977 = vunpack.c.l.b16 %v896
        %v978 = vunpack.c.h.b16 %v896
        %v979 = vunpack.c.l.b16 %v897
        %v980 = vunpack.c.l.b16 %v898
        %v981 = vunpack.c.h.b16 %v898
        %v982 = vunpack.c.l.b16 %v899
        %v983 = vunpack.c.l.b16 %v900
        %v984 = vunpack.c.h.b16 %v900
        %v985 = vunpack.c.l.b16 %v901
        %v986 = vunpack.c.l.b16 %v902
        %v987 = vunpack.c.h.b16 %v902
        %v988 = vunpack.c.l.b16 %v903
        %v989 = vunpack.c.l.b16 %v904
        %v990 = vunpack.c.h.b16 %v904
        %v991 = vunpack.c.l.b16 %v905
        %v992 = vunpack.c.l.b16 %v906
        %v993 = vunpack.c.h.b16 %v906
        %v994 = vunpack.c.l.b16 %v907
        %v995 = vunpack.c.l.b16 %v908
        %v996 = vunpack.c.h.b16 %v908
        %v997 = vunpack.c.l.b16 %v909
        %v998 = vunpack.c.l.b16 %v910
        %v999 = vunpack.c.h.b16 %v910
        %v1000 = vunpack.c.l.b16 %v911
        %v1001 = vunpack.c.l.b16 %v912
        %v1002 = vunpack.c.h.b16 %v912
        %v1003 = vunpack.c.l.b16 %v913
        %v1004 = vunpack.c.l.b16 %v914
        %v1005 = vunpack.c.h.b16 %v914
        %v1006 = vunpack.c.l.b16 %v915
        %v1007 = vunpack.c.l.b16 %v916
        %v1008 = vunpack.c.h.b16 %v916
        %v1009 = vunpack.c.l.b16 %v917
        %v1010 = vunpack.c.l.b16 %v918
        %v1011 = vunpack.c.h.b16 %v918
        %v1012 = vunpack.c.l.b16 %v919
        %v1013 = vunpack.c.l.b16 %v920
        %v1014 = vunpack.c.h.b16 %v920
        %v1015 = vunpack.c.l.b16 %v921
        %v1016 = vunpack.c.l.b16 %v922
        %v1017 = vunpack.c.h.b16 %v922
        %v1018 = vunpack.c.l.b16 %v923
        %v1019 = vunpack.c.l.b16 %v924
        %v1020 = vunpack.c.h.b16 %v924
        %v1021 = vunpack.c.l.b16 %v925
        %v1022 = vunpack.c.l.b16 %v926
        %v1023 = vunpack.c.h.b16 %v926
        %v1024 = vunpack.c.l.b16 %v927
        %v1025 = vpack.c.b16 %v980, %v977
        %v1026 = vpack.c.b16 %v981, %v978
        %v1027 = vpack.c.b16 %v982, %v979
        %v1028 = vpack.c.b16 %v986, %v983
        %v1029 = vpack.c.b16 %v987, %v984
        %v1030 = vpack.c.b16 %v988, %v985
        %v1031 = vpack.c.b16 %v992, %v989
        %v1032 = vpack.c.b16 %v993, %v990
        %v1033 = vpack.c.b16 %v994, %v991
        %v1034 = vpack.c.b16 %v998, %v995
        %v1035 = vpack.c.b16 %v999, %v996
        %v1036 = vpack.c.b16 %v1000, %v997
        %v1037 = vpack.c.b16 %v1004, %v1001
        %v1038 = vpack.c.b16 %v1005, %v1002
        %v1039 = vpack.c.b16 %v1006, %v1003
        %v1040 = vpack.c.b16 %v1010, %v1007
        %v1041 = vpack.c.b16 %v1011, %v1008
        %v1042 = vpack.c.b16 %v1012, %v1009
        %v1043 = vpack.c.b16 %v1016, %v1013
        %v1044 = vpack.c.b16 %v1017, %v1014
        %v1045 = vpack.c.b16 %v1018, %v1015
        %v1046 = vpack.c.b16 %v1022, %v1019
        %v1047 = vpack.c.b16 %v1023, %v1020
        %v1048 = vpack.c.b16 %v1024, %v1021
        %1073 = vmatprep.subr.bf16.mxu0 %v1026
        %1074 = vmatpush1.bf16.msra.mxu0 %v1025
        %1075 = vmatprep.subr.bf16.mxu0 %v1029
        %1076 = vmatpush1.bf16.msra.mxu0 %v1028
        %1077 = vmatprep.subr.bf16.mxu0 %v1032
        %1078 = vmatpush1.bf16.msra.mxu0 %v1031
        %1079 = vmatprep.subr.bf16.mxu0 %v1035
        %1080 = vmatpush1.bf16.msra.mxu0 %v1034
        %1081 = vmatprep.subr.bf16.mxu0 %v1038
        %1082 = vmatpush1.bf16.msra.mxu0 %v1037
        %1083 = vmatprep.subr.bf16.mxu0 %v1041
        %1084 = vmatpush1.bf16.msra.mxu0 %v1040
        %1085 = vmatprep.subr.bf16.mxu0 %v1044
        %1086 = vmatpush1.bf16.msra.mxu0 %v1043
        %1087 = vmatprep.subr.bf16.mxu0 %v1047
        %1088 = vmatpush1.bf16.msra.mxu0 %v1046
        %1089 = vmatprep.subr.bf16.mxu0 0
        %1090 = vmatpush1.bf16.msra.mxu0 0
        %1091 = vmatprep.subr.bf16.mxu0 0
        %1092 = vmatpush1.bf16.msra.mxu0 0
        %1093 = vmatprep.subr.bf16.mxu0 0
        %1094 = vmatpush1.bf16.msra.mxu0 0
        %1095 = vmatprep.subr.bf16.mxu0 0
        %1096 = vmatpush1.bf16.msra.mxu0 0
        %1097 = vmatprep.subr.bf16.mxu0 0
        %1098 = vmatpush1.bf16.msra.mxu0 0
        %1099 = vmatprep.subr.bf16.mxu0 0
        %1100 = vmatpush1.bf16.msra.mxu0 0
        %1101 = vmatprep.subr.bf16.mxu0 0
        %1102 = vmatpush1.bf16.msra.mxu0 0
        %1103 = vmatprep.subr.bf16.mxu0 0
        %1104 = vmatpush1.bf16.msra.mxu0 0
        %1105 = vmatprep.mubr.bf16.mxu0 0
        %1106 = vmatmul.mubr.bf16.gmra.mrb[0].mxu0 %v895
        %v1107 = vpop.f32.mrb[0].mxu0
        %v1108 = vadd.f32 %v933, %v1107
        %v1109 = vpop.f32.mrb[0].mxu0
        %v1110 = vadd.f32 %v937, %v1109
        %v1111 = vpop.f32.mrb[0].mxu0
        %v1112 = vadd.f32 %v933, %v1111
        %v1113 = vpop.f32.mrb[0].mxu0
        %v1114 = vadd.f32 %v937, %v1113
        %1115 = vdwg.mxu0
        %1116 = vmatprep.subr.bf16.mxu0 0
        %1117 = vmatpush1.bf16.msra.mxu0 %v1027
        %1118 = vmatprep.subr.bf16.mxu0 0
        %1119 = vmatpush1.bf16.msra.mxu0 %v1030
        %1120 = vmatprep.subr.bf16.mxu0 0
        %1121 = vmatpush1.bf16.msra.mxu0 %v1033
        %1122 = vmatprep.subr.bf16.mxu0 0
        %1123 = vmatpush1.bf16.msra.mxu0 %v1036
        %1124 = vmatprep.subr.bf16.mxu0 0
        %1125 = vmatpush1.bf16.msra.mxu0 %v1039
        %1126 = vmatprep.subr.bf16.mxu0 0
        %1127 = vmatpush1.bf16.msra.mxu0 %v1042
        %1128 = vmatprep.subr.bf16.mxu0 0
        %1129 = vmatpush1.bf16.msra.mxu0 %v1045
        %1130 = vmatprep.subr.bf16.mxu0 0
        %1131 = vmatpush1.bf16.msra.mxu0 %v1048
        %1132 = vmatprep.subr.bf16.mxu0 0
        %1133 = vmatpush1.bf16.msra.mxu0 0
        %1134 = vmatprep.subr.bf16.mxu0 0
        %1135 = vmatpush1.bf16.msra.mxu0 0
        %1136 = vmatprep.subr.bf16.mxu0 0
        %1137 = vmatpush1.bf16.msra.mxu0 0
        %1138 = vmatprep.subr.bf16.mxu0 0
        %1139 = vmatpush1.bf16.msra.mxu0 0
        %1140 = vmatprep.subr.bf16.mxu0 0
        %1141 = vmatpush1.bf16.msra.mxu0 0
        %1142 = vmatprep.subr.bf16.mxu0 0
        %1143 = vmatpush1.bf16.msra.mxu0 0
        %1144 = vmatprep.subr.bf16.mxu0 0
        %1145 = vmatpush1.bf16.msra.mxu0 0
        %1146 = vmatprep.subr.bf16.mxu0 0
        %1147 = vmatpush1.bf16.msra.mxu0 0
        %1148 = vmatprep.mubr.bf16.mxu0 0
        %1149 = vmatmul.mubr.bf16.gmra.mrb[0].mxu0 %v895
        %v1150 = vpop.f32.mrb[0].mxu0
        %v1151 = vadd.f32 %v941, %v1150
        %v1152 = vpop.f32.mrb[0].mxu0
        %v1153 = vpop.f32.mrb[0].mxu0
        %v1154 = vadd.f32 %v941, %v1153
        %v1155 = vpop.f32.mrb[0].mxu0
        %1156 = vdwg.mxu0
        %v1157 = vmul.f32 %v1108, 0.17677669
        %v1158 = vmul.f32 %v1112, 0.17677669
        %v1159 = vpack.c.bf16 %v1158, %v1157
        %v1160 = vpack.c.bf16 %v1114, %v1110
        %v1161 = vpack.c.bf16 %v1154, %v1151
        %vm1162 = vcmask 261120
        %v1164 = vsel %vm1162, %v1159, 0
        %v1167 = vsel %vm1162, %v1160, 0
        %1169 = vmatprep.subr.bf16.mxu0 0
        %1170 = vmatpush1.bf16.xpose.msra.mxu0 %v1167
        %1171 = vmatprep.subr.bf16.mxu0 0
        %1172 = vmatpush1.bf16.xpose.msra.mxu0 0
        %1173 = vmatprep.subr.bf16.mxu0 0
        %1174 = vmatpush1.bf16.xpose.msra.mxu0 0
        %1175 = vmatprep.subr.bf16.mxu0 0
        %1176 = vmatpush1.bf16.xpose.msra.mxu0 0
        %1177 = vmatprep.subr.bf16.mxu0 0
        %1178 = vmatpush1.bf16.xpose.msra.mxu0 0
        %1179 = vmatprep.subr.bf16.mxu0 0
        %1180 = vmatpush1.bf16.xpose.msra.mxu0 0
        %1181 = vmatprep.subr.bf16.mxu0 0
        %1182 = vmatpush1.bf16.xpose.msra.mxu0 0
        %1183 = vmatprep.subr.bf16.mxu0 0
        %1184 = vmatpush1.bf16.xpose.msra.mxu0 0
        %1185 = vmatprep.subr.bf16.mxu0 0
        %1186 = vmatpush1.bf16.xpose.msra.mxu0 0
        %1187 = vmatprep.subr.bf16.mxu0 0
        %1188 = vmatpush1.bf16.xpose.msra.mxu0 0
        %1189 = vmatprep.subr.bf16.mxu0 0
        %1190 = vmatpush1.bf16.xpose.msra.mxu0 0
        %1191 = vmatprep.subr.bf16.mxu0 0
        %1192 = vmatpush1.bf16.xpose.msra.mxu0 0
        %1193 = vmatprep.subr.bf16.mxu0 0
        %1194 = vmatpush1.bf16.xpose.msra.mxu0 0
        %1195 = vmatprep.subr.bf16.mxu0 0
        %1196 = vmatpush1.bf16.xpose.msra.mxu0 0
        %1197 = vmatprep.subr.bf16.mxu0 0
        %1198 = vmatpush1.bf16.xpose.msra.mxu0 0
        %1199 = vmatprep.subr.bf16.mxu0 0
        %1200 = vmatpush1.bf16.xpose.msra.mxu0 0
        %1201 = vmatprep.mubr.bf16.mxu0 0
        %1202 = vmatmul.mubr.bf16.gmra.mrb[0].mxu0 %v1164
        %v1203 = vpop.f32.mrb[0].mxu0
        %v1204 = vadd.f32 0.0, %v1203
        %v1205 = vpop.f32.mrb[0].mxu0
        %v1206 = vpop.f32.mrb[0].mxu0
        %v1207 = vadd.f32 0.0, %v1206
        %v1208 = vpop.f32.mrb[0].mxu0
        %1209 = vdwg.mxu0
        %vm1210 = vcmask 130048
        %v1211 = vsel %vm1210, %v1204, -inf
        %1212 = vmax.xlane.f32.xlu0 %v1211
        %v1213 = vpop.xlane.xlu0 %1212
        %v1214 = vsel %vm1210, %v1207, -inf
        %1215 = vmax.xlane.f32.xlu0 %v1214
        %v1216 = vpop.xlane.xlu0 %1215
        %v1217 = vsub.f32 %v1204, %v1213
        %v1218 = vsub.f32 %v1207, %v1216
        %v1219 = vmul.f32 %v1217, 1.442695
        %v1220 = vpow.pop %v1219
        %v1221 = vmul.f32 %v1218, 1.442695
        %v1222 = vpow.pop %v1221
        %v1223 = vsel %vm1210, %v1220, 0.0
        %1224 = vadd.xlane.f32.xlu0 %v1223
        %v1225 = vpop.xlane.xlu0 %1224
        %v1226 = vsel %vm1210, %v1222, 0.0
        %1227 = vadd.xlane.f32.xlu0 %v1226
        %v1228 = vpop.xlane.xlu0 %1227
        %v1229 = vrcp.pop %v1225
        %v1230 = vrcp.pop %v1228
        %v1231 = vmul.f32 %v1220, %v1229
        %v1232 = vmul.f32 %v1222, %v1230
        %v1233 = vpack.c.bf16 %v1232, %v1231
        %v1235 = vsel %vm1210, %v1233, 0
        %1237 = vmatprep.subr.bf16.mxu0 0
        %1238 = vmatpush1.bf16.msra.mxu0 %v1161
        %1239 = vmatprep.subr.bf16.mxu0 0
        %1240 = vmatpush1.bf16.msra.mxu0 0
        %1241 = vmatprep.subr.bf16.mxu0 0
        %1242 = vmatpush1.bf16.msra.mxu0 0
        %1243 = vmatprep.subr.bf16.mxu0 0
        %1244 = vmatpush1.bf16.msra.mxu0 0
        %1245 = vmatprep.subr.bf16.mxu0 0
        %1246 = vmatpush1.bf16.msra.mxu0 0
        %1247 = vmatprep.subr.bf16.mxu0 0
        %1248 = vmatpush1.bf16.msra.mxu0 0
        %1249 = vmatprep.subr.bf16.mxu0 0
        %1250 = vmatpush1.bf16.msra.mxu0 0
        %1251 = vmatprep.subr.bf16.mxu0 0
        %1252 = vmatpush1.bf16.msra.mxu0 0
        %1253 = vmatprep.subr.bf16.mxu0 0
        %1254 = vmatpush1.bf16.msra.mxu0 0
        %1255 = vmatprep.subr.bf16.mxu0 0
        %1256 = vmatpush1.bf16.msra.mxu0 0
        %1257 = vmatprep.subr.bf16.mxu0 0
        %1258 = vmatpush1.bf16.msra.mxu0 0
        %1259 = vmatprep.subr.bf16.mxu0 0
        %1260 = vmatpush1.bf16.msra.mxu0 0
        %1261 = vmatprep.subr.bf16.mxu0 0
        %1262 = vmatpush1.bf16.msra.mxu0 0
        %1263 = vmatprep.subr.bf16.mxu0 0
        %1264 = vmatpush1.bf16.msra.mxu0 0
        %1265 = vmatprep.subr.bf16.mxu0 0
        %1266 = vmatpush1.bf16.msra.mxu0 0
        %1267 = vmatprep.subr.bf16.mxu0 0
        %1268 = vmatpush1.bf16.msra.mxu0 0
        %1269 = vmatprep.mubr.bf16.mxu0 0
        %1270 = vmatmul.mubr.bf16.gmra.mrb[0].mxu0 %v1235
        %v1271 = vpop.f32.mrb[0].mxu0
        %v1272 = vadd.f32 0.0, %v1271
        %v1273 = vpop.f32.mrb[0].mxu0
        %v1274 = vpop.f32.mrb[0].mxu0
        %v1275 = vadd.f32 0.0, %v1274
        %v1276 = vpop.f32.mrb[0].mxu0
        %1277 = vdwg.mxu0
        %1278 = vst.msk [vmem:[#allocation3] sm:$0xff] %vm1162, %v1272
        %1279 = vst.msk [vmem:[#allocation3 + $0x8] sm:$0xff] %vm1162, %v1275
        %1281 = vrot.lane.b32.xlu0 %v1159, 96
        %v1282 = vpop.permute.xlu0 %1281
        %1284 = vrot.lane.b32.xlu0 %v1160, 96
        %v1285 = vpop.permute.xlu0 %1284
        %v1287 = vsel %vm1162, %v1282, 0
        %v1290 = vsel %vm1162, %v1285, 0
        %1292 = vmatprep.subr.bf16.mxu0 0
        %1293 = vmatpush1.bf16.xpose.msra.mxu0 %v1290
        %1294 = vmatprep.subr.bf16.mxu0 0
        %1295 = vmatpush1.bf16.xpose.msra.mxu0 0
        %1296 = vmatprep.subr.bf16.mxu0 0
        %1297 = vmatpush1.bf16.xpose.msra.mxu0 0
        %1298 = vmatprep.subr.bf16.mxu0 0
        %1299 = vmatpush1.bf16.xpose.msra.mxu0 0
        %1300 = vmatprep.subr.bf16.mxu0 0
        %1301 = vmatpush1.bf16.xpose.msra.mxu0 0
        %1302 = vmatprep.subr.bf16.mxu0 0
        %1303 = vmatpush1.bf16.xpose.msra.mxu0 0
        %1304 = vmatprep.subr.bf16.mxu0 0
        %1305 = vmatpush1.bf16.xpose.msra.mxu0 0
        %1306 = vmatprep.subr.bf16.mxu0 0
        %1307 = vmatpush1.bf16.xpose.msra.mxu0 0
        %1308 = vmatprep.subr.bf16.mxu0 0
        %1309 = vmatpush1.bf16.xpose.msra.mxu0 0
        %1310 = vmatprep.subr.bf16.mxu0 0
        %1311 = vmatpush1.bf16.xpose.msra.mxu0 0
        %1312 = vmatprep.subr.bf16.mxu0 0
        %1313 = vmatpush1.bf16.xpose.msra.mxu0 0
        %1314 = vmatprep.subr.bf16.mxu0 0
        %1315 = vmatpush1.bf16.xpose.msra.mxu0 0
        %1316 = vmatprep.subr.bf16.mxu0 0
        %1317 = vmatpush1.bf16.xpose.msra.mxu0 0
        %1318 = vmatprep.subr.bf16.mxu0 0
        %1319 = vmatpush1.bf16.xpose.msra.mxu0 0
        %1320 = vmatprep.subr.bf16.mxu0 0
        %1321 = vmatpush1.bf16.xpose.msra.mxu0 0
        %1322 = vmatprep.subr.bf16.mxu0 0
        %1323 = vmatpush1.bf16.xpose.msra.mxu0 0
        %1324 = vmatprep.mubr.bf16.mxu0 0
        %1325 = vmatmul.mubr.bf16.gmra.mrb[0].mxu0 %v1287
        %v1326 = vpop.f32.mrb[0].mxu0
        %v1327 = vadd.f32 0.0, %v1326
        %v1328 = vpop.f32.mrb[0].mxu0
        %v1329 = vpop.f32.mrb[0].mxu0
        %v1330 = vadd.f32 0.0, %v1329
        %v1331 = vpop.f32.mrb[0].mxu0
        %1332 = vdwg.mxu0
        %v1333 = vsel %vm1210, %v1327, -inf
        %1334 = vmax.xlane.f32.xlu0 %v1333
        %v1335 = vpop.xlane.xlu0 %1334
        %v1336 = vsel %vm1210, %v1330, -inf
        %1337 = vmax.xlane.f32.xlu0 %v1336
        %v1338 = vpop.xlane.xlu0 %1337
        %v1339 = vsub.f32 %v1327, %v1335
        %v1340 = vsub.f32 %v1330, %v1338
        %v1341 = vmul.f32 %v1339, 1.442695
        %v1342 = vpow.pop %v1341
        %v1343 = vmul.f32 %v1340, 1.442695
        %v1344 = vpow.pop %v1343
        %v1345 = vsel %vm1210, %v1342, 0.0
        %1346 = vadd.xlane.f32.xlu0 %v1345
        %v1347 = vpop.xlane.xlu0 %1346
        %v1348 = vsel %vm1210, %v1344, 0.0
        %1349 = vadd.xlane.f32.xlu0 %v1348
        %v1350 = vpop.xlane.xlu0 %1349
        %v1351 = vrcp.pop %v1347
        %v1352 = vrcp.pop %v1350
        %v1353 = vmul.f32 %v1342, %v1351
        %v1354 = vmul.f32 %v1344, %v1352
        %v1355 = vpack.c.bf16 %v1354, %v1353
        %1357 = vrot.lane.b32.xlu0 %v1161, 96
        %v1358 = vpop.permute.xlu0 %1357
        %v1361 = vsel %vm1210, %v1355, 0
        %1363 = vmatprep.subr.bf16.mxu0 0
        %1364 = vmatpush1.bf16.msra.mxu0 %v1358
        %1365 = vmatprep.subr.bf16.mxu0 0
        %1366 = vmatpush1.bf16.msra.mxu0 0
        %1367 = vmatprep.subr.bf16.mxu0 0
        %1368 = vmatpush1.bf16.msra.mxu0 0
        %1369 = vmatprep.subr.bf16.mxu0 0
        %1370 = vmatpush1.bf16.msra.mxu0 0
        %1371 = vmatprep.subr.bf16.mxu0 0
        %1372 = vmatpush1.bf16.msra.mxu0 0
        %1373 = vmatprep.subr.bf16.mxu0 0
        %1374 = vmatpush1.bf16.msra.mxu0 0
        %1375 = vmatprep.subr.bf16.mxu0 0
        %1376 = vmatpush1.bf16.msra.mxu0 0
        %1377 = vmatprep.subr.bf16.mxu0 0
        %1378 = vmatpush1.bf16.msra.mxu0 0
        %1379 = vmatprep.subr.bf16.mxu0 0
        %1380 = vmatpush1.bf16.msra.mxu0 0
        %1381 = vmatprep.subr.bf16.mxu0 0
        %1382 = vmatpush1.bf16.msra.mxu0 0
        %1383 = vmatprep.subr.bf16.mxu0 0
        %1384 = vmatpush1.bf16.msra.mxu0 0
        %1385 = vmatprep.subr.bf16.mxu0 0
        %1386 = vmatpush1.bf16.msra.mxu0 0
        %1387 = vmatprep.subr.bf16.mxu0 0
        %1388 = vmatpush1.bf16.msra.mxu0 0
        %1389 = vmatprep.subr.bf16.mxu0 0
        %1390 = vmatpush1.bf16.msra.mxu0 0
        %1391 = vmatprep.subr.bf16.mxu0 0
        %1392 = vmatpush1.bf16.msra.mxu0 0
        %1393 = vmatprep.subr.bf16.mxu0 0
        %1394 = vmatpush1.bf16.msra.mxu0 0
        %1395 = vmatprep.mubr.bf16.mxu0 0
        %1396 = vmatmul.mubr.bf16.gmra.mrb[0].mxu0 %v1361
        %v1397 = vpop.f32.mrb[0].mxu0
        %v1398 = vadd.f32 0.0, %v1397
        %v1399 = vpop.f32.mrb[0].mxu0
        %v1400 = vpop.f32.mrb[0].mxu0
        %v1401 = vadd.f32 0.0, %v1400
        %v1402 = vpop.f32.mrb[0].mxu0
        %1403 = vdwg.mxu0
        %1406 = vrot.lane.b32.xlu0 %v1398, 32
        %v1407 = vpop.permute.xlu0 %1406
        %1408 = vrot.lane.b32.xlu0 %v1401, 32
        %v1409 = vpop.permute.xlu0 %1408
        %vm1412 = vcmask 523520
        %1413 = vst.msk [vmem:[#allocation3] sm:$0xff] %vm1412, %v1407
        %1414 = vst.msk [vmem:[#allocation3 + $0x8] sm:$0xff] %vm1412, %v1409
        %1415 = vrot.lane.b32.xlu0 %v1159, 64
        %v1416 = vpop.permute.xlu0 %1415
        %1417 = vrot.lane.b32.xlu0 %v1160, 64
        %v1418 = vpop.permute.xlu0 %1417
        %v1420 = vsel %vm1162, %v1416, 0
        %v1423 = vsel %vm1162, %v1418, 0
        %1425 = vmatprep.subr.bf16.mxu0 0
        %1426 = vmatpush1.bf16.xpose.msra.mxu0 %v1423
        %1427 = vmatprep.subr.bf16.mxu0 0
        %1428 = vmatpush1.bf16.xpose.msra.mxu0 0
        %1429 = vmatprep.subr.bf16.mxu0 0
        %1430 = vmatpush1.bf16.xpose.msra.mxu0 0
        %1431 = vmatprep.subr.bf16.mxu0 0
        %1432 = vmatpush1.bf16.xpose.msra.mxu0 0
        %1433 = vmatprep.subr.bf16.mxu0 0
        %1434 = vmatpush1.bf16.xpose.msra.mxu0 0
        %1435 = vmatprep.subr.bf16.mxu0 0
        %1436 = vmatpush1.bf16.xpose.msra.mxu0 0
        %1437 = vmatprep.subr.bf16.mxu0 0
        %1438 = vmatpush1.bf16.xpose.msra.mxu0 0
        %1439 = vmatprep.subr.bf16.mxu0 0
        %1440 = vmatpush1.bf16.xpose.msra.mxu0 0
        %1441 = vmatprep.subr.bf16.mxu0 0
        %1442 = vmatpush1.bf16.xpose.msra.mxu0 0
        %1443 = vmatprep.subr.bf16.mxu0 0
        %1444 = vmatpush1.bf16.xpose.msra.mxu0 0
        %1445 = vmatprep.subr.bf16.mxu0 0
        %1446 = vmatpush1.bf16.xpose.msra.mxu0 0
        %1447 = vmatprep.subr.bf16.mxu0 0
        %1448 = vmatpush1.bf16.xpose.msra.mxu0 0
        %1449 = vmatprep.subr.bf16.mxu0 0
        %1450 = vmatpush1.bf16.xpose.msra.mxu0 0
        %1451 = vmatprep.subr.bf16.mxu0 0
        %1452 = vmatpush1.bf16.xpose.msra.mxu0 0
        %1453 = vmatprep.subr.bf16.mxu0 0
        %1454 = vmatpush1.bf16.xpose.msra.mxu0 0
        %1455 = vmatprep.subr.bf16.mxu0 0
        %1456 = vmatpush1.bf16.xpose.msra.mxu0 0
        %1457 = vmatprep.mubr.bf16.mxu0 0
        %1458 = vmatmul.mubr.bf16.gmra.mrb[0].mxu0 %v1420
        %v1459 = vpop.f32.mrb[0].mxu0
        %v1460 = vadd.f32 0.0, %v1459
        %v1461 = vpop.f32.mrb[0].mxu0
        %v1462 = vpop.f32.mrb[0].mxu0
        %v1463 = vadd.f32 0.0, %v1462
        %v1464 = vpop.f32.mrb[0].mxu0
        %1465 = vdwg.mxu0
        %v1466 = vsel %vm1210, %v1460, -inf
        %1467 = vmax.xlane.f32.xlu0 %v1466
        %v1468 = vpop.xlane.xlu0 %1467
        %v1469 = vsel %vm1210, %v1463, -inf
        %1470 = vmax.xlane.f32.xlu0 %v1469
        %v1471 = vpop.xlane.xlu0 %1470
        %v1472 = vsub.f32 %v1460, %v1468
        %v1473 = vsub.f32 %v1463, %v1471
        %v1474 = vmul.f32 %v1472, 1.442695
        %v1475 = vpow.pop %v1474
        %v1476 = vmul.f32 %v1473, 1.442695
        %v1477 = vpow.pop %v1476
        %v1478 = vsel %vm1210, %v1475, 0.0
        %1479 = vadd.xlane.f32.xlu0 %v1478
        %v1480 = vpop.xlane.xlu0 %1479
        %v1481 = vsel %vm1210, %v1477, 0.0
        %1482 = vadd.xlane.f32.xlu0 %v1481
        %v1483 = vpop.xlane.xlu0 %1482
        %v1484 = vrcp.pop %v1480
        %v1485 = vrcp.pop %v1483
        %v1486 = vmul.f32 %v1475, %v1484
        %v1487 = vmul.f32 %v1477, %v1485
        %v1488 = vpack.c.bf16 %v1487, %v1486
        %1489 = vrot.lane.b32.xlu0 %v1161, 64
        %v1490 = vpop.permute.xlu0 %1489
        %v1493 = vsel %vm1210, %v1488, 0
        %1495 = vmatprep.subr.bf16.mxu0 0
        %1496 = vmatpush1.bf16.msra.mxu0 %v1490
        %1497 = vmatprep.subr.bf16.mxu0 0
        %1498 = vmatpush1.bf16.msra.mxu0 0
        %1499 = vmatprep.subr.bf16.mxu0 0
        %1500 = vmatpush1.bf16.msra.mxu0 0
        %1501 = vmatprep.subr.bf16.mxu0 0
        %1502 = vmatpush1.bf16.msra.mxu0 0
        %1503 = vmatprep.subr.bf16.mxu0 0
        %1504 = vmatpush1.bf16.msra.mxu0 0
        %1505 = vmatprep.subr.bf16.mxu0 0
        %1506 = vmatpush1.bf16.msra.mxu0 0
        %1507 = vmatprep.subr.bf16.mxu0 0
        %1508 = vmatpush1.bf16.msra.mxu0 0
        %1509 = vmatprep.subr.bf16.mxu0 0
        %1510 = vmatpush1.bf16.msra.mxu0 0
        %1511 = vmatprep.subr.bf16.mxu0 0
        %1512 = vmatpush1.bf16.msra.mxu0 0
        %1513 = vmatprep.subr.bf16.mxu0 0
        %1514 = vmatpush1.bf16.msra.mxu0 0
        %1515 = vmatprep.subr.bf16.mxu0 0
        %1516 = vmatpush1.bf16.msra.mxu0 0
        %1517 = vmatprep.subr.bf16.mxu0 0
        %1518 = vmatpush1.bf16.msra.mxu0 0
        %1519 = vmatprep.subr.bf16.mxu0 0
        %1520 = vmatpush1.bf16.msra.mxu0 0
        %1521 = vmatprep.subr.bf16.mxu0 0
        %1522 = vmatpush1.bf16.msra.mxu0 0
        %1523 = vmatprep.subr.bf16.mxu0 0
        %1524 = vmatpush1.bf16.msra.mxu0 0
        %1525 = vmatprep.subr.bf16.mxu0 0
        %1526 = vmatpush1.bf16.msra.mxu0 0
        %1527 = vmatprep.mubr.bf16.mxu0 0
        %1528 = vmatmul.mubr.bf16.gmra.mrb[0].mxu0 %v1493
        %v1529 = vpop.f32.mrb[0].mxu0
        %v1530 = vadd.f32 0.0, %v1529
        %v1531 = vpop.f32.mrb[0].mxu0
        %v1532 = vpop.f32.mrb[0].mxu0
        %v1533 = vadd.f32 0.0, %v1532
        %v1534 = vpop.f32.mrb[0].mxu0
        %1535 = vdwg.mxu0
        %1538 = vrot.lane.b32.xlu0 %v1530, 64
        %v1539 = vpop.permute.xlu0 %1538
        %1540 = vrot.lane.b32.xlu0 %v1533, 64
        %v1541 = vpop.permute.xlu0 %1540
        %vm1544 = vcmask 785920
        %1545 = vst.msk [vmem:[#allocation3] sm:$0xff] %vm1544, %v1539
        %1546 = vst.msk [vmem:[#allocation3 + $0x8] sm:$0xff] %vm1544, %v1541
        %1547 = vrot.lane.b32.xlu0 %v1159, 32
        %v1548 = vpop.permute.xlu0 %1547
        %1549 = vrot.lane.b32.xlu0 %v1160, 32
        %v1550 = vpop.permute.xlu0 %1549
        %v1552 = vsel %vm1162, %v1548, 0
        %v1555 = vsel %vm1162, %v1550, 0
        %1557 = vmatprep.subr.bf16.mxu0 0
        %1558 = vmatpush1.bf16.xpose.msra.mxu0 %v1555
        %1559 = vmatprep.subr.bf16.mxu0 0
        %1560 = vmatpush1.bf16.xpose.msra.mxu0 0
        %1561 = vmatprep.subr.bf16.mxu0 0
        %1562 = vmatpush1.bf16.xpose.msra.mxu0 0
        %1563 = vmatprep.subr.bf16.mxu0 0
        %1564 = vmatpush1.bf16.xpose.msra.mxu0 0
        %1565 = vmatprep.subr.bf16.mxu0 0
        %1566 = vmatpush1.bf16.xpose.msra.mxu0 0
        %1567 = vmatprep.subr.bf16.mxu0 0
        %1568 = vmatpush1.bf16.xpose.msra.mxu0 0
        %1569 = vmatprep.subr.bf16.mxu0 0
        %1570 = vmatpush1.bf16.xpose.msra.mxu0 0
        %1571 = vmatprep.subr.bf16.mxu0 0
        %1572 = vmatpush1.bf16.xpose.msra.mxu0 0
        %1573 = vmatprep.subr.bf16.mxu0 0
        %1574 = vmatpush1.bf16.xpose.msra.mxu0 0
        %1575 = vmatprep.subr.bf16.mxu0 0
        %1576 = vmatpush1.bf16.xpose.msra.mxu0 0
        %1577 = vmatprep.subr.bf16.mxu0 0
        %1578 = vmatpush1.bf16.xpose.msra.mxu0 0
        %1579 = vmatprep.subr.bf16.mxu0 0
        %1580 = vmatpush1.bf16.xpose.msra.mxu0 0
        %1581 = vmatprep.subr.bf16.mxu0 0
        %1582 = vmatpush1.bf16.xpose.msra.mxu0 0
        %1583 = vmatprep.subr.bf16.mxu0 0
        %1584 = vmatpush1.bf16.xpose.msra.mxu0 0
        %1585 = vmatprep.subr.bf16.mxu0 0
        %1586 = vmatpush1.bf16.xpose.msra.mxu0 0
        %1587 = vmatprep.subr.bf16.mxu0 0
        %1588 = vmatpush1.bf16.xpose.msra.mxu0 0
        %1589 = vmatprep.mubr.bf16.mxu0 0
        %1590 = vmatmul.mubr.bf16.gmra.mrb[0].mxu0 %v1552
        %v1591 = vpop.f32.mrb[0].mxu0
        %v1592 = vadd.f32 0.0, %v1591
        %v1593 = vpop.f32.mrb[0].mxu0
        %v1594 = vpop.f32.mrb[0].mxu0
        %v1595 = vadd.f32 0.0, %v1594
        %v1596 = vpop.f32.mrb[0].mxu0
        %1597 = vdwg.mxu0
        %v1598 = vsel %vm1210, %v1592, -inf
        %1599 = vmax.xlane.f32.xlu0 %v1598
        %v1600 = vpop.xlane.xlu0 %1599
        %v1601 = vsel %vm1210, %v1595, -inf
        %1602 = vmax.xlane.f32.xlu0 %v1601
        %v1603 = vpop.xlane.xlu0 %1602
        %v1604 = vsub.f32 %v1592, %v1600
        %v1605 = vsub.f32 %v1595, %v1603
        %v1606 = vmul.f32 %v1604, 1.442695
        %v1607 = vpow.pop %v1606
        %v1608 = vmul.f32 %v1605, 1.442695
        %v1609 = vpow.pop %v1608
        %v1610 = vsel %vm1210, %v1607, 0.0
        %1611 = vadd.xlane.f32.xlu0 %v1610
        %v1612 = vpop.xlane.xlu0 %1611
        %v1613 = vsel %vm1210, %v1609, 0.0
        %1614 = vadd.xlane.f32.xlu0 %v1613
        %v1615 = vpop.xlane.xlu0 %1614
        %v1616 = vrcp.pop %v1612
        %v1617 = vrcp.pop %v1615
        %v1618 = vmul.f32 %v1607, %v1616
        %v1619 = vmul.f32 %v1609, %v1617
        %v1620 = vpack.c.bf16 %v1619, %v1618
        %1621 = vrot.lane.b32.xlu0 %v1161, 32
        %v1622 = vpop.permute.xlu0 %1621
        %v1625 = vsel %vm1210, %v1620, 0
        %1627 = vmatprep.subr.bf16.mxu0 0
        %1628 = vmatpush1.bf16.msra.mxu0 %v1622
        %1629 = vmatprep.subr.bf16.mxu0 0
        %1630 = vmatpush1.bf16.msra.mxu0 0
        %1631 = vmatprep.subr.bf16.mxu0 0
        %1632 = vmatpush1.bf16.msra.mxu0 0
        %1633 = vmatprep.subr.bf16.mxu0 0
        %1634 = vmatpush1.bf16.msra.mxu0 0
        %1635 = vmatprep.subr.bf16.mxu0 0
        %1636 = vmatpush1.bf16.msra.mxu0 0
        %1637 = vmatprep.subr.bf16.mxu0 0
        %1638 = vmatpush1.bf16.msra.mxu0 0
        %1639 = vmatprep.subr.bf16.mxu0 0
        %1640 = vmatpush1.bf16.msra.mxu0 0
        %1641 = vmatprep.subr.bf16.mxu0 0
        %1642 = vmatpush1.bf16.msra.mxu0 0
        %1643 = vmatprep.subr.bf16.mxu0 0
        %1644 = vmatpush1.bf16.msra.mxu0 0
        %1645 = vmatprep.subr.bf16.mxu0 0
        %1646 = vmatpush1.bf16.msra.mxu0 0
        %1647 = vmatprep.subr.bf16.mxu0 0
        %1648 = vmatpush1.bf16.msra.mxu0 0
        %1649 = vmatprep.subr.bf16.mxu0 0
        %1650 = vmatpush1.bf16.msra.mxu0 0
        %1651 = vmatprep.subr.bf16.mxu0 0
        %1652 = vmatpush1.bf16.msra.mxu0 0
        %1653 = vmatprep.subr.bf16.mxu0 0
        %1654 = vmatpush1.bf16.msra.mxu0 0
        %1655 = vmatprep.subr.bf16.mxu0 0
        %1656 = vmatpush1.bf16.msra.mxu0 0
        %1657 = vmatprep.subr.bf16.mxu0 0
        %1658 = vmatpush1.bf16.msra.mxu0 0
        %1659 = vmatprep.mubr.bf16.mxu0 0
        %1660 = vmatmul.mubr.bf16.gmra.mrb[0].mxu0 %v1625
        %v1661 = vpop.f32.mrb[0].mxu0
        %v1662 = vadd.f32 0.0, %v1661
        %v1663 = vpop.f32.mrb[0].mxu0
        %v1664 = vpop.f32.mrb[0].mxu0
        %v1665 = vadd.f32 0.0, %v1664
        %v1666 = vpop.f32.mrb[0].mxu0
        %1667 = vdwg.mxu0
        %1670 = vrot.lane.b32.xlu0 %v1662, 96
        %v1671 = vpop.permute.xlu0 %1670
        %1672 = vrot.lane.b32.xlu0 %v1665, 96
        %v1673 = vpop.permute.xlu0 %1672
        %vm1676 = vcmask 1048320
        %1677 = vst.msk [vmem:[#allocation3] sm:$0xff] %vm1676, %v1671
        %1678 = vst.msk [vmem:[#allocation3 + $0x8] sm:$0xff] %vm1676, %v1673
        %v1679 = vld [vmem:[#allocation3] sm:$0xff]
        %v1680 = vld [vmem:[#allocation3 + $0x8] sm:$0xff]
        %v1681 = vpack.c.bf16 %v1680, %v1679
        %v1682 = vld [vmem:[%s832] sm:$0xf]
        %v1683 = vld [vmem:[%s832 + $0x4] sm:$0xf]
        %v1684 = vld [vmem:[%s832 + $0x8] sm:$0xf]
        %v1685 = vld [vmem:[%s832 + $0xc] sm:$0xf]
        %v1686 = vld [vmem:[%s832 + $0x10] sm:$0xf]
        %v1687 = vld [vmem:[%s832 + $0x14] sm:$0xf]
        %v1688 = vld [vmem:[%s832 + $0x18] sm:$0xf]
        %v1689 = vld [vmem:[%s832 + $0x1c] sm:$0xf]
        %v1690 = vld [vmem:[%s832 + $0x20] sm:$0xf]
        %v1691 = vld [vmem:[%s832 + $0x24] sm:$0xf]
        %v1692 = vld [vmem:[%s832 + $0x28] sm:$0xf]
        %v1693 = vld [vmem:[%s832 + $0x2c] sm:$0xf]
        %v1694 = vld [vmem:[%s832 + $0x30] sm:$0xf]
        %v1695 = vld [vmem:[%s832 + $0x34] sm:$0xf]
        %v1696 = vld [vmem:[%s832 + $0x38] sm:$0xf]
        %v1697 = vld [vmem:[%s832 + $0x3c] sm:$0xf]
        %v1714 = vunpack.c.l.b16 %v1682
        %v1715 = vunpack.c.l.b16 %v1683
        %v1716 = vunpack.c.l.b16 %v1684
        %v1717 = vunpack.c.l.b16 %v1685
        %v1718 = vunpack.c.l.b16 %v1686
        %v1719 = vunpack.c.l.b16 %v1687
        %v1720 = vunpack.c.l.b16 %v1688
        %v1721 = vunpack.c.l.b16 %v1689
        %v1722 = vunpack.c.l.b16 %v1690
        %v1723 = vunpack.c.l.b16 %v1691
        %v1724 = vunpack.c.l.b16 %v1692
        %v1725 = vunpack.c.l.b16 %v1693
        %v1726 = vunpack.c.l.b16 %v1694
        %v1727 = vunpack.c.l.b16 %v1695
        %v1728 = vunpack.c.l.b16 %v1696
        %v1729 = vunpack.c.l.b16 %v1697
        %v1730 = vpack.c.b16 %v1715, %v1714
        %v1731 = vpack.c.b16 %v1717, %v1716
        %v1732 = vpack.c.b16 %v1719, %v1718
        %v1733 = vpack.c.b16 %v1721, %v1720
        %v1734 = vpack.c.b16 %v1723, %v1722
        %v1735 = vpack.c.b16 %v1725, %v1724
        %v1736 = vpack.c.b16 %v1727, %v1726
        %v1737 = vpack.c.b16 %v1729, %v1728
        %1746 = vmatprep.subr.bf16.mxu0 0
        %1747 = vmatpush1.bf16.msra.mxu0 %v1730
        %1748 = vmatprep.subr.bf16.mxu0 0
        %1749 = vmatpush1.bf16.msra.mxu0 %v1731
        %1750 = vmatprep.subr.bf16.mxu0 0
        %1751 = vmatpush1.bf16.msra.mxu0 %v1732
        %1752 = vmatprep.subr.bf16.mxu0 0
        %1753 = vmatpush1.bf16.msra.mxu0 %v1733
        %1754 = vmatprep.subr.bf16.mxu0 0
        %1755 = vmatpush1.bf16.msra.mxu0 %v1734
        %1756 = vmatprep.subr.bf16.mxu0 0
        %1757 = vmatpush1.bf16.msra.mxu0 %v1735
        %1758 = vmatprep.subr.bf16.mxu0 0
        %1759 = vmatpush1.bf16.msra.mxu0 %v1736
        %1760 = vmatprep.subr.bf16.mxu0 0
        %1761 = vmatpush1.bf16.msra.mxu0 %v1737
        %1762 = vmatprep.subr.bf16.mxu0 0
        %1763 = vmatpush1.bf16.msra.mxu0 0
        %1764 = vmatprep.subr.bf16.mxu0 0
        %1765 = vmatpush1.bf16.msra.mxu0 0
        %1766 = vmatprep.subr.bf16.mxu0 0
        %1767 = vmatpush1.bf16.msra.mxu0 0
        %1768 = vmatprep.subr.bf16.mxu0 0
        %1769 = vmatpush1.bf16.msra.mxu0 0
        %1770 = vmatprep.subr.bf16.mxu0 0
        %1771 = vmatpush1.bf16.msra.mxu0 0
        %1772 = vmatprep.subr.bf16.mxu0 0
        %1773 = vmatpush1.bf16.msra.mxu0 0
        %1774 = vmatprep.subr.bf16.mxu0 0
        %1775 = vmatpush1.bf16.msra.mxu0 0
        %1776 = vmatprep.subr.bf16.mxu0 0
        %1777 = vmatpush1.bf16.msra.mxu0 0
        %1778 = vmatprep.mubr.bf16.mxu0 0
        %1779 = vmatmul.mubr.bf16.gmra.mrb[0].mxu0 %v1681
        %v1780 = vpop.f32.mrb[0].mxu0
        %v1781 = vadd.f32 0.0, %v1780
        %v1782 = vpop.f32.mrb[0].mxu0
        %v1783 = vpop.f32.mrb[0].mxu0
        %v1784 = vadd.f32 0.0, %v1783
        %v1785 = vpop.f32.mrb[0].mxu0
        %1786 = vdwg.mxu0
        %v1787 = vadd.f32 %v852, %v1781
        %v1788 = vadd.f32 %v853, %v1784
        %v1789 = vld [vmem:[%s671] sm:$0x1]
        %v1791 = vlaneseq
        %v1792 = vshrl.u32 %v1791, 7
        %v1793 = vsub.s32 0, %v1792
        %v1794 = vrot.slane %v1789, %v1793
        %v1796 = vadd.f32 %v1787, %v1794
        %v1797 = vadd.f32 %v1788, %v1794
        %v1798 = vld [vmem:[%s679] sm:$0x1]
        %v1799 = vld [vmem:[%s687] sm:$0x1]
        %1800 = vadd.xlane.f32.xlu0 %v1796
        %v1801 = vpop.xlane.xlu0 %1800
        %1802 = vadd.xlane.f32.xlu0 %v1797
        %v1803 = vpop.xlane.xlu0 %1802
        %v1804 = vmul.f32 %v1801, %v860
        %v1805 = vmul.f32 %v1803, %v860
        %v1806 = vsub.f32 %v1796, %v1804
        %v1807 = vsub.f32 %v1797, %v1805
        %v1808 = vmul.f32 %v1806, %v1806
        %v1809 = vmul.f32 %v1807, %v1807
        %1810 = vadd.xlane.f32.xlu0 %v1808
        %v1811 = vpop.xlane.xlu0 %1810
        %1812 = vadd.xlane.f32.xlu0 %v1809
        %v1813 = vpop.xlane.xlu0 %1812
        %v1814 = vmul.f32 %v1811, %v860
        %v1815 = vmul.f32 %v1813, %v860
        %v1816 = vadd.f32 %v1814, 1e-05
        %v1817 = vadd.f32 %v1815, 1e-05
        %v1818 = vrsqrt.pop %v1816
        %v1819 = vrsqrt.pop %v1817
        %v1820 = vmul.f32 %v1806, %v1818
        %v1821 = vmul.f32 %v1807, %v1819
        %v1823 = vlaneseq
        %v1824 = vshrl.u32 %v1823, 7
        %v1825 = vsub.s32 0, %v1824
        %v1826 = vrot.slane %v1798, %v1825
        %v1828 = vmul.f32 %v1820, %v1826
        %v1829 = vmul.f32 %v1821, %v1826
        %v1831 = vlaneseq
        %v1832 = vshrl.u32 %v1831, 7
        %v1833 = vsub.s32 0, %v1832
        %v1834 = vrot.slane %v1799, %v1833
        %v1836 = vadd.f32 %v1828, %v1834
        %v1837 = vadd.f32 %v1829, %v1834
        %v1838 = vpack.c.bf16 %v1837, %v1836
        %v1839 = vld [vmem:[%s837] sm:$0xff]
        %v1840 = vld [vmem:[%s837 + $0x8] sm:$0xff]
        %v1841 = vld [vmem:[%s837 + $0x10] sm:$0xff]
        %v1842 = vld [vmem:[%s837 + $0x18] sm:$0xff]
        %v1843 = vld [vmem:[%s837 + $0x20] sm:$0xff]
        %v1844 = vld [vmem:[%s837 + $0x28] sm:$0xff]
        %v1845 = vld [vmem:[%s837 + $0x30] sm:$0xff]
        %v1846 = vld [vmem:[%s837 + $0x38] sm:$0xff]
        %v1847 = vld [vmem:[%s837 + $0x40] sm:$0xff]
        %v1848 = vld [vmem:[%s837 + $0x48] sm:$0xff]
        %v1849 = vld [vmem:[%s837 + $0x50] sm:$0xff]
        %v1850 = vld [vmem:[%s837 + $0x58] sm:$0xff]
        %v1851 = vld [vmem:[%s837 + $0x60] sm:$0xff]
        %v1852 = vld [vmem:[%s837 + $0x68] sm:$0xff]
        %v1853 = vld [vmem:[%s837 + $0x70] sm:$0xff]
        %v1854 = vld [vmem:[%s837 + $0x78] sm:$0xff]
        %v1855 = vld [vmem:[%s696] sm:$0x3]
        %v1857 = vlaneseq
        %v1858 = vshrl.u32 %v1857, 7
        %v1859 = vsub.s32 0, %v1858
        %v1860 = vrot.slane %v1855, %v1859
        %v1861 = vlaneseq
        %v1862 = vshrl.u32 %v1861, 7
        %v1863 = vsub.s32 1, %v1862
        %v1864 = vrot.slane %v1855, %v1863
        %v1883 = vunpack.c.l.b16 %v1839
        %v1884 = vunpack.c.h.b16 %v1839
        %v1885 = vunpack.c.l.b16 %v1840
        %v1886 = vunpack.c.h.b16 %v1840
        %v1887 = vunpack.c.l.b16 %v1841
        %v1888 = vunpack.c.h.b16 %v1841
        %v1889 = vunpack.c.l.b16 %v1842
        %v1890 = vunpack.c.h.b16 %v1842
        %v1891 = vunpack.c.l.b16 %v1843
        %v1892 = vunpack.c.h.b16 %v1843
        %v1893 = vunpack.c.l.b16 %v1844
        %v1894 = vunpack.c.h.b16 %v1844
        %v1895 = vunpack.c.l.b16 %v1845
        %v1896 = vunpack.c.h.b16 %v1845
        %v1897 = vunpack.c.l.b16 %v1846
        %v1898 = vunpack.c.h.b16 %v1846
        %v1899 = vunpack.c.l.b16 %v1847
        %v1900 = vunpack.c.h.b16 %v1847
        %v1901 = vunpack.c.l.b16 %v1848
        %v1902 = vunpack.c.h.b16 %v1848
        %v1903 = vunpack.c.l.b16 %v1849
        %v1904 = vunpack.c.h.b16 %v1849
        %v1905 = vunpack.c.l.b16 %v1850
        %v1906 = vunpack.c.h.b16 %v1850
        %v1907 = vunpack.c.l.b16 %v1851
        %v1908 = vunpack.c.h.b16 %v1851
        %v1909 = vunpack.c.l.b16 %v1852
        %v1910 = vunpack.c.h.b16 %v1852
        %v1911 = vunpack.c.l.b16 %v1853
        %v1912 = vunpack.c.h.b16 %v1853
        %v1913 = vunpack.c.l.b16 %v1854
        %v1914 = vunpack.c.h.b16 %v1854
        %v1915 = vpack.c.b16 %v1885, %v1883
        %v1916 = vpack.c.b16 %v1886, %v1884
        %v1917 = vpack.c.b16 %v1889, %v1887
        %v1918 = vpack.c.b16 %v1890, %v1888
        %v1919 = vpack.c.b16 %v1893, %v1891
        %v1920 = vpack.c.b16 %v1894, %v1892
        %v1921 = vpack.c.b16 %v1897, %v1895
        %v1922 = vpack.c.b16 %v1898, %v1896
        %v1923 = vpack.c.b16 %v1901, %v1899
        %v1924 = vpack.c.b16 %v1902, %v1900
        %v1925 = vpack.c.b16 %v1905, %v1903
        %v1926 = vpack.c.b16 %v1906, %v1904
        %v1927 = vpack.c.b16 %v1909, %v1907
        %v1928 = vpack.c.b16 %v1910, %v1908
        %v1929 = vpack.c.b16 %v1913, %v1911
        %v1930 = vpack.c.b16 %v1914, %v1912
        %1947 = vmatprep.subr.bf16.mxu0 %v1916
        %1948 = vmatpush1.bf16.msra.mxu0 %v1915
        %1949 = vmatprep.subr.bf16.mxu0 %v1918
        %1950 = vmatpush1.bf16.msra.mxu0 %v1917
        %1951 = vmatprep.subr.bf16.mxu0 %v1920
        %1952 = vmatpush1.bf16.msra.mxu0 %v1919
        %1953 = vmatprep.subr.bf16.mxu0 %v1922
        %1954 = vmatpush1.bf16.msra.mxu0 %v1921
        %1955 = vmatprep.subr.bf16.mxu0 %v1924
        %1956 = vmatpush1.bf16.msra.mxu0 %v1923
        %1957 = vmatprep.subr.bf16.mxu0 %v1926
        %1958 = vmatpush1.bf16.msra.mxu0 %v1925
        %1959 = vmatprep.subr.bf16.mxu0 %v1928
        %1960 = vmatpush1.bf16.msra.mxu0 %v1927
        %1961 = vmatprep.subr.bf16.mxu0 %v1930
        %1962 = vmatpush1.bf16.msra.mxu0 %v1929
        %1963 = vmatprep.subr.bf16.mxu0 0
        %1964 = vmatpush1.bf16.msra.mxu0 0
        %1965 = vmatprep.subr.bf16.mxu0 0
        %1966 = vmatpush1.bf16.msra.mxu0 0
        %1967 = vmatprep.subr.bf16.mxu0 0
        %1968 = vmatpush1.bf16.msra.mxu0 0
        %1969 = vmatprep.subr.bf16.mxu0 0
        %1970 = vmatpush1.bf16.msra.mxu0 0
        %1971 = vmatprep.subr.bf16.mxu0 0
        %1972 = vmatpush1.bf16.msra.mxu0 0
        %1973 = vmatprep.subr.bf16.mxu0 0
        %1974 = vmatpush1.bf16.msra.mxu0 0
        %1975 = vmatprep.subr.bf16.mxu0 0
        %1976 = vmatpush1.bf16.msra.mxu0 0
        %1977 = vmatprep.subr.bf16.mxu0 0
        %1978 = vmatpush1.bf16.msra.mxu0 0
        %1979 = vmatprep.mubr.bf16.mxu0 0
        %1980 = vmatmul.mubr.bf16.gmra.mrb[0].mxu0 %v1838
        %v1981 = vpop.f32.mrb[0].mxu0
        %v1982 = vadd.f32 %v1860, %v1981
        %v1983 = vpop.f32.mrb[0].mxu0
        %v1984 = vadd.f32 %v1864, %v1983
        %v1985 = vpop.f32.mrb[0].mxu0
        %v1986 = vadd.f32 %v1860, %v1985
        %v1987 = vpop.f32.mrb[0].mxu0
        %v1988 = vadd.f32 %v1864, %v1987
        %1989 = vdwg.mxu0
        %v1990 = vmul.f32 %v1982, %v1982
        %v1991 = vmul.f32 %v1984, %v1984
        %v1992 = vmul.f32 %v1986, %v1986
        %v1993 = vmul.f32 %v1988, %v1988
        %v1994 = vmul.f32 %v1982, %v1990
        %v1995 = vmul.f32 %v1984, %v1991
        %v1996 = vmul.f32 %v1986, %v1992
        %v1997 = vmul.f32 %v1988, %v1993
        %v1998 = vmul.f32 %v1994, 0.044715
        %v1999 = vmul.f32 %v1995, 0.044715
        %v2000 = vmul.f32 %v1996, 0.044715
        %v2001 = vmul.f32 %v1997, 0.044715
        %v2002 = vadd.f32 %v1982, %v1998
        %v2003 = vadd.f32 %v1984, %v1999
        %v2004 = vadd.f32 %v1986, %v2000
        %v2005 = vadd.f32 %v1988, %v2001
        %v2006 = vmul.f32 %v2002, 0.7978846
        %v2007 = vmul.f32 %v2003, 0.7978846
        %v2008 = vmul.f32 %v2004, 0.7978846
        %v2009 = vmul.f32 %v2005, 0.7978846
        %v2010 = vtanh.pop %v2006
        %v2011 = vtanh.pop %v2007
        %v2012 = vtanh.pop %v2008
        %v2013 = vtanh.pop %v2009
        %v2014 = vadd.f32 %v2010, 1.0
        %v2015 = vadd.f32 %v2011, 1.0
        %v2016 = vadd.f32 %v2012, 1.0
        %v2017 = vadd.f32 %v2013, 1.0
        %v2018 = vmul.f32 %v2014, 0.5
        %v2019 = vmul.f32 %v2015, 0.5
        %v2020 = vmul.f32 %v2016, 0.5
        %v2021 = vmul.f32 %v2017, 0.5
        %v2022 = vmul.f32 %v1982, %v2018
        %v2023 = vmul.f32 %v1984, %v2019
        %v2024 = vmul.f32 %v1986, %v2020
        %v2025 = vmul.f32 %v1988, %v2021
        %v2026 = vpack.c.bf16 %v2024, %v2022
        %v2027 = vpack.c.bf16 %v2025, %v2023
        %v2028 = vld [vmem:[%s842] sm:$0xf]
        %v2029 = vld [vmem:[%s842 + $0x4] sm:$0xf]
        %v2030 = vld [vmem:[%s842 + $0x8] sm:$0xf]
        %v2031 = vld [vmem:[%s842 + $0xc] sm:$0xf]
        %v2032 = vld [vmem:[%s842 + $0x10] sm:$0xf]
        %v2033 = vld [vmem:[%s842 + $0x14] sm:$0xf]
        %v2034 = vld [vmem:[%s842 + $0x18] sm:$0xf]
        %v2035 = vld [vmem:[%s842 + $0x1c] sm:$0xf]
        %v2036 = vld [vmem:[%s842 + $0x20] sm:$0xf]
        %v2037 = vld [vmem:[%s842 + $0x24] sm:$0xf]
        %v2038 = vld [vmem:[%s842 + $0x28] sm:$0xf]
        %v2039 = vld [vmem:[%s842 + $0x2c] sm:$0xf]
        %v2040 = vld [vmem:[%s842 + $0x30] sm:$0xf]
        %v2041 = vld [vmem:[%s842 + $0x34] sm:$0xf]
        %v2042 = vld [vmem:[%s842 + $0x38] sm:$0xf]
        %v2043 = vld [vmem:[%s842 + $0x3c] sm:$0xf]
        %v2044 = vld [vmem:[%s842 + $0x40] sm:$0xf]
        %v2045 = vld [vmem:[%s842 + $0x44] sm:$0xf]
        %v2046 = vld [vmem:[%s842 + $0x48] sm:$0xf]
        %v2047 = vld [vmem:[%s842 + $0x4c] sm:$0xf]
        %v2048 = vld [vmem:[%s842 + $0x50] sm:$0xf]
        %v2049 = vld [vmem:[%s842 + $0x54] sm:$0xf]
        %v2050 = vld [vmem:[%s842 + $0x58] sm:$0xf]
        %v2051 = vld [vmem:[%s842 + $0x5c] sm:$0xf]
        %v2052 = vld [vmem:[%s842 + $0x60] sm:$0xf]
        %v2053 = vld [vmem:[%s842 + $0x64] sm:$0xf]
        %v2054 = vld [vmem:[%s842 + $0x68] sm:$0xf]
        %v2055 = vld [vmem:[%s842 + $0x6c] sm:$0xf]
        %v2056 = vld [vmem:[%s842 + $0x70] sm:$0xf]
        %v2057 = vld [vmem:[%s842 + $0x74] sm:$0xf]
        %v2058 = vld [vmem:[%s842 + $0x78] sm:$0xf]
        %v2059 = vld [vmem:[%s842 + $0x7c] sm:$0xf]
        %v2092 = vunpack.c.l.b16 %v2028
        %v2093 = vunpack.c.l.b16 %v2029
        %v2094 = vunpack.c.l.b16 %v2030
        %v2095 = vunpack.c.l.b16 %v2031
        %v2096 = vunpack.c.l.b16 %v2032
        %v2097 = vunpack.c.l.b16 %v2033
        %v2098 = vunpack.c.l.b16 %v2034
        %v2099 = vunpack.c.l.b16 %v2035
        %v2100 = vunpack.c.l.b16 %v2036
        %v2101 = vunpack.c.l.b16 %v2037
        %v2102 = vunpack.c.l.b16 %v2038
        %v2103 = vunpack.c.l.b16 %v2039
        %v2104 = vunpack.c.l.b16 %v2040
        %v2105 = vunpack.c.l.b16 %v2041
        %v2106 = vunpack.c.l.b16 %v2042
        %v2107 = vunpack.c.l.b16 %v2043
        %v2108 = vunpack.c.l.b16 %v2044
        %v2109 = vunpack.c.l.b16 %v2045
        %v2110 = vunpack.c.l.b16 %v2046
        %v2111 = vunpack.c.l.b16 %v2047
        %v2112 = vunpack.c.l.b16 %v2048
        %v2113 = vunpack.c.l.b16 %v2049
        %v2114 = vunpack.c.l.b16 %v2050
        %v2115 = vunpack.c.l.b16 %v2051
        %v2116 = vunpack.c.l.b16 %v2052
        %v2117 = vunpack.c.l.b16 %v2053
        %v2118 = vunpack.c.l.b16 %v2054
        %v2119 = vunpack.c.l.b16 %v2055
        %v2120 = vunpack.c.l.b16 %v2056
        %v2121 = vunpack.c.l.b16 %v2057
        %v2122 = vunpack.c.l.b16 %v2058
        %v2123 = vunpack.c.l.b16 %v2059
        %v2124 = vpack.c.b16 %v2093, %v2092
        %v2125 = vpack.c.b16 %v2095, %v2094
        %v2126 = vpack.c.b16 %v2097, %v2096
        %v2127 = vpack.c.b16 %v2099, %v2098
        %v2128 = vpack.c.b16 %v2101, %v2100
        %v2129 = vpack.c.b16 %v2103, %v2102
        %v2130 = vpack.c.b16 %v2105, %v2104
        %v2131 = vpack.c.b16 %v2107, %v2106
        %v2132 = vpack.c.b16 %v2109, %v2108
        %v2133 = vpack.c.b16 %v2111, %v2110
        %v2134 = vpack.c.b16 %v2113, %v2112
        %v2135 = vpack.c.b16 %v2115, %v2114
        %v2136 = vpack.c.b16 %v2117, %v2116
        %v2137 = vpack.c.b16 %v2119, %v2118
        %v2138 = vpack.c.b16 %v2121, %v2120
        %v2139 = vpack.c.b16 %v2123, %v2122
        %2156 = vmatprep.subr.bf16.mxu0 0
        %2157 = vmatpush1.bf16.msra.mxu0 %v2124
        %2158 = vmatprep.subr.bf16.mxu0 0
        %2159 = vmatpush1.bf16.msra.mxu0 %v2125
        %2160 = vmatprep.subr.bf16.mxu0 0
        %2161 = vmatpush1.bf16.msra.mxu0 %v2126
        %2162 = vmatprep.subr.bf16.mxu0 0
        %2163 = vmatpush1.bf16.msra.mxu0 %v2127
        %2164 = vmatprep.subr.bf16.mxu0 0
        %2165 = vmatpush1.bf16.msra.mxu0 %v2128
        %2166 = vmatprep.subr.bf16.mxu0 0
        %2167 = vmatpush1.bf16.msra.mxu0 %v2129
        %2168 = vmatprep.subr.bf16.mxu0 0
        %2169 = vmatpush1.bf16.msra.mxu0 %v2130
        %2170 = vmatprep.subr.bf16.mxu0 0
        %2171 = vmatpush1.bf16.msra.mxu0 %v2131
        %2172 = vmatprep.subr.bf16.mxu0 0
        %2173 = vmatpush1.bf16.msra.mxu0 %v2132
        %2174 = vmatprep.subr.bf16.mxu0 0
        %2175 = vmatpush1.bf16.msra.mxu0 %v2133
        %2176 = vmatprep.subr.bf16.mxu0 0
        %2177 = vmatpush1.bf16.msra.mxu0 %v2134
        %2178 = vmatprep.subr.bf16.mxu0 0
        %2179 = vmatpush1.bf16.msra.mxu0 %v2135
        %2180 = vmatprep.subr.bf16.mxu0 0
        %2181 = vmatpush1.bf16.msra.mxu0 %v2136
        %2182 = vmatprep.subr.bf16.mxu0 0
        %2183 = vmatpush1.bf16.msra.mxu0 %v2137
        %2184 = vmatprep.subr.bf16.mxu0 0
        %2185 = vmatpush1.bf16.msra.mxu0 %v2138
        %2186 = vmatprep.subr.bf16.mxu0 0
        %2187 = vmatpush1.bf16.msra.mxu0 %v2139
        %2188 = vmatprep.mubr.bf16.mxu0 %v2027
        %2189 = vmatmul.mubr.bf16.gmra.mrb[0].mxu0 %v2026
        %v2190 = vpop.f32.mrb[0].mxu0
        %v2191 = vadd.f32 0.0, %v2190
        %v2192 = vpop.f32.mrb[0].mxu0
        %v2193 = vpop.f32.mrb[0].mxu0
        %v2194 = vadd.f32 0.0, %v2193
        %v2195 = vpop.f32.mrb[0].mxu0
        %2196 = vdwg.mxu0
        %v2197 = vadd.f32 %v1796, %v2191
        %v2198 = vadd.f32 %v1797, %v2194
        %v2199 = vld [vmem:[%s704] sm:$0x1]
        %v2201 = vlaneseq
        %v2202 = vshrl.u32 %v2201, 7
        %v2203 = vsub.s32 0, %v2202
        %v2204 = vrot.slane %v2199, %v2203
        %v2206 = vadd.f32 %v2197, %v2204
        %v2207 = vadd.f32 %v2198, %v2204
        %2208 = vst [vmem:[#allocation2] sm:$0xff] %v2206
        %2209 = vst [vmem:[#allocation2 + $0x8] sm:$0xff] %v2207
        %p2210 = scmp.eq.s32.totalorder %s47, 1
        // Predicated region
        $region117: #{asr_forward.3} parent=79 // pred_check
          %p2211 = pneg %p2210
        $region118: #{asr_forward.3} parent=79 // pred_check_branch
          %2213 = sbr.rel (%p2211) target = $region120
        $region119: #{asr_forward.3} parent=79 // pred_region
          %v2214 = vld [vmem:[#allocation15] sm:$0x1]
          %v2215 = vld [vmem:[#allocation16] sm:$0x1]
          %2216 = vadd.xlane.f32.xlu0 %v2206
          %v2217 = vpop.xlane.xlu0 %2216
          %2218 = vadd.xlane.f32.xlu0 %v2207
          %v2219 = vpop.xlane.xlu0 %2218
          %v2220 = vmul.f32 %v2217, %v860
          %v2221 = vmul.f32 %v2219, %v860
          %v2222 = vsub.f32 %v2206, %v2220
          %v2223 = vsub.f32 %v2207, %v2221
          %v2224 = vmul.f32 %v2222, %v2222
          %v2225 = vmul.f32 %v2223, %v2223
          %2226 = vadd.xlane.f32.xlu0 %v2224
          %v2227 = vpop.xlane.xlu0 %2226
          %2228 = vadd.xlane.f32.xlu0 %v2225
          %v2229 = vpop.xlane.xlu0 %2228
          %v2230 = vmul.f32 %v2227, %v860
          %v2231 = vmul.f32 %v2229, %v860
          %v2232 = vadd.f32 %v2230, 1e-05
          %v2233 = vadd.f32 %v2231, 1e-05
          %v2234 = vrsqrt.pop %v2232
          %v2235 = vrsqrt.pop %v2233
          %v2236 = vmul.f32 %v2222, %v2234
          %v2237 = vmul.f32 %v2223, %v2235
          %v2239 = vlaneseq
          %v2240 = vshrl.u32 %v2239, 7
          %v2241 = vsub.s32 0, %v2240
          %v2242 = vrot.slane %v2214, %v2241
          %v2244 = vmul.f32 %v2236, %v2242
          %v2245 = vmul.f32 %v2237, %v2242
          %v2247 = vlaneseq
          %v2248 = vshrl.u32 %v2247, 7
          %v2249 = vsub.s32 0, %v2248
          %v2250 = vrot.slane %v2215, %v2249
          %v2252 = vadd.f32 %v2244, %v2250
          %v2253 = vadd.f32 %v2245, %v2250
          %2254 = vst [vmem:[%s810] sm:$0xff] %v2252
          %2255 = vst [vmem:[%s810 + $0x8] sm:$0xff] %v2253
        $region120: #{asr_forward.3} parent=79 // pred_fallthru
          _
        %s2256 = sand.u32 %s442, 1
        %s2257 = scalar_lea.sflag [#allocation6], %s2256
        %s2258 = sand.u32 %s442, 1
        %s2259 = smul.addr %s2258, 16
        %s2260 = scalar_lea.vmem [#allocation18], %s2259
        // Predicated region
        $region121: #{asr_forward.3} parent=79 // pred_check
          %p2261 = pneg %p452
        $region122: #{asr_forward.3} parent=79 // pred_check_branch
          %2263 = sbr.rel (%p2261) target = $region124
        $region123: #{asr_forward.3} parent=79 // pred_region
          %s2265 = ssub.s32 256, 256
          %2266 = vsyncadd %s2257, %s2265
          %s2267 = smul.addr %s46, 2
          %s2268 = smul.addr %s2267, 128
          %s2269 = scalar_lea.hbm %s15, %s2268
          %s2270 = sshll.u32 %s2260, 4
          %s2271 = int_to_ptr.vmem [resolvable:$true] %s2270
          %2276 = dma.vmem_to_hbm [thread:$0]  %s2271, 256, %s2269, %s2257, 128, 128, 8
        $region124: #{asr_forward.3} parent=79 // pred_fallthru
          _
      $region80: #{asr_forward.3} parent=5 // pred_fallthru
        _
      %p2277 = scmp.le.s32.totalorder 2, %s37
      // Predicated region
      $region125: #{asr_forward.3} parent=5 // pred_check
        %p2278 = pneg %p2277
      $region126: #{asr_forward.3} parent=5 // pred_check_branch
        %2280 = sbr.rel (%p2278) target = $region128
      $region127: #{asr_forward.3} parent=5 // pred_region
        %s2281 = ssub.s32 %s37, 2
        // Predicated region
        $region129: #{asr_forward.3} parent=127 // pred_check
          %p2282 = pneg %p458
        $region130: #{asr_forward.3} parent=127 // pred_check_branch
          %2284 = sbr.rel (%p2282) target = $region132
        $region131: #{asr_forward.3} parent=127 // pred_region
          %s2285 = sand.u32 %s443, 1
          %s2286 = scalar_lea.sflag [#allocation6], %s2285
          %s2287 = sand.u32 %s443, 1
          %s2288 = smul.addr %s2287, 16
          %s2289 = scalar_lea.vmem [#allocation18], %s2288
          %2290 = dma.done %s2286, 256
        $region132: #{asr_forward.3} parent=127 // pred_fallthru
          _
      $region128: #{asr_forward.3} parent=5 // pred_fallthru
        _
    $region6: #{asr_forward.3} parent=1 // loop_footer
      %s41 = sadd.s32 1, %s37
    $region7: #{asr_forward.3} parent=1 // loop_footer_branch
      %36 = sbr.rel target = $region3
    $region8: #{asr_forward.3} parent=1 // loop_exit
      _
    %2291 = vsyncpa [#allocation5], 1
    %s2292 = scalar_lea.sflag [#allocation5], 1
    %2293 = vsyncpa %s2292, 1
    %2294 = vsyncpa [#allocation8], 1
    %s2295 = scalar_lea.sflag [#allocation8], 1
    %2296 = vsyncpa %s2295, 1
    %2297 = vsyncpa [#allocation11], 1
    %s2298 = scalar_lea.sflag [#allocation11], 1
    %2299 = vsyncpa %s2298, 1
    %2300 = vsyncpa [#allocation14], 1
    %s2301 = scalar_lea.sflag [#allocation14], 1
    %2302 = vsyncpa %s2301, 1
    %2303 = vsyncpa [#allocation17], 1
    %2304 = vsyncpa [#allocation6], 1
    %s2305 = scalar_lea.sflag [#allocation6], 1
    %2306 = vsyncpa %s2305, 1

</llo_original>
